<compile_context>
chip_gen: v6e
topology: v6e:2x2x1
jax: 0.10.0
libtpu: 0.0.40
codegen_flags: <defaults>
</compile_context>

<pallas_src>
import math

import jax
import jax.numpy as jnp
from jax import lax
from jax.experimental import pallas as pl
from jax.experimental.pallas import tpu as pltpu

# ----------------------------- configuration -------------------------------
D_MODEL = 128
N_HEADS = 8
HEAD_DIM = D_MODEL // N_HEADS
LN_EPS = 1e-5
MAX_Q_TILE = 512          # Lq tile cap (sized well under v7x's 64 MiB VMEM)


# ------------------------------- kernel ------------------------------------
def cross_attn_kernel(
    low_ref, high_ref,            # data: (1, TQ, C) f32, (1, Lk, C) f32
    wq_ref, bq_ref,               # q_proj  (C, C) bf16 [in,out] (scale folded), (1, C) f32
    wkv_ref, bkv_ref,             # fused k|v proj  (C, 2C) bf16, (1, 2C) f32
    wo_ref, bo_ref,               # out_proj (C, C) bf16 [in,out], (1, C) f32
    g_ref, beta_ref,              # LayerNorm gamma / beta (1, C) f32
    out_ref,                      # (1, TQ, C) f32
):
    low = low_ref[0]                      # (TQ, C) f32 (kept f32 for residual)
    high = high_ref[0]                    # (Lk, C) f32
    TQ, C = low.shape
    Dh = C // N_HEADS

    low_bf = low.astype(jnp.bfloat16)
    high_bf = high.astype(jnp.bfloat16)

    # --- projections: two lane-dense bf16 MXU matmuls (f32 accumulate) ------
    # 1/sqrt(Dh) is pre-folded into wq and bq, so no per-step scale multiply.
    q = jnp.dot(low_bf, wq_ref[...], preferred_element_type=jnp.float32) + bq_ref[...]
    kv = jnp.dot(high_bf, wkv_ref[...], preferred_element_type=jnp.float32) + bkv_ref[...]

    q_bf = q.astype(jnp.bfloat16)         # (TQ, C)
    kv_bf = kv.astype(jnp.bfloat16)       # (Lk, 2C)

    # --- split heads to (H, L, Dh) via cheap lane-slices + leading-axis stack
    qh = jnp.stack([q_bf[:, h * Dh:(h + 1) * Dh] for h in range(N_HEADS)], axis=0)
    kh = jnp.stack([kv_bf[:, h * Dh:(h + 1) * Dh] for h in range(N_HEADS)], axis=0)
    vh = jnp.stack([kv_bf[:, C + h * Dh:C + (h + 1) * Dh] for h in range(N_HEADS)], axis=0)

    # --- batched-head scores: ONE matmul, (H, TQ, Lk) f32 -------------------
    s = jnp.einsum("hqd,hkd->hqk", qh, kh, preferred_element_type=jnp.float32)

    # --- single softmax over keys (attention dropout = identity, eval mode) -
    m = jnp.max(s, axis=-1, keepdims=True)
    e = jnp.exp(s - m)
    denom = jnp.sum(e, axis=-1, keepdims=True)
    p = (e * pl.reciprocal(denom, approx=False)).astype(jnp.bfloat16)

    # --- batched context: ONE matmul, (H, TQ, Dh) f32 -----------------------
    ctx = jnp.einsum("hqk,hkd->hqd", p, vh, preferred_element_type=jnp.float32)

    # --- re-pack heads lane-dense (TQ, C), single dense out_proj matmul -----
    ctx2d = jnp.concatenate([ctx[h] for h in range(N_HEADS)], axis=-1)
    attn = jnp.dot(ctx2d.astype(jnp.bfloat16), wo_ref[...],
                   preferred_element_type=jnp.float32) + bo_ref[...]

    # --- residual + LayerNorm (f32) ------------------------------------------
    x = attn + low
    mu = jnp.mean(x, axis=-1, keepdims=True)
    xc = x - mu
    var = jnp.mean(xc * xc, axis=-1, keepdims=True)
    y = xc * lax.rsqrt(var + LN_EPS) * g_ref[...] + beta_ref[...]

    out_ref[0] = y.astype(out_ref.dtype)
    # TODO(synk): key_padding_mask (V_mask) not supported; assumed None.
    # TODO(synk): long-Lk (flash-style key tiling) not implemented; Lk block
    #             is held whole in VMEM, which is fine at these sizes.


# ---------------------- one-time parameter preparation ----------------------
def prepare_params(params):
    """Off-the-hot-path weight prep: transpose to (in,out), fold the softmax
    scale into wq/bq, column-stack wk|wv, cast matmul weights to bf16."""
    scale = 1.0 / math.sqrt(HEAD_DIM)
    return {
        "wq": (params["wq"].T * scale).astype(jnp.bfloat16),
        "bq": (params["bq"] * scale).astype(jnp.float32),
        "wkv": jnp.concatenate([params["wk"].T, params["wv"].T], axis=1).astype(jnp.bfloat16),
        "bkv": jnp.concatenate([params["bk"], params["bv"]], axis=1).astype(jnp.float32),
        "wo": params["wo"].T.astype(jnp.bfloat16),
        "bo": params["bo"].astype(jnp.float32),
        "gamma": params["gamma"].astype(jnp.float32),
        "beta": params["beta"].astype(jnp.float32),
    }


# ------------------------------- wrapper ------------------------------------
@jax.jit
def cross_attention_layer(lower_tokens, higher_tokens, prepared):
    """lower_tokens: (B, Lq, C), higher_tokens: (B, Lk, C)  ->  (B, Lq, C)."""
    B, Lq, C = lower_tokens.shape
    _, Lk, _ = higher_tokens.shape
    assert C == D_MODEL

    # Lq tiling: one tile for small Lq; up to MAX_Q_TILE-row tiles for long
    # sequences (keeps per-step VMEM bounded and restores pipelining depth).
    TQ = Lq if Lq <= MAX_Q_TILE else MAX_Q_TILE
    assert Lq % TQ == 0, "Lq must be divisible by the Lq tile size"
    n_q_tiles = Lq // TQ

    weights = [
        prepared["wq"], prepared["bq"],
        prepared["wkv"], prepared["bkv"],
        prepared["wo"], prepared["bo"],
        prepared["gamma"], prepared["beta"],
    ]

    data_specs = [
        pl.BlockSpec((1, TQ, C), lambda b, qi: (b, qi, 0)),
        pl.BlockSpec((1, Lk, C), lambda b, qi: (b, 0, 0)),   # K/V resident across q tiles
    ]
    # parameters are 2-D and replicated for every grid step (stay VMEM-resident)
    w_specs = [pl.BlockSpec(w.shape, lambda b, qi: (0, 0)) for w in weights]

    grid_spec = pltpu.PrefetchScalarGridSpec(
        num_scalar_prefetch=0,
        grid=(B, n_q_tiles),
        in_specs=data_specs + w_specs,
        out_specs=pl.BlockSpec((1, TQ, C), lambda b, qi: (b, qi, 0)),
    )
    return pl.pallas_call(
        cross_attn_kernel,
        out_shape=jax.ShapeDtypeStruct((B, Lq, C), jnp.float32),
        grid_spec=grid_spec,
        compiler_params=pltpu.CompilerParams(
            dimension_semantics=("parallel", "parallel"),
            vmem_limit_bytes=32 * 1024 * 1024),
    )(lower_tokens, higher_tokens, *weights)


# ----------------------------- pure-JAX reference ----------------------------
def reference(lower, higher, p):
    B, Lq, C = lower.shape
    Lk = higher.shape[1]
    Dh = C // N_HEADS
    q = lower @ p["wq"].T + p["bq"]
    k = higher @ p["wk"].T + p["bk"]
    v = higher @ p["wv"].T + p["bv"]
    qh = q.reshape(B, Lq, N_HEADS, Dh).transpose(0, 2, 1, 3)
    kh = k.reshape(B, Lk, N_HEADS, Dh).transpose(0, 2, 1, 3)
    vh = v.reshape(B, Lk, N_HEADS, Dh).transpose(0, 2, 1, 3)
    s = jnp.einsum("bhqd,bhkd->bhqk", qh, kh) / math.sqrt(Dh)
    a = jax.nn.softmax(s, axis=-1)
    ctx = jnp.einsum("bhqk,bhkd->bhqd", a, vh)
    ctx = ctx.transpose(0, 2, 1, 3).reshape(B, Lq, C)
    attn = ctx @ p["wo"].T + p["bo"]
    x = attn + lower
    mu = x.mean(-1, keepdims=True)
    var = ((x - mu) ** 2).mean(-1, keepdims=True)
    return (x - mu) / jnp.sqrt(var + LN_EPS) * p["gamma"] + p["beta"]


# --------------------------------- main --------------------------------------
if __name__ == "__main__":
    B, LQ, LK = 2, 64, 128
    key = jax.random.PRNGKey(0)
    ks = jax.random.split(key, 12)

    def nrm(k, shape, scale=0.05):
        return (scale * jax.random.normal(k, shape)).astype(jnp.float32)

    # PyTorch-layout parameters: Linear weights are (out_features, in_features).
    params = {
        "wq": nrm(ks[0], (D_MODEL, D_MODEL)),
        "bq": nrm(ks[1], (1, D_MODEL)),
        "wk": nrm(ks[2], (D_MODEL, D_MODEL)),
        "bk": nrm(ks[3], (1, D_MODEL)),
        "wv": nrm(ks[4], (D_MODEL, D_MODEL)),
        "bv": nrm(ks[5], (1, D_MODEL)),
        "wo": nrm(ks[6], (D_MODEL, D_MODEL)),
        "bo": nrm(ks[7], (1, D_MODEL)),
        "gamma": jnp.ones((1, D_MODEL), jnp.float32),
        "beta": jnp.zeros((1, D_MODEL), jnp.float32),
    }

    lower_tokens = nrm(ks[8], (B, LQ, D_MODEL), 1.0)
    higher_tokens = nrm(ks[9], (B, LK, D_MODEL), 1.0)

    # One-time parameter prep (transposes / fusions / bf16 casts off hot path).
    prepared = prepare_params(params)

    out = cross_attention_layer(lower_tokens, higher_tokens, prepared)
    out = jax.block_until_ready(out)

    assert out.shape == (B, LQ, D_MODEL)
    assert bool(jnp.all(jnp.isfinite(out)))

    ref = reference(lower_tokens, higher_tokens, params)
    max_err = float(jnp.max(jnp.abs(out - ref)))
    mean_err = float(jnp.mean(jnp.abs(out - ref)))
    # Tolerance covers only bf16 MXU rounding vs. the f32 reference
    # (softmax reciprocal is exact, approx=False).
    assert max_err < 3e-2, f"max mismatch vs reference: {max_err}"
    assert mean_err < 5e-3, f"mean mismatch vs reference: {mean_err}"

    print("KERNEL_OK")
</pallas_src>

<mosaic_0001>
module attributes {stable_mosaic.version = 11 : i64} {
  func.func @cross_attn_kernel(%arg0: i32, %arg1: i32, %arg2: memref<1x64x128xf32, #tpu.memory_space<vmem>>, %arg3: memref<1x128x128xf32, #tpu.memory_space<vmem>>, %arg4: memref<128x128xbf16, #tpu.memory_space<vmem>>, %arg5: memref<1x128xf32, #tpu.memory_space<vmem>>, %arg6: memref<128x256xbf16, #tpu.memory_space<vmem>>, %arg7: memref<1x256xf32, #tpu.memory_space<vmem>>, %arg8: memref<128x128xbf16, #tpu.memory_space<vmem>>, %arg9: memref<1x128xf32, #tpu.memory_space<vmem>>, %arg10: memref<1x128xf32, #tpu.memory_space<vmem>>, %arg11: memref<1x128xf32, #tpu.memory_space<vmem>>, %arg12: memref<1x64x128xf32, #tpu.memory_space<vmem>>) attributes {dimension_semantics = [#tpu.dimension_semantics<parallel>, #tpu.dimension_semantics<parallel>], iteration_bounds = array<i64: 2, 1>, scalar_prefetch = 0 : i64, scratch_operands = 0 : i64, tpu.core_type = #tpu.core_type<tc>, window_params = [{transform_indices = @transform_0, window_bounds = array<i64: 1, 64, 128>}, {transform_indices = @transform_1, window_bounds = array<i64: 1, 128, 128>}, {pipeline_mode = #tpu.pipeline_mode<synchronous>, transform_indices = @transform_2, window_bounds = array<i64: 128, 128>}, {pipeline_mode = #tpu.pipeline_mode<synchronous>, transform_indices = @transform_3, window_bounds = array<i64: 1, 128>}, {pipeline_mode = #tpu.pipeline_mode<synchronous>, transform_indices = @transform_4, window_bounds = array<i64: 128, 256>}, {pipeline_mode = #tpu.pipeline_mode<synchronous>, transform_indices = @transform_5, window_bounds = array<i64: 1, 256>}, {pipeline_mode = #tpu.pipeline_mode<synchronous>, transform_indices = @transform_6, window_bounds = array<i64: 128, 128>}, {pipeline_mode = #tpu.pipeline_mode<synchronous>, transform_indices = @transform_7, window_bounds = array<i64: 1, 128>}, {pipeline_mode = #tpu.pipeline_mode<synchronous>, transform_indices = @transform_8, window_bounds = array<i64: 1, 128>}, {pipeline_mode = #tpu.pipeline_mode<synchronous>, transform_indices = @transform_9, window_bounds = array<i64: 1, 128>}, {transform_indices = @transform_10, window_bounds = array<i64: 1, 64, 128>}]} {
    %c0 = arith.constant 0 : index
    %c0_0 = arith.constant 0 : index
    %c0_1 = arith.constant 0 : index
    %0 = vector.load %arg2[%c0, %c0_0, %c0_1] : memref<1x64x128xf32, #tpu.memory_space<vmem>>, vector<1x64x128xf32>
    %1 = vector.shape_cast %0 : vector<1x64x128xf32> to vector<64x128xf32>
    %c0_2 = arith.constant 0 : index
    %c0_3 = arith.constant 0 : index
    %c0_4 = arith.constant 0 : index
    %2 = vector.load %arg3[%c0_2, %c0_3, %c0_4] : memref<1x128x128xf32, #tpu.memory_space<vmem>>, vector<1x128x128xf32>
    %3 = vector.shape_cast %2 : vector<1x128x128xf32> to vector<128x128xf32>
    %4 = arith.truncf %1 : vector<64x128xf32> to vector<64x128xbf16>
    %5 = arith.truncf %3 : vector<128x128xf32> to vector<128x128xbf16>
    %c0_5 = arith.constant 0 : index
    %c0_6 = arith.constant 0 : index
    %6 = vector.load %arg4[%c0_5, %c0_6] : memref<128x128xbf16, #tpu.memory_space<vmem>>, vector<128x128xbf16>
    %cst = arith.constant dense<0.000000e+00> : vector<64x128xf32>
    %7 = tpu.matmul %4, %6, %cst {dimension_numbers = #tpu.dot_dimension_numbers<[1], [0], [0], [1], [0, 0, 1, 1], [], []>} : vector<64x128xbf16>, vector<128x128xbf16>, vector<64x128xf32> -> vector<64x128xf32>
    %c0_7 = arith.constant 0 : index
    %c0_8 = arith.constant 0 : index
    %8 = vector.load %arg5[%c0_7, %c0_8] : memref<1x128xf32, #tpu.memory_space<vmem>>, vector<1x128xf32>
    %9 = vector.broadcast %8 : vector<1x128xf32> to vector<64x128xf32>
    %10 = arith.addf %7, %9 : vector<64x128xf32>
    %c0_9 = arith.constant 0 : index
    %c0_10 = arith.constant 0 : index
    %11 = vector.load %arg6[%c0_9, %c0_10] : memref<128x256xbf16, #tpu.memory_space<vmem>>, vector<128x256xbf16>
    %cst_11 = arith.constant dense<0.000000e+00> : vector<128x256xf32>
    %12 = tpu.matmul %5, %11, %cst_11 {dimension_numbers = #tpu.dot_dimension_numbers<[1], [0], [0], [1], [0, 0, 1, 1], [], []>} : vector<128x128xbf16>, vector<128x256xbf16>, vector<128x256xf32> -> vector<128x256xf32>
    %c0_12 = arith.constant 0 : index
    %c0_13 = arith.constant 0 : index
    %13 = vector.load %arg7[%c0_12, %c0_13] : memref<1x256xf32, #tpu.memory_space<vmem>>, vector<1x256xf32>
    %14 = vector.broadcast %13 : vector<1x256xf32> to vector<128x256xf32>
    %15 = arith.addf %12, %14 : vector<128x256xf32>
    %16 = arith.truncf %10 : vector<64x128xf32> to vector<64x128xbf16>
    %17 = arith.truncf %15 : vector<128x256xf32> to vector<128x256xbf16>
    %18 = vector.extract_strided_slice %16 {offsets = [0, 0], sizes = [64, 16], strides = [1, 1]} : vector<64x128xbf16> to vector<64x16xbf16>
    %19 = vector.extract_strided_slice %16 {offsets = [0, 16], sizes = [64, 16], strides = [1, 1]} : vector<64x128xbf16> to vector<64x16xbf16>
    %20 = vector.extract_strided_slice %16 {offsets = [0, 32], sizes = [64, 16], strides = [1, 1]} : vector<64x128xbf16> to vector<64x16xbf16>
    %21 = vector.extract_strided_slice %16 {offsets = [0, 48], sizes = [64, 16], strides = [1, 1]} : vector<64x128xbf16> to vector<64x16xbf16>
    %22 = vector.extract_strided_slice %16 {offsets = [0, 64], sizes = [64, 16], strides = [1, 1]} : vector<64x128xbf16> to vector<64x16xbf16>
    %23 = vector.extract_strided_slice %16 {offsets = [0, 80], sizes = [64, 16], strides = [1, 1]} : vector<64x128xbf16> to vector<64x16xbf16>
    %24 = vector.extract_strided_slice %16 {offsets = [0, 96], sizes = [64, 16], strides = [1, 1]} : vector<64x128xbf16> to vector<64x16xbf16>
    %25 = vector.extract_strided_slice %16 {offsets = [0, 112], sizes = [64, 16], strides = [1, 1]} : vector<64x128xbf16> to vector<64x16xbf16>
    %26 = vector.shape_cast %18 : vector<64x16xbf16> to vector<1x64x16xbf16>
    %27 = vector.shape_cast %19 : vector<64x16xbf16> to vector<1x64x16xbf16>
    %28 = vector.shape_cast %20 : vector<64x16xbf16> to vector<1x64x16xbf16>
    %29 = vector.shape_cast %21 : vector<64x16xbf16> to vector<1x64x16xbf16>
    %30 = vector.shape_cast %22 : vector<64x16xbf16> to vector<1x64x16xbf16>
    %31 = vector.shape_cast %23 : vector<64x16xbf16> to vector<1x64x16xbf16>
    %32 = vector.shape_cast %24 : vector<64x16xbf16> to vector<1x64x16xbf16>
    %33 = vector.shape_cast %25 : vector<64x16xbf16> to vector<1x64x16xbf16>
    %34 = tpu.concatenate %26, %27, %28, %29, %30, %31, %32, %33 in 0 : vector<1x64x16xbf16>, vector<1x64x16xbf16>, vector<1x64x16xbf16>, vector<1x64x16xbf16>, vector<1x64x16xbf16>, vector<1x64x16xbf16>, vector<1x64x16xbf16>, vector<1x64x16xbf16> -> vector<8x64x16xbf16>
    %35 = vector.extract_strided_slice %17 {offsets = [0, 0], sizes = [128, 16], strides = [1, 1]} : vector<128x256xbf16> to vector<128x16xbf16>
    %36 = vector.extract_strided_slice %17 {offsets = [0, 16], sizes = [128, 16], strides = [1, 1]} : vector<128x256xbf16> to vector<128x16xbf16>
    %37 = vector.extract_strided_slice %17 {offsets = [0, 32], sizes = [128, 16], strides = [1, 1]} : vector<128x256xbf16> to vector<128x16xbf16>
    %38 = vector.extract_strided_slice %17 {offsets = [0, 48], sizes = [128, 16], strides = [1, 1]} : vector<128x256xbf16> to vector<128x16xbf16>
    %39 = vector.extract_strided_slice %17 {offsets = [0, 64], sizes = [128, 16], strides = [1, 1]} : vector<128x256xbf16> to vector<128x16xbf16>
    %40 = vector.extract_strided_slice %17 {offsets = [0, 80], sizes = [128, 16], strides = [1, 1]} : vector<128x256xbf16> to vector<128x16xbf16>
    %41 = vector.extract_strided_slice %17 {offsets = [0, 96], sizes = [128, 16], strides = [1, 1]} : vector<128x256xbf16> to vector<128x16xbf16>
    %42 = vector.extract_strided_slice %17 {offsets = [0, 112], sizes = [128, 16], strides = [1, 1]} : vector<128x256xbf16> to vector<128x16xbf16>
    %43 = vector.shape_cast %35 : vector<128x16xbf16> to vector<1x128x16xbf16>
    %44 = vector.shape_cast %36 : vector<128x16xbf16> to vector<1x128x16xbf16>
    %45 = vector.shape_cast %37 : vector<128x16xbf16> to vector<1x128x16xbf16>
    %46 = vector.shape_cast %38 : vector<128x16xbf16> to vector<1x128x16xbf16>
    %47 = vector.shape_cast %39 : vector<128x16xbf16> to vector<1x128x16xbf16>
    %48 = vector.shape_cast %40 : vector<128x16xbf16> to vector<1x128x16xbf16>
    %49 = vector.shape_cast %41 : vector<128x16xbf16> to vector<1x128x16xbf16>
    %50 = vector.shape_cast %42 : vector<128x16xbf16> to vector<1x128x16xbf16>
    %51 = tpu.concatenate %43, %44, %45, %46, %47, %48, %49, %50 in 0 : vector<1x128x16xbf16>, vector<1x128x16xbf16>, vector<1x128x16xbf16>, vector<1x128x16xbf16>, vector<1x128x16xbf16>, vector<1x128x16xbf16>, vector<1x128x16xbf16>, vector<1x128x16xbf16> -> vector<8x128x16xbf16>
    %52 = vector.extract_strided_slice %17 {offsets = [0, 128], sizes = [128, 16], strides = [1, 1]} : vector<128x256xbf16> to vector<128x16xbf16>
    %53 = vector.extract_strided_slice %17 {offsets = [0, 144], sizes = [128, 16], strides = [1, 1]} : vector<128x256xbf16> to vector<128x16xbf16>
    %54 = vector.extract_strided_slice %17 {offsets = [0, 160], sizes = [128, 16], strides = [1, 1]} : vector<128x256xbf16> to vector<128x16xbf16>
    %55 = vector.extract_strided_slice %17 {offsets = [0, 176], sizes = [128, 16], strides = [1, 1]} : vector<128x256xbf16> to vector<128x16xbf16>
    %56 = vector.extract_strided_slice %17 {offsets = [0, 192], sizes = [128, 16], strides = [1, 1]} : vector<128x256xbf16> to vector<128x16xbf16>
    %57 = vector.extract_strided_slice %17 {offsets = [0, 208], sizes = [128, 16], strides = [1, 1]} : vector<128x256xbf16> to vector<128x16xbf16>
    %58 = vector.extract_strided_slice %17 {offsets = [0, 224], sizes = [128, 16], strides = [1, 1]} : vector<128x256xbf16> to vector<128x16xbf16>
    %59 = vector.extract_strided_slice %17 {offsets = [0, 240], sizes = [128, 16], strides = [1, 1]} : vector<128x256xbf16> to vector<128x16xbf16>
    %60 = vector.shape_cast %52 : vector<128x16xbf16> to vector<1x128x16xbf16>
    %61 = vector.shape_cast %53 : vector<128x16xbf16> to vector<1x128x16xbf16>
    %62 = vector.shape_cast %54 : vector<128x16xbf16> to vector<1x128x16xbf16>
    %63 = vector.shape_cast %55 : vector<128x16xbf16> to vector<1x128x16xbf16>
    %64 = vector.shape_cast %56 : vector<128x16xbf16> to vector<1x128x16xbf16>
    %65 = vector.shape_cast %57 : vector<128x16xbf16> to vector<1x128x16xbf16>
    %66 = vector.shape_cast %58 : vector<128x16xbf16> to vector<1x128x16xbf16>
    %67 = vector.shape_cast %59 : vector<128x16xbf16> to vector<1x128x16xbf16>
    %68 = tpu.concatenate %60, %61, %62, %63, %64, %65, %66, %67 in 0 : vector<1x128x16xbf16>, vector<1x128x16xbf16>, vector<1x128x16xbf16>, vector<1x128x16xbf16>, vector<1x128x16xbf16>, vector<1x128x16xbf16>, vector<1x128x16xbf16>, vector<1x128x16xbf16> -> vector<8x128x16xbf16>
    "tpu.trace_start"() <{level = 10 : i32, message = "hqd,hkd->hqk"}> : () -> ()
    %cst_14 = arith.constant dense<0.000000e+00> : vector<8x64x128xf32>
    %69 = tpu.matmul %34, %51, %cst_14 {dimension_numbers = #tpu.dot_dimension_numbers<[2], [2], [1], [1], [0, 0, 0, 1, 1, 1], [0], [0]>} : vector<8x64x16xbf16>, vector<8x128x16xbf16>, vector<8x64x128xf32> -> vector<8x64x128xf32>
    "tpu.trace_stop"() : () -> ()
    %cst_15 = arith.constant dense<0xFF800000> : vector<8x64xf32>
    %70 = vector.multi_reduction <maximumf>, %69, %cst_15 [2] : vector<8x64x128xf32> to vector<8x64xf32>
    %71 = vector.shape_cast %70 : vector<8x64xf32> to vector<8x64x1xf32>
    %72 = vector.broadcast %71 : vector<8x64x1xf32> to vector<8x64x128xf32>
    %73 = arith.subf %69, %72 : vector<8x64x128xf32>
    %74 = math.exp %73 : vector<8x64x128xf32>
    %cst_16 = arith.constant dense<0.000000e+00> : vector<8x64xf32>
    %75 = vector.multi_reduction <add>, %74, %cst_16 [2] : vector<8x64x128xf32> to vector<8x64xf32>
    %76 = vector.shape_cast %75 : vector<8x64xf32> to vector<8x64x1xf32>
    %77 = tpu.reciprocal %76 : vector<8x64x1xf32> -> vector<8x64x1xf32>
    %78 = vector.broadcast %77 : vector<8x64x1xf32> to vector<8x64x128xf32>
    %79 = arith.mulf %74, %78 : vector<8x64x128xf32>
    %80 = arith.truncf %79 : vector<8x64x128xf32> to vector<8x64x128xbf16>
    "tpu.trace_start"() <{level = 10 : i32, message = "hqk,hkd->hqd"}> : () -> ()
    %cst_17 = arith.constant dense<0.000000e+00> : vector<8x64x16xf32>
    %81 = tpu.matmul %80, %68, %cst_17 {dimension_numbers = #tpu.dot_dimension_numbers<[2], [1], [1], [2], [0, 0, 0, 1, 1, 2], [0], [0]>} : vector<8x64x128xbf16>, vector<8x128x16xbf16>, vector<8x64x16xf32> -> vector<8x64x16xf32>
    "tpu.trace_stop"() : () -> ()
    %82 = vector.extract_strided_slice %81 {offsets = [0, 0, 0], sizes = [1, 64, 16], strides = [1, 1, 1]} : vector<8x64x16xf32> to vector<1x64x16xf32>
    %83 = vector.shape_cast %82 : vector<1x64x16xf32> to vector<64x16xf32>
    %84 = vector.extract_strided_slice %81 {offsets = [1, 0, 0], sizes = [1, 64, 16], strides = [1, 1, 1]} : vector<8x64x16xf32> to vector<1x64x16xf32>
    %85 = vector.shape_cast %84 : vector<1x64x16xf32> to vector<64x16xf32>
    %86 = vector.extract_strided_slice %81 {offsets = [2, 0, 0], sizes = [1, 64, 16], strides = [1, 1, 1]} : vector<8x64x16xf32> to vector<1x64x16xf32>
    %87 = vector.shape_cast %86 : vector<1x64x16xf32> to vector<64x16xf32>
    %88 = vector.extract_strided_slice %81 {offsets = [3, 0, 0], sizes = [1, 64, 16], strides = [1, 1, 1]} : vector<8x64x16xf32> to vector<1x64x16xf32>
    %89 = vector.shape_cast %88 : vector<1x64x16xf32> to vector<64x16xf32>
    %90 = vector.extract_strided_slice %81 {offsets = [4, 0, 0], sizes = [1, 64, 16], strides = [1, 1, 1]} : vector<8x64x16xf32> to vector<1x64x16xf32>
    %91 = vector.shape_cast %90 : vector<1x64x16xf32> to vector<64x16xf32>
    %92 = vector.extract_strided_slice %81 {offsets = [5, 0, 0], sizes = [1, 64, 16], strides = [1, 1, 1]} : vector<8x64x16xf32> to vector<1x64x16xf32>
    %93 = vector.shape_cast %92 : vector<1x64x16xf32> to vector<64x16xf32>
    %94 = vector.extract_strided_slice %81 {offsets = [6, 0, 0], sizes = [1, 64, 16], strides = [1, 1, 1]} : vector<8x64x16xf32> to vector<1x64x16xf32>
    %95 = vector.shape_cast %94 : vector<1x64x16xf32> to vector<64x16xf32>
    %96 = vector.extract_strided_slice %81 {offsets = [7, 0, 0], sizes = [1, 64, 16], strides = [1, 1, 1]} : vector<8x64x16xf32> to vector<1x64x16xf32>
    %97 = vector.shape_cast %96 : vector<1x64x16xf32> to vector<64x16xf32>
    %98 = tpu.concatenate %83, %85, %87, %89, %91, %93, %95, %97 in 1 : vector<64x16xf32>, vector<64x16xf32>, vector<64x16xf32>, vector<64x16xf32>, vector<64x16xf32>, vector<64x16xf32>, vector<64x16xf32>, vector<64x16xf32> -> vector<64x128xf32>
    %99 = arith.truncf %98 : vector<64x128xf32> to vector<64x128xbf16>
    %c0_18 = arith.constant 0 : index
    %c0_19 = arith.constant 0 : index
    %100 = vector.load %arg8[%c0_18, %c0_19] : memref<128x128xbf16, #tpu.memory_space<vmem>>, vector<128x128xbf16>
    %cst_20 = arith.constant dense<0.000000e+00> : vector<64x128xf32>
    %101 = tpu.matmul %99, %100, %cst_20 {dimension_numbers = #tpu.dot_dimension_numbers<[1], [0], [0], [1], [0, 0, 1, 1], [], []>} : vector<64x128xbf16>, vector<128x128xbf16>, vector<64x128xf32> -> vector<64x128xf32>
    %c0_21 = arith.constant 0 : index
    %c0_22 = arith.constant 0 : index
    %102 = vector.load %arg9[%c0_21, %c0_22] : memref<1x128xf32, #tpu.memory_space<vmem>>, vector<1x128xf32>
    %103 = vector.broadcast %102 : vector<1x128xf32> to vector<64x128xf32>
    %104 = arith.addf %101, %103 : vector<64x128xf32>
    %105 = arith.addf %104, %1 : vector<64x128xf32>
    %cst_23 = arith.constant dense<0.000000e+00> : vector<64xf32>
    %106 = vector.multi_reduction <add>, %105, %cst_23 [1] : vector<64x128xf32> to vector<64xf32>
    %107 = vector.shape_cast %106 : vector<64xf32> to vector<64x1xf32>
    %cst_24 = arith.constant 1.280000e+02 : f32
    %108 = vector.broadcast %cst_24 : f32 to vector<64x1xf32>
    %109 = arith.divf %107, %108 : vector<64x1xf32>
    %110 = vector.broadcast %109 : vector<64x1xf32> to vector<64x128xf32>
    %111 = arith.subf %105, %110 : vector<64x128xf32>
    %112 = arith.mulf %111, %111 : vector<64x128xf32>
    %cst_25 = arith.constant dense<0.000000e+00> : vector<64xf32>
    %113 = vector.multi_reduction <add>, %112, %cst_25 [1] : vector<64x128xf32> to vector<64xf32>
    %114 = vector.shape_cast %113 : vector<64xf32> to vector<64x1xf32>
    %cst_26 = arith.constant 1.280000e+02 : f32
    %115 = vector.broadcast %cst_26 : f32 to vector<64x1xf32>
    %116 = arith.divf %114, %115 : vector<64x1xf32>
    %cst_27 = arith.constant 9.99999974E-6 : f32
    %117 = vector.broadcast %cst_27 : f32 to vector<64x1xf32>
    %118 = arith.addf %116, %117 : vector<64x1xf32>
    %119 = math.rsqrt %118 : vector<64x1xf32>
    %120 = vector.broadcast %119 : vector<64x1xf32> to vector<64x128xf32>
    %121 = arith.mulf %111, %120 : vector<64x128xf32>
    %c0_28 = arith.constant 0 : index
    %c0_29 = arith.constant 0 : index
    %122 = vector.load %arg10[%c0_28, %c0_29] : memref<1x128xf32, #tpu.memory_space<vmem>>, vector<1x128xf32>
    %123 = vector.broadcast %122 : vector<1x128xf32> to vector<64x128xf32>
    %124 = arith.mulf %121, %123 : vector<64x128xf32>
    %c0_30 = arith.constant 0 : index
    %c0_31 = arith.constant 0 : index
    %125 = vector.load %arg11[%c0_30, %c0_31] : memref<1x128xf32, #tpu.memory_space<vmem>>, vector<1x128xf32>
    %126 = vector.broadcast %125 : vector<1x128xf32> to vector<64x128xf32>
    %127 = arith.addf %124, %126 : vector<64x128xf32>
    %c0_32 = arith.constant 0 : index
    %c0_33 = arith.constant 0 : index
    %c0_34 = arith.constant 0 : index
    %128 = vector.load %arg12[%c0_32, %c0_33, %c0_34] : memref<1x64x128xf32, #tpu.memory_space<vmem>>, vector<1x64x128xf32>
    %129 = vector.shape_cast %128 : vector<1x64x128xf32> to vector<64x128xf32>
    %130 = vector.shape_cast %127 : vector<64x128xf32> to vector<1x64x128xf32>
    tpu.vector_store %arg12[%c0_32, %c0_33, %c0_34], %130 {strides = array<i32>} : memref<1x64x128xf32, #tpu.memory_space<vmem>>, vector<1x64x128xf32>,
    return
  }
  func.func @transform_0(%arg0: i32, %arg1: i32) -> (i32, i32, i32) {
    %c0_i32 = arith.constant 0 : i32
    %c0_i32_0 = arith.constant 0 : i32
    return %arg0, %arg1, %c0_i32 : i32, i32, i32
  }
  func.func @transform_1(%arg0: i32, %arg1: i32) -> (i32, i32, i32) {
    %c0_i32 = arith.constant 0 : i32
    %c0_i32_0 = arith.constant 0 : i32
    %c0_i32_1 = arith.constant 0 : i32
    return %arg0, %c0_i32, %c0_i32_0 : i32, i32, i32
  }
  func.func @transform_2(%arg0: i32, %arg1: i32) -> (i32, i32) {
    %c0_i32 = arith.constant 0 : i32
    %c0_i32_0 = arith.constant 0 : i32
    %c0_i32_1 = arith.constant 0 : i32
    return %c0_i32, %c0_i32_0 : i32, i32
  }
  func.func @transform_3(%arg0: i32, %arg1: i32) -> (i32, i32) {
    %c0_i32 = arith.constant 0 : i32
    %c0_i32_0 = arith.constant 0 : i32
    %c0_i32_1 = arith.constant 0 : i32
    return %c0_i32, %c0_i32_0 : i32, i32
  }
  func.func @transform_4(%arg0: i32, %arg1: i32) -> (i32, i32) {
    %c0_i32 = arith.constant 0 : i32
    %c0_i32_0 = arith.constant 0 : i32
    %c0_i32_1 = arith.constant 0 : i32
    return %c0_i32, %c0_i32_0 : i32, i32
  }
  func.func @transform_5(%arg0: i32, %arg1: i32) -> (i32, i32) {
    %c0_i32 = arith.constant 0 : i32
    %c0_i32_0 = arith.constant 0 : i32
    %c0_i32_1 = arith.constant 0 : i32
    return %c0_i32, %c0_i32_0 : i32, i32
  }
  func.func @transform_6(%arg0: i32, %arg1: i32) -> (i32, i32) {
    %c0_i32 = arith.constant 0 : i32
    %c0_i32_0 = arith.constant 0 : i32
    %c0_i32_1 = arith.constant 0 : i32
    return %c0_i32, %c0_i32_0 : i32, i32
  }
  func.func @transform_7(%arg0: i32, %arg1: i32) -> (i32, i32) {
    %c0_i32 = arith.constant 0 : i32
    %c0_i32_0 = arith.constant 0 : i32
    %c0_i32_1 = arith.constant 0 : i32
    return %c0_i32, %c0_i32_0 : i32, i32
  }
  func.func @transform_8(%arg0: i32, %arg1: i32) -> (i32, i32) {
    %c0_i32 = arith.constant 0 : i32
    %c0_i32_0 = arith.constant 0 : i32
    %c0_i32_1 = arith.constant 0 : i32
    return %c0_i32, %c0_i32_0 : i32, i32
  }
  func.func @transform_9(%arg0: i32, %arg1: i32) -> (i32, i32) {
    %c0_i32 = arith.constant 0 : i32
    %c0_i32_0 = arith.constant 0 : i32
    %c0_i32_1 = arith.constant 0 : i32
    return %c0_i32, %c0_i32_0 : i32, i32
  }
  func.func @transform_10(%arg0: i32, %arg1: i32) -> (i32, i32, i32) {
    %c0_i32 = arith.constant 0 : i32
    %c0_i32_0 = arith.constant 0 : i32
    return %arg0, %arg1, %c0_i32 : i32, i32, i32
  }
}

</mosaic_0001>

<llo_original>
// kernel: cross_attention_layer.1
$region0: #{cross_attention_layer.1}
  #allocation0 [shape = 'u32[]', space=smem, size = 0x4, offset = 0x4, fixed_abs, tag = 'smem constant byte address 0x4 - core index']
  #allocation1 [shape = 'u32[144,128]{1,0:T(1,128)}', space=vmem, size = 0x12000, scoped, tag = 'internal scratch']
  %s0 = inlined_call_operand.hbm [shape: f32[2,64,128], index: 0, kind: input, shape index: {}]
  %s1 = inlined_call_operand.hbm [shape: f32[2,128,128], index: 1, kind: input, shape index: {}]
  %s2 = inlined_call_operand.hbm [shape: bf16[128,128], index: 2, kind: input, shape index: {}]
  %s3 = inlined_call_operand.vmem [shape: f32[1,128], index: 3, kind: input, shape index: {}]
  %s4 = inlined_call_operand.hbm [shape: bf16[128,256], index: 4, kind: input, shape index: {}]
  %s5 = inlined_call_operand.vmem [shape: f32[1,256], index: 5, kind: input, shape index: {}]
  %s6 = inlined_call_operand.hbm [shape: bf16[128,128], index: 6, kind: input, shape index: {}]
  %s7 = inlined_call_operand.vmem [shape: f32[1,128], index: 7, kind: input, shape index: {}]
  %s8 = inlined_call_operand.vmem [shape: f32[1,128], index: 8, kind: input, shape index: {}]
  %s9 = inlined_call_operand.hbm [shape: f32[1,128], index: 9, kind: input, shape index: {}]
  %s10 = inlined_call_operand.hbm [shape: f32[2,64,128], index: 10, kind: output, shape index: {}]
  %s11 = sld [smem:[#allocation0]]
  $region97: #{cross_attention_layer.1} parent=0
    _
  %s13 = ssub.s32 1, %s11
  %s14 = scalar_select 0, %s13, %s11
  $region1: #{cross_attention_layer.1} parent=0
    #allocation2 [shape = 'u8[65536]{0}', space=vmem, size = 0x10000, scoped, tag = 'input window, operand 0']
    #allocation3 [shape = 's32[2]{0}', space=sflag, size = 0x8, scoped, tag = 'scoped memory for cross_attention_layer.1']
    #allocation4 [shape = 's32[2]{0}', space=sflag, size = 0x8, scoped, tag = 'scoped memory for cross_attention_layer.1']
    #allocation5 [shape = 'u8[131072]{0}', space=vmem, size = 0x20000, scoped, tag = 'input window, operand 1']
    #allocation6 [shape = 's32[2]{0}', space=sflag, size = 0x8, scoped, tag = 'scoped memory for cross_attention_layer.1']
    #allocation7 [shape = 'u8[32768]{0}', space=vmem, size = 0x8000, scoped, tag = 'input window, operand 2, single buffered']
    #allocation8 [shape = 'u8[65536]{0}', space=vmem, size = 0x10000, scoped, tag = 'input window, operand 4, single buffered']
    #allocation9 [shape = 's32[1]{0}', space=sflag, size = 0x4, scoped, tag = 'scoped memory for cross_attention_layer.1']
    #allocation10 [shape = 'u8[32768]{0}', space=vmem, size = 0x8000, scoped, tag = 'input window, operand 6, single buffered']
    #allocation11 [shape = 'u8[512]{0}', space=vmem, size = 0x400, scoped, tag = 'input window, operand 9, single buffered']
    #allocation12 [shape = 's32[1]{0}', space=sflag, size = 0x4, scoped, tag = 'scoped memory for cross_attention_layer.1']
    #allocation13 [shape = 'u8[65536]{0}', space=vmem, size = 0x10000, scoped, tag = 'output window, operand 0']
    %15 = vsyncpa [#allocation3], 0
    %s16 = scalar_lea.sflag [#allocation3], 1
    %17 = vsyncpa %s16, 0
    %18 = vsyncpa [#allocation6], 0
    %s19 = scalar_lea.sflag [#allocation6], 1
    %20 = vsyncpa %s19, 0
    %21 = vsyncpa [#allocation9], 0
    %22 = vsyncpa [#allocation12], 0
    %23 = vsyncpa [#allocation4], 0
    %s24 = scalar_lea.sflag [#allocation4], 1
    %25 = vsyncpa %s24, 0
    loop: start=0, step=1, limit=4
    $region2: #{cross_attention_layer.1} parent=1 // loop_pre_header
      _
    $region3: #{cross_attention_layer.1} parent=1 // loop_header
      %s27 = sphi 0, %s31
      %p28 = scmp.ge.s32.totalorder %s27, 4
      %s34 = sphi 0, %s46
      %s35 = sphi 0, %s42
      %s36 = sphi 0, %s34
      %s37 = sphi 0, %s35
      %s38 = sphi 0, %s36
      %s39 = sphi 0, %s37
      %s51 = sphi 0, %s53
      %s54 = sphi 0, %s51
      %s55 = sphi 0, %s54
      %s71 = sphi 0, %s55
      %s77 = sphi 0, %s79
      %s80 = sphi 0, %s77
      %s81 = sphi 0, %s80
      %s97 = sphi 0, %s81
      %s101 = sphi 0, %s101
      %s103 = sphi 0, %s101
      %s104 = sphi 0, %s103
      %s118 = sphi 0, %s104
      %s122 = sphi 0, %s122
      %s124 = sphi 0, %s122
      %s125 = sphi 0, %s124
      %s139 = sphi 0, %s125
      %s143 = sphi 0, %s143
      %s145 = sphi 0, %s143
      %s146 = sphi 0, %s145
      %s160 = sphi 0, %s146
      %s164 = sphi 0, %s164
      %s166 = sphi 0, %s164
      %s167 = sphi 0, %s166
      %s181 = sphi 0, %s167
      %s185 = sphi 0, %s185
      %s187 = sphi 0, %s185
      %s188 = sphi 0, %s187
      %s202 = sphi 0, %s188
      %s206 = sphi 0, %s206
      %s208 = sphi 0, %s206
      %s209 = sphi 0, %s208
      %s223 = sphi 0, %s209
      %s227 = sphi 0, %s227
      %s229 = sphi 0, %s227
      %s230 = sphi 0, %s229
      %s244 = sphi 0, %s230
      %s248 = sphi 0, %s248
      %s250 = sphi 0, %s248
      %s251 = sphi 0, %s250
      %s265 = sphi 0, %s251
      %s273 = sphi 0, %s275
      %s276 = sphi 0, %s273
      %s277 = sphi 0, %s276
      %s293 = sphi 0, %s277
    $region4: #{cross_attention_layer.1} parent=1 // loop_header_branch
      %30 = sbr.rel (%p28) target = $region8
    $region5: #{cross_attention_layer.1} parent=1 // loop_body
      %s32 = ssub.s32 %s27, 1
      %s33 = ssub.s32 %s27, 2
      %s40 = sadd.s32 1, %s35
      %p41 = scmp.ge.s32.totalorder %s40, 1
      %s42 = scalar_select %p41, 0, %s40
      %s43 = sadd.s32 1, %s34
      %s44 = scalar_select %p41, %s43, %s34
      %p45 = scmp.ge.s32.totalorder %s44, 2
      %s46 = scalar_select %p45, 0, %s44
      %s47 = ssub.s32 %s34, %s46
      %s48 = ssub.s32 %s35, %s42
      %s49 = sor.u32 %s47, %s48
      %p50 = scmp.eq.s32.totalorder %s49, 0
      %s52 = sadd.s32 %s51, 1
      %s53 = scalar_select %p50, %s51, %s52
      %p56 = pneg %p50
      %p57 = scmp.eq.s32.totalorder %s27, 1
      %p58 = por %p56, %p57
      %p59 = scmp.ne.s32.totalorder %s51, %s54
      %p60 = scmp.eq.s32.totalorder %s27, 0
      %p61 = por %p59, %p60
      %p62 = scmp.ne.s32.totalorder %s51, %s54
      %p63 = scmp.eq.s32.totalorder %s32, 1
      %p64 = por %p62, %p63
      %p65 = scmp.ne.s32.totalorder %s54, %s55
      %p66 = scmp.eq.s32.totalorder %s32, 0
      %p67 = por %p65, %p66
      %p68 = scmp.ne.s32.totalorder %s54, %s55
      %p69 = scmp.eq.s32.totalorder %s33, 1
      %p70 = por %p68, %p69
      %p72 = scmp.ne.s32.totalorder %s55, %s71
      %p73 = scmp.eq.s32.totalorder %s33, 0
      %p74 = por %p72, %p73
      %s75 = ssub.s32 %s34, %s46
      %p76 = scmp.eq.s32.totalorder %s75, 0
      %s78 = sadd.s32 %s77, 1
      %s79 = scalar_select %p76, %s77, %s78
      %p82 = pneg %p76
      %p83 = scmp.eq.s32.totalorder %s27, 1
      %p84 = por %p82, %p83
      %p85 = scmp.ne.s32.totalorder %s77, %s80
      %p86 = scmp.eq.s32.totalorder %s27, 0
      %p87 = por %p85, %p86
      %p88 = scmp.ne.s32.totalorder %s77, %s80
      %p89 = scmp.eq.s32.totalorder %s32, 1
      %p90 = por %p88, %p89
      %p91 = scmp.ne.s32.totalorder %s80, %s81
      %p92 = scmp.eq.s32.totalorder %s32, 0
      %p93 = por %p91, %p92
      %p94 = scmp.ne.s32.totalorder %s80, %s81
      %p95 = scmp.eq.s32.totalorder %s33, 1
      %p96 = por %p94, %p95
      %p98 = scmp.ne.s32.totalorder %s81, %s97
      %p99 = scmp.eq.s32.totalorder %s33, 0
      %p100 = por %p98, %p99
      %s102 = sadd.s32 %s101, 1
      %p105 = scmp.eq.s32.totalorder %s27, 1
      %p106 = scmp.ne.s32.totalorder %s101, %s103
      %p107 = scmp.eq.s32.totalorder %s27, 0
      %p108 = por %p106, %p107
      %p109 = scmp.ne.s32.totalorder %s101, %s103
      %p110 = scmp.eq.s32.totalorder %s32, 1
      %p111 = por %p109, %p110
      %p112 = scmp.ne.s32.totalorder %s103, %s104
      %p113 = scmp.eq.s32.totalorder %s32, 0
      %p114 = por %p112, %p113
      %p115 = scmp.ne.s32.totalorder %s103, %s104
      %p116 = scmp.eq.s32.totalorder %s33, 1
      %p117 = por %p115, %p116
      %p119 = scmp.ne.s32.totalorder %s104, %s118
      %p120 = scmp.eq.s32.totalorder %s33, 0
      %p121 = por %p119, %p120
      %s123 = sadd.s32 %s122, 1
      %p126 = scmp.eq.s32.totalorder %s27, 1
      %p127 = scmp.ne.s32.totalorder %s122, %s124
      %p128 = scmp.eq.s32.totalorder %s27, 0
      %p129 = por %p127, %p128
      %p130 = scmp.ne.s32.totalorder %s122, %s124
      %p131 = scmp.eq.s32.totalorder %s32, 1
      %p132 = por %p130, %p131
      %p133 = scmp.ne.s32.totalorder %s124, %s125
      %p134 = scmp.eq.s32.totalorder %s32, 0
      %p135 = por %p133, %p134
      %p136 = scmp.ne.s32.totalorder %s124, %s125
      %p137 = scmp.eq.s32.totalorder %s33, 1
      %p138 = por %p136, %p137
      %p140 = scmp.ne.s32.totalorder %s125, %s139
      %p141 = scmp.eq.s32.totalorder %s33, 0
      %p142 = por %p140, %p141
      %s144 = sadd.s32 %s143, 1
      %p147 = scmp.eq.s32.totalorder %s27, 1
      %p148 = scmp.ne.s32.totalorder %s143, %s145
      %p149 = scmp.eq.s32.totalorder %s27, 0
      %p150 = por %p148, %p149
      %p151 = scmp.ne.s32.totalorder %s143, %s145
      %p152 = scmp.eq.s32.totalorder %s32, 1
      %p153 = por %p151, %p152
      %p154 = scmp.ne.s32.totalorder %s145, %s146
      %p155 = scmp.eq.s32.totalorder %s32, 0
      %p156 = por %p154, %p155
      %p157 = scmp.ne.s32.totalorder %s145, %s146
      %p158 = scmp.eq.s32.totalorder %s33, 1
      %p159 = por %p157, %p158
      %p161 = scmp.ne.s32.totalorder %s146, %s160
      %p162 = scmp.eq.s32.totalorder %s33, 0
      %p163 = por %p161, %p162
      %s165 = sadd.s32 %s164, 1
      %p168 = scmp.eq.s32.totalorder %s27, 1
      %p169 = scmp.ne.s32.totalorder %s164, %s166
      %p170 = scmp.eq.s32.totalorder %s27, 0
      %p171 = por %p169, %p170
      %p172 = scmp.ne.s32.totalorder %s164, %s166
      %p173 = scmp.eq.s32.totalorder %s32, 1
      %p174 = por %p172, %p173
      %p175 = scmp.ne.s32.totalorder %s166, %s167
      %p176 = scmp.eq.s32.totalorder %s32, 0
      %p177 = por %p175, %p176
      %p178 = scmp.ne.s32.totalorder %s166, %s167
      %p179 = scmp.eq.s32.totalorder %s33, 1
      %p180 = por %p178, %p179
      %p182 = scmp.ne.s32.totalorder %s167, %s181
      %p183 = scmp.eq.s32.totalorder %s33, 0
      %p184 = por %p182, %p183
      %s186 = sadd.s32 %s185, 1
      %p189 = scmp.eq.s32.totalorder %s27, 1
      %p190 = scmp.ne.s32.totalorder %s185, %s187
      %p191 = scmp.eq.s32.totalorder %s27, 0
      %p192 = por %p190, %p191
      %p193 = scmp.ne.s32.totalorder %s185, %s187
      %p194 = scmp.eq.s32.totalorder %s32, 1
      %p195 = por %p193, %p194
      %p196 = scmp.ne.s32.totalorder %s187, %s188
      %p197 = scmp.eq.s32.totalorder %s32, 0
      %p198 = por %p196, %p197
      %p199 = scmp.ne.s32.totalorder %s187, %s188
      %p200 = scmp.eq.s32.totalorder %s33, 1
      %p201 = por %p199, %p200
      %p203 = scmp.ne.s32.totalorder %s188, %s202
      %p204 = scmp.eq.s32.totalorder %s33, 0
      %p205 = por %p203, %p204
      %s207 = sadd.s32 %s206, 1
      %p210 = scmp.eq.s32.totalorder %s27, 1
      %p211 = scmp.ne.s32.totalorder %s206, %s208
      %p212 = scmp.eq.s32.totalorder %s27, 0
      %p213 = por %p211, %p212
      %p214 = scmp.ne.s32.totalorder %s206, %s208
      %p215 = scmp.eq.s32.totalorder %s32, 1
      %p216 = por %p214, %p215
      %p217 = scmp.ne.s32.totalorder %s208, %s209
      %p218 = scmp.eq.s32.totalorder %s32, 0
      %p219 = por %p217, %p218
      %p220 = scmp.ne.s32.totalorder %s208, %s209
      %p221 = scmp.eq.s32.totalorder %s33, 1
      %p222 = por %p220, %p221
      %p224 = scmp.ne.s32.totalorder %s209, %s223
      %p225 = scmp.eq.s32.totalorder %s33, 0
      %p226 = por %p224, %p225
      %s228 = sadd.s32 %s227, 1
      %p231 = scmp.eq.s32.totalorder %s27, 1
      %p232 = scmp.ne.s32.totalorder %s227, %s229
      %p233 = scmp.eq.s32.totalorder %s27, 0
      %p234 = por %p232, %p233
      %p235 = scmp.ne.s32.totalorder %s227, %s229
      %p236 = scmp.eq.s32.totalorder %s32, 1
      %p237 = por %p235, %p236
      %p238 = scmp.ne.s32.totalorder %s229, %s230
      %p239 = scmp.eq.s32.totalorder %s32, 0
      %p240 = por %p238, %p239
      %p241 = scmp.ne.s32.totalorder %s229, %s230
      %p242 = scmp.eq.s32.totalorder %s33, 1
      %p243 = por %p241, %p242
      %p245 = scmp.ne.s32.totalorder %s230, %s244
      %p246 = scmp.eq.s32.totalorder %s33, 0
      %p247 = por %p245, %p246
      %s249 = sadd.s32 %s248, 1
      %p252 = scmp.eq.s32.totalorder %s27, 1
      %p253 = scmp.ne.s32.totalorder %s248, %s250
      %p254 = scmp.eq.s32.totalorder %s27, 0
      %p255 = por %p253, %p254
      %p256 = scmp.ne.s32.totalorder %s248, %s250
      %p257 = scmp.eq.s32.totalorder %s32, 1
      %p258 = por %p256, %p257
      %p259 = scmp.ne.s32.totalorder %s250, %s251
      %p260 = scmp.eq.s32.totalorder %s32, 0
      %p261 = por %p259, %p260
      %p262 = scmp.ne.s32.totalorder %s250, %s251
      %p263 = scmp.eq.s32.totalorder %s33, 1
      %p264 = por %p262, %p263
      %p266 = scmp.ne.s32.totalorder %s251, %s265
      %p267 = scmp.eq.s32.totalorder %s33, 0
      %p268 = por %p266, %p267
      %s269 = ssub.s32 %s34, %s46
      %s270 = ssub.s32 %s35, %s42
      %s271 = sor.u32 %s269, %s270
      %p272 = scmp.eq.s32.totalorder %s271, 0
      %s274 = sadd.s32 %s273, 1
      %s275 = scalar_select %p272, %s273, %s274
      %p278 = pneg %p272
      %p279 = scmp.eq.s32.totalorder %s27, 1
      %p280 = por %p278, %p279
      %p281 = scmp.ne.s32.totalorder %s273, %s276
      %p282 = scmp.eq.s32.totalorder %s27, 0
      %p283 = por %p281, %p282
      %p284 = scmp.ne.s32.totalorder %s273, %s276
      %p285 = scmp.eq.s32.totalorder %s32, 1
      %p286 = por %p284, %p285
      %p287 = scmp.ne.s32.totalorder %s276, %s277
      %p288 = scmp.eq.s32.totalorder %s32, 0
      %p289 = por %p287, %p288
      %p290 = scmp.ne.s32.totalorder %s276, %s277
      %p291 = scmp.eq.s32.totalorder %s33, 1
      %p292 = por %p290, %p291
      %p294 = scmp.ne.s32.totalorder %s277, %s293
      %p295 = scmp.eq.s32.totalorder %s33, 0
      %p296 = por %p294, %p295
      %p297 = scmp.le.s32.totalorder 1, %s27
      %p298 = scmp.lt.s32.totalorder %s27, 3
      %p299 = pnand %p297, %p298
      %p300 = pneg %p299
      // Predicated region
      $region9: #{cross_attention_layer.1} parent=5 // pred_check
        _
      $region10: #{cross_attention_layer.1} parent=5 // pred_check_branch
        %302 = sbr.rel (%p299) target = $region12
      $region11: #{cross_attention_layer.1} parent=5 // pred_region
        %s303 = ssub.s32 %s27, 1
        // Predicated region
        $region13: #{cross_attention_layer.1} parent=11 // pred_check
          %p304 = pneg %p114
        $region14: #{cross_attention_layer.1} parent=11 // pred_check_branch
          %306 = sbr.rel (%p304) target = $region16
        $region15: #{cross_attention_layer.1} parent=11 // pred_region
          %s308 = ssub.s32 1024, 1024
          %309 = vsyncadd [#allocation6], %s308
          %s310 = sshll.u32 [#allocation7], 4
          %s311 = int_to_ptr.vmem [resolvable:$true] %s310
          %316 = dma.hbm_to_vmem [thread:$0]  %s2, 1024, %s311, [#allocation6], 64, 64, 4
        $region16: #{cross_attention_layer.1} parent=11 // pred_fallthru
          _
        // Predicated region
        $region17: #{cross_attention_layer.1} parent=11 // pred_check
          %p317 = pneg %p135
        $region18: #{cross_attention_layer.1} parent=11 // pred_check_branch
          %319 = sbr.rel (%p317) target = $region20
        $region19: #{cross_attention_layer.1} parent=11 // pred_region
          _
        $region20: #{cross_attention_layer.1} parent=11 // pred_fallthru
          _
        // Predicated region
        $region21: #{cross_attention_layer.1} parent=11 // pred_check
          %p320 = pneg %p156
        $region22: #{cross_attention_layer.1} parent=11 // pred_check_branch
          %322 = sbr.rel (%p320) target = $region24
        $region23: #{cross_attention_layer.1} parent=11 // pred_region
          %s324 = ssub.s32 2048, 2048
          %325 = vsyncadd [#allocation9], %s324
          %s326 = sshll.u32 [#allocation8], 4
          %s327 = int_to_ptr.vmem [resolvable:$true] %s326
          %332 = dma.hbm_to_vmem [thread:$0]  %s4, 2048, %s327, [#allocation9], 128, 128, 8
        $region24: #{cross_attention_layer.1} parent=11 // pred_fallthru
          _
        // Predicated region
        $region25: #{cross_attention_layer.1} parent=11 // pred_check
          %p333 = pneg %p177
        $region26: #{cross_attention_layer.1} parent=11 // pred_check_branch
          %335 = sbr.rel (%p333) target = $region28
        $region27: #{cross_attention_layer.1} parent=11 // pred_region
          _
        $region28: #{cross_attention_layer.1} parent=11 // pred_fallthru
          _
        // Predicated region
        $region29: #{cross_attention_layer.1} parent=11 // pred_check
          %p336 = pneg %p198
        $region30: #{cross_attention_layer.1} parent=11 // pred_check_branch
          %338 = sbr.rel (%p336) target = $region32
        $region31: #{cross_attention_layer.1} parent=11 // pred_region
          %s340 = ssub.s32 1024, 1024
          %341 = vsyncadd [#allocation9], %s340
          %s342 = sshll.u32 [#allocation10], 4
          %s343 = int_to_ptr.vmem [resolvable:$true] %s342
          %348 = dma.hbm_to_vmem [thread:$0]  %s6, 1024, %s343, [#allocation9], 64, 64, 4
        $region32: #{cross_attention_layer.1} parent=11 // pred_fallthru
          _
        // Predicated region
        $region33: #{cross_attention_layer.1} parent=11 // pred_check
          %p349 = pneg %p219
        $region34: #{cross_attention_layer.1} parent=11 // pred_check_branch
          %351 = sbr.rel (%p349) target = $region36
        $region35: #{cross_attention_layer.1} parent=11 // pred_region
          _
        $region36: #{cross_attention_layer.1} parent=11 // pred_fallthru
          _
        // Predicated region
        $region37: #{cross_attention_layer.1} parent=11 // pred_check
          %p352 = pneg %p240
        $region38: #{cross_attention_layer.1} parent=11 // pred_check_branch
          %354 = sbr.rel (%p352) target = $region40
        $region39: #{cross_attention_layer.1} parent=11 // pred_region
          _
        $region40: #{cross_attention_layer.1} parent=11 // pred_fallthru
          _
        // Predicated region
        $region41: #{cross_attention_layer.1} parent=11 // pred_check
          %p355 = pneg %p261
        $region42: #{cross_attention_layer.1} parent=11 // pred_check_branch
          %357 = sbr.rel (%p355) target = $region44
        $region43: #{cross_attention_layer.1} parent=11 // pred_region
          %s359 = ssub.s32 16, 16
          %360 = vsyncadd [#allocation12], %s359
          %s362 = sshll.u32 [#allocation11], 4
          %s363 = int_to_ptr.vmem [resolvable:$true] %s362
          %365 = dma.hbm_to_vmem [thread:$0]  %s9, 16, %s363, [#allocation12]
        $region44: #{cross_attention_layer.1} parent=11 // pred_fallthru
          _
      $region12: #{cross_attention_layer.1} parent=5 // pred_fallthru
        _
      %p366 = scmp.lt.s32.totalorder %s27, 2
      // Predicated region
      $region45: #{cross_attention_layer.1} parent=5 // pred_check
        %p367 = pneg %p366
      $region46: #{cross_attention_layer.1} parent=5 // pred_check_branch
        %369 = sbr.rel (%p367) target = $region48
      $region47: #{cross_attention_layer.1} parent=5 // pred_region
        // Predicated region
        $region49: #{cross_attention_layer.1} parent=47 // pred_check
          %p370 = pneg %p61
        $region50: #{cross_attention_layer.1} parent=47 // pred_check_branch
          %372 = sbr.rel (%p370) target = $region52
        $region51: #{cross_attention_layer.1} parent=47 // pred_region
          %s373 = sand.u32 %s51, 1
          %s374 = scalar_lea.sflag [#allocation3], %s373
          %s375 = sand.u32 %s51, 1
          %s376 = smul.addr %s375, 64
          %s377 = scalar_lea.vmem [#allocation2], %s376
          %s378 = smul.u32 8, %s35
          %s380 = ssub.s32 1024, 1024
          %381 = vsyncadd %s374, %s380
          %s382 = smul.addr %s34, 8
          %s383 = sadd.s32 %s378, %s382
          %s384 = smul.addr %s383, 128
          %s385 = scalar_lea.hbm %s0, %s384
          %s386 = sshll.u32 %s377, 4
          %s387 = int_to_ptr.vmem [resolvable:$true] %s386
          %392 = dma.hbm_to_vmem [thread:$0]  %s385, 1024, %s387, %s374, 128, 128, 8
        $region52: #{cross_attention_layer.1} parent=47 // pred_fallthru
          _
        // Predicated region
        $region53: #{cross_attention_layer.1} parent=47 // pred_check
          %p393 = pneg %p87
        $region54: #{cross_attention_layer.1} parent=47 // pred_check_branch
          %395 = sbr.rel (%p393) target = $region56
        $region55: #{cross_attention_layer.1} parent=47 // pred_region
          %s396 = sand.u32 %s27, 1
          %s397 = scalar_lea.sflag [#allocation6], %s396
          %s398 = sand.u32 %s77, 1
          %s399 = smul.addr %s398, 128
          %s400 = scalar_lea.vmem [#allocation5], %s399
          %s402 = ssub.s32 2048, 2048
          %403 = vsyncadd %s397, %s402
          %s404 = smul.addr %s34, 16
          %s405 = smul.addr %s404, 128
          %s406 = scalar_lea.hbm %s1, %s405
          %s407 = sshll.u32 %s400, 4
          %s408 = int_to_ptr.vmem [resolvable:$true] %s407
          %413 = dma.hbm_to_vmem [thread:$0]  %s406, 2048, %s408, %s397, 128, 128, 8
        $region56: #{cross_attention_layer.1} parent=47 // pred_fallthru
          _
      $region48: #{cross_attention_layer.1} parent=5 // pred_fallthru
        _
      %p414 = scmp.le.s32.totalorder 1, %s27
      %p415 = scmp.lt.s32.totalorder %s27, 3
      %p416 = pnand %p414, %p415
      %p417 = pneg %p416
      // Predicated region
      $region57: #{cross_attention_layer.1} parent=5 // pred_check
        _
      $region58: #{cross_attention_layer.1} parent=5 // pred_check_branch
        %419 = sbr.rel (%p416) target = $region60
      $region59: #{cross_attention_layer.1} parent=5 // pred_region
        %s420 = ssub.s32 %s27, 1
        %s421 = sand.u32 %s54, 1
        %s422 = scalar_lea.sflag [#allocation3], %s421
        %s423 = sand.u32 %s54, 1
        %s424 = smul.addr %s423, 64
        %s425 = scalar_lea.vmem [#allocation2], %s424
        // Predicated region
        $region61: #{cross_attention_layer.1} parent=59 // pred_check
          %p426 = pneg %p67
        $region62: #{cross_attention_layer.1} parent=59 // pred_check_branch
          %428 = sbr.rel (%p426) target = $region64
        $region63: #{cross_attention_layer.1} parent=59 // pred_region
          %429 = dma.done %s422, 1024
        $region64: #{cross_attention_layer.1} parent=59 // pred_fallthru
          _
        %s430 = sand.u32 %s32, 1
        %s431 = scalar_lea.sflag [#allocation6], %s430
        %s432 = sand.u32 %s80, 1
        %s433 = smul.addr %s432, 128
        %s434 = scalar_lea.vmem [#allocation5], %s433
        // Predicated region
        $region65: #{cross_attention_layer.1} parent=59 // pred_check
          %p435 = pneg %p93
        $region66: #{cross_attention_layer.1} parent=59 // pred_check_branch
          %437 = sbr.rel (%p435) target = $region68
        $region67: #{cross_attention_layer.1} parent=59 // pred_region
          %438 = dma.done %s431, 2048
        $region68: #{cross_attention_layer.1} parent=59 // pred_fallthru
          _
        // Predicated region
        $region69: #{cross_attention_layer.1} parent=59 // pred_check
          %p439 = pneg %p114
        $region70: #{cross_attention_layer.1} parent=59 // pred_check_branch
          %441 = sbr.rel (%p439) target = $region72
        $region71: #{cross_attention_layer.1} parent=59 // pred_region
          %442 = dma.done [#allocation6], 1024
        $region72: #{cross_attention_layer.1} parent=59 // pred_fallthru
          _
        // Predicated region
        $region73: #{cross_attention_layer.1} parent=59 // pred_check
          %p443 = pneg %p156
        $region74: #{cross_attention_layer.1} parent=59 // pred_check_branch
          %445 = sbr.rel (%p443) target = $region76
        $region75: #{cross_attention_layer.1} parent=59 // pred_region
          %446 = dma.done [#allocation9], 2048
        $region76: #{cross_attention_layer.1} parent=59 // pred_fallthru
          _
        // Predicated region
        $region77: #{cross_attention_layer.1} parent=59 // pred_check
          %p447 = pneg %p198
        $region78: #{cross_attention_layer.1} parent=59 // pred_check_branch
          %449 = sbr.rel (%p447) target = $region80
        $region79: #{cross_attention_layer.1} parent=59 // pred_region
          %450 = dma.done [#allocation9], 1024
        $region80: #{cross_attention_layer.1} parent=59 // pred_fallthru
          _
        // Predicated region
        $region81: #{cross_attention_layer.1} parent=59 // pred_check
          %p451 = pneg %p261
        $region82: #{cross_attention_layer.1} parent=59 // pred_check_branch
          %453 = sbr.rel (%p451) target = $region84
        $region83: #{cross_attention_layer.1} parent=59 // pred_region
          %454 = dma.done [#allocation12], 16
        $region84: #{cross_attention_layer.1} parent=59 // pred_fallthru
          _
        %s455 = sand.u32 %s54, 1
        %s456 = scalar_lea.sflag [#allocation3], %s455
        %s457 = sand.u32 %s54, 1
        %s458 = smul.addr %s457, 64
        %s459 = scalar_lea.vmem [#allocation2], %s458
        %p460 = pneg %p67
        %p461 = pneg %p64
        %s462 = sand.u32 %s32, 1
        %s463 = scalar_lea.sflag [#allocation6], %s462
        %s464 = sand.u32 %s80, 1
        %s465 = smul.addr %s464, 128
        %s466 = scalar_lea.vmem [#allocation5], %s465
        %p467 = pneg %p93
        %p468 = pneg %p90
        %p469 = pneg %p114
        %p470 = pneg %p111
        %p471 = pneg %p135
        %p472 = pneg %p132
        %p473 = pneg %p156
        %p474 = pneg %p153
        %p475 = pneg %p177
        %p476 = pneg %p174
        %p477 = pneg %p198
        %p478 = pneg %p195
        %p479 = pneg %p219
        %p480 = pneg %p216
        %p481 = pneg %p240
        %p482 = pneg %p237
        %p483 = pneg %p261
        %p484 = pneg %p258
        %p485 = pneg %p289
        %p486 = pneg %p286
        %s487 = sand.u32 %s276, 1
        %s488 = scalar_lea.sflag [#allocation4], %s487
        %s489 = sand.u32 %s276, 1
        %s490 = smul.addr %s489, 64
        %s491 = scalar_lea.vmem [#allocation13], %s490
        %s492 = smul.u32 8, %s37
        %s493 = smul.u32 8, %s37
        %v495 = vld [vmem:[%s425] sm:$0xff]
        %v496 = vld [vmem:[%s425 + $0x8] sm:$0xff]
        %v497 = vld [vmem:[%s425 + $0x10] sm:$0xff]
        %v498 = vld [vmem:[%s425 + $0x18] sm:$0xff]
        %v499 = vld [vmem:[%s425 + $0x20] sm:$0xff]
        %v500 = vld [vmem:[%s425 + $0x28] sm:$0xff]
        %v501 = vld [vmem:[%s425 + $0x30] sm:$0xff]
        %v502 = vld [vmem:[%s425 + $0x38] sm:$0xff]
        %v503 = vld [vmem:[%s434] sm:$0xff]
        %v504 = vld [vmem:[%s434 + $0x8] sm:$0xff]
        %v505 = vld [vmem:[%s434 + $0x10] sm:$0xff]
        %v506 = vld [vmem:[%s434 + $0x18] sm:$0xff]
        %v507 = vld [vmem:[%s434 + $0x20] sm:$0xff]
        %v508 = vld [vmem:[%s434 + $0x28] sm:$0xff]
        %v509 = vld [vmem:[%s434 + $0x30] sm:$0xff]
        %v510 = vld [vmem:[%s434 + $0x38] sm:$0xff]
        %v511 = vld [vmem:[%s434 + $0x40] sm:$0xff]
        %v512 = vld [vmem:[%s434 + $0x48] sm:$0xff]
        %v513 = vld [vmem:[%s434 + $0x50] sm:$0xff]
        %v514 = vld [vmem:[%s434 + $0x58] sm:$0xff]
        %v515 = vld [vmem:[%s434 + $0x60] sm:$0xff]
        %v516 = vld [vmem:[%s434 + $0x68] sm:$0xff]
        %v517 = vld [vmem:[%s434 + $0x70] sm:$0xff]
        %v518 = vld [vmem:[%s434 + $0x78] sm:$0xff]
        %v519 = vpack.c.bf16 %v496, %v495
        %v520 = vpack.c.bf16 %v498, %v497
        %v521 = vpack.c.bf16 %v500, %v499
        %v522 = vpack.c.bf16 %v502, %v501
        %v523 = vpack.c.bf16 %v504, %v503
        %v524 = vpack.c.bf16 %v506, %v505
        %v525 = vpack.c.bf16 %v508, %v507
        %v526 = vpack.c.bf16 %v510, %v509
        %v527 = vpack.c.bf16 %v512, %v511
        %v528 = vpack.c.bf16 %v514, %v513
        %v529 = vpack.c.bf16 %v516, %v515
        %v530 = vpack.c.bf16 %v518, %v517
        %v531 = vld [vmem:[#allocation7] sm:$0xf]
        %v532 = vld [vmem:[#allocation7 + $0x4] sm:$0xf]
        %v533 = vld [vmem:[#allocation7 + $0x8] sm:$0xf]
        %v534 = vld [vmem:[#allocation7 + $0xc] sm:$0xf]
        %v535 = vld [vmem:[#allocation7 + $0x10] sm:$0xf]
        %v536 = vld [vmem:[#allocation7 + $0x14] sm:$0xf]
        %v537 = vld [vmem:[#allocation7 + $0x18] sm:$0xf]
        %v538 = vld [vmem:[#allocation7 + $0x1c] sm:$0xf]
        %v539 = vld [vmem:[#allocation7 + $0x20] sm:$0xf]
        %v540 = vld [vmem:[#allocation7 + $0x24] sm:$0xf]
        %v541 = vld [vmem:[#allocation7 + $0x28] sm:$0xf]
        %v542 = vld [vmem:[#allocation7 + $0x2c] sm:$0xf]
        %v543 = vld [vmem:[#allocation7 + $0x30] sm:$0xf]
        %v544 = vld [vmem:[#allocation7 + $0x34] sm:$0xf]
        %v545 = vld [vmem:[#allocation7 + $0x38] sm:$0xf]
        %v546 = vld [vmem:[#allocation7 + $0x3c] sm:$0xf]
        %v547 = vld [vmem:[%s3] sm:$0x1]
        %v549 = vlaneseq
        %v550 = vshrl.u32 %v549, 7
        %v551 = vsub.s32 0, %v550
        %v552 = vrot.slane %v547, %v551
        %v570 = vunpack.c.l.b16 %v531
        %v571 = vunpack.c.l.b16 %v532
        %v572 = vunpack.c.l.b16 %v533
        %v573 = vunpack.c.l.b16 %v534
        %v574 = vunpack.c.l.b16 %v535
        %v575 = vunpack.c.l.b16 %v536
        %v576 = vunpack.c.l.b16 %v537
        %v577 = vunpack.c.l.b16 %v538
        %v578 = vunpack.c.l.b16 %v539
        %v579 = vunpack.c.l.b16 %v540
        %v580 = vunpack.c.l.b16 %v541
        %v581 = vunpack.c.l.b16 %v542
        %v582 = vunpack.c.l.b16 %v543
        %v583 = vunpack.c.l.b16 %v544
        %v584 = vunpack.c.l.b16 %v545
        %v585 = vunpack.c.l.b16 %v546
        %v586 = vpack.c.b16 %v571, %v570
        %v587 = vpack.c.b16 %v573, %v572
        %v588 = vpack.c.b16 %v575, %v574
        %v589 = vpack.c.b16 %v577, %v576
        %v590 = vpack.c.b16 %v579, %v578
        %v591 = vpack.c.b16 %v581, %v580
        %v592 = vpack.c.b16 %v583, %v582
        %v593 = vpack.c.b16 %v585, %v584
        %602 = vmatprep.subr.bf16.mxu0 0
        %603 = vmatpush1.bf16.msra.mxu0 %v593
        %604 = vmatprep.subr.bf16.mxu0 0
        %605 = vmatpush1.bf16.msra.mxu0 %v592
        %606 = vmatprep.subr.bf16.mxu0 0
        %607 = vmatpush1.bf16.msra.mxu0 %v591
        %608 = vmatprep.subr.bf16.mxu0 0
        %609 = vmatpush1.bf16.msra.mxu0 %v590
        %610 = vmatprep.subr.bf16.mxu0 0
        %611 = vmatpush1.bf16.msra.mxu0 %v589
        %612 = vmatprep.subr.bf16.mxu0 0
        %613 = vmatpush1.bf16.msra.mxu0 %v588
        %614 = vmatprep.subr.bf16.mxu0 0
        %615 = vmatpush1.bf16.msra.mxu0 %v587
        %616 = vmatprep.subr.bf16.mxu0 0
        %617 = vmatpush1.bf16.msra.mxu0 %v586
        %618 = vmatprep.subr.bf16.mxu0 0
        %619 = vmatpush2.bf16.msra.mxu0 0
        %620 = vmatprep.subr.bf16.mxu0 0
        %621 = vmatpush2.bf16.msra.mxu0 0
        %622 = vmatprep.subr.bf16.mxu0 0
        %623 = vmatpush2.bf16.msra.mxu0 0
        %624 = vmatprep.subr.bf16.mxu0 0
        %625 = vmatpush2.bf16.msra.mxu0 0
        %626 = vmatprep.subr.bf16.mxu0 0
        %627 = vmatpush2.bf16.msra.mxu0 0
        %628 = vmatprep.subr.bf16.mxu0 0
        %629 = vmatpush2.bf16.msra.mxu0 0
        %630 = vmatprep.subr.bf16.mxu0 0
        %631 = vmatpush2.bf16.msra.mxu0 0
        %632 = vmatprep.subr.bf16.mxu0 0
        %633 = vmatpush2.bf16.msra.mxu0 0
        %634 = vmatprep.mubr.bf16.mxu0 0
        %635 = vmatmul.mubr.bf16.gmra.mxu0 %v519
        %v636 = vpop.f32.mrf.mxu0
        %v637 = vadd.f32 %v552, %v636
        %v638 = vpop.f32.mrf.mxu0
        %v639 = vpop.f32.mrf.mxu0
        %v640 = vadd.f32 %v552, %v639
        %v641 = vpop.f32.mrf.mxu0
        %642 = vmatprep.mubr.bf16.mxu0 0
        %643 = vmatmul.mubr.bf16.gmra.mxu0 %v520
        %v644 = vpop.f32.mrf.mxu0
        %v645 = vadd.f32 %v552, %v644
        %v646 = vpop.f32.mrf.mxu0
        %v647 = vpop.f32.mrf.mxu0
        %v648 = vadd.f32 %v552, %v647
        %v649 = vpop.f32.mrf.mxu0
        %650 = vmatprep.mubr.bf16.mxu0 0
        %651 = vmatmul.mubr.bf16.gmra.mxu0 %v521
        %v652 = vpop.f32.mrf.mxu0
        %v653 = vadd.f32 %v552, %v652
        %v654 = vpop.f32.mrf.mxu0
        %v655 = vpop.f32.mrf.mxu0
        %v656 = vadd.f32 %v552, %v655
        %v657 = vpop.f32.mrf.mxu0
        %658 = vmatprep.mubr.bf16.mxu0 0
        %659 = vmatmul.mubr.bf16.gmra.mxu0 %v522
        %v660 = vpop.f32.mrf.mxu0
        %v661 = vadd.f32 %v552, %v660
        %v662 = vpop.f32.mrf.mxu0
        %v663 = vpop.f32.mrf.mxu0
        %v664 = vadd.f32 %v552, %v663
        %v665 = vpop.f32.mrf.mxu0
        %666 = vdwg.mxu0
        %v667 = vld [vmem:[#allocation8] sm:$0xff]
        %v668 = vld [vmem:[#allocation8 + $0x8] sm:$0xff]
        %v669 = vld [vmem:[#allocation8 + $0x10] sm:$0xff]
        %v670 = vld [vmem:[#allocation8 + $0x18] sm:$0xff]
        %v671 = vld [vmem:[#allocation8 + $0x20] sm:$0xff]
        %v672 = vld [vmem:[#allocation8 + $0x28] sm:$0xff]
        %v673 = vld [vmem:[#allocation8 + $0x30] sm:$0xff]
        %v674 = vld [vmem:[#allocation8 + $0x38] sm:$0xff]
        %v675 = vld [vmem:[#allocation8 + $0x40] sm:$0xff]
        %v676 = vld [vmem:[#allocation8 + $0x48] sm:$0xff]
        %v677 = vld [vmem:[#allocation8 + $0x50] sm:$0xff]
        %v678 = vld [vmem:[#allocation8 + $0x58] sm:$0xff]
        %v679 = vld [vmem:[#allocation8 + $0x60] sm:$0xff]
        %v680 = vld [vmem:[#allocation8 + $0x68] sm:$0xff]
        %v681 = vld [vmem:[#allocation8 + $0x70] sm:$0xff]
        %v682 = vld [vmem:[#allocation8 + $0x78] sm:$0xff]
        %v683 = vld [vmem:[%s5] sm:$0x3]
        %v685 = vlaneseq
        %v686 = vshrl.u32 %v685, 7
        %v687 = vsub.s32 0, %v686
        %v688 = vrot.slane %v683, %v687
        %v689 = vlaneseq
        %v690 = vshrl.u32 %v689, 7
        %v691 = vsub.s32 1, %v690
        %v692 = vrot.slane %v683, %v691
        %v711 = vunpack.c.l.b16 %v667
        %v712 = vunpack.c.h.b16 %v667
        %v713 = vunpack.c.l.b16 %v668
        %v714 = vunpack.c.h.b16 %v668
        %v715 = vunpack.c.l.b16 %v669
        %v716 = vunpack.c.h.b16 %v669
        %v717 = vunpack.c.l.b16 %v670
        %v718 = vunpack.c.h.b16 %v670
        %v719 = vunpack.c.l.b16 %v671
        %v720 = vunpack.c.h.b16 %v671
        %v721 = vunpack.c.l.b16 %v672
        %v722 = vunpack.c.h.b16 %v672
        %v723 = vunpack.c.l.b16 %v673
        %v724 = vunpack.c.h.b16 %v673
        %v725 = vunpack.c.l.b16 %v674
        %v726 = vunpack.c.h.b16 %v674
        %v727 = vunpack.c.l.b16 %v675
        %v728 = vunpack.c.h.b16 %v675
        %v729 = vunpack.c.l.b16 %v676
        %v730 = vunpack.c.h.b16 %v676
        %v731 = vunpack.c.l.b16 %v677
        %v732 = vunpack.c.h.b16 %v677
        %v733 = vunpack.c.l.b16 %v678
        %v734 = vunpack.c.h.b16 %v678
        %v735 = vunpack.c.l.b16 %v679
        %v736 = vunpack.c.h.b16 %v679
        %v737 = vunpack.c.l.b16 %v680
        %v738 = vunpack.c.h.b16 %v680
        %v739 = vunpack.c.l.b16 %v681
        %v740 = vunpack.c.h.b16 %v681
        %v741 = vunpack.c.l.b16 %v682
        %v742 = vunpack.c.h.b16 %v682
        %v743 = vpack.c.b16 %v713, %v711
        %v744 = vpack.c.b16 %v714, %v712
        %v745 = vpack.c.b16 %v717, %v715
        %v746 = vpack.c.b16 %v718, %v716
        %v747 = vpack.c.b16 %v721, %v719
        %v748 = vpack.c.b16 %v722, %v720
        %v749 = vpack.c.b16 %v725, %v723
        %v750 = vpack.c.b16 %v726, %v724
        %v751 = vpack.c.b16 %v729, %v727
        %v752 = vpack.c.b16 %v730, %v728
        %v753 = vpack.c.b16 %v733, %v731
        %v754 = vpack.c.b16 %v734, %v732
        %v755 = vpack.c.b16 %v737, %v735
        %v756 = vpack.c.b16 %v738, %v736
        %v757 = vpack.c.b16 %v741, %v739
        %v758 = vpack.c.b16 %v742, %v740
        %775 = vmatprep.subr.bf16.mxu0 %v758
        %776 = vmatpush1.bf16.msra.mxu0 %v757
        %777 = vmatprep.subr.bf16.mxu0 %v756
        %778 = vmatpush1.bf16.msra.mxu0 %v755
        %779 = vmatprep.subr.bf16.mxu0 %v754
        %780 = vmatpush1.bf16.msra.mxu0 %v753
        %781 = vmatprep.subr.bf16.mxu0 %v752
        %782 = vmatpush1.bf16.msra.mxu0 %v751
        %783 = vmatprep.subr.bf16.mxu0 %v750
        %784 = vmatpush1.bf16.msra.mxu0 %v749
        %785 = vmatprep.subr.bf16.mxu0 %v748
        %786 = vmatpush1.bf16.msra.mxu0 %v747
        %787 = vmatprep.subr.bf16.mxu0 %v746
        %788 = vmatpush1.bf16.msra.mxu0 %v745
        %789 = vmatprep.subr.bf16.mxu0 %v744
        %790 = vmatpush1.bf16.msra.mxu0 %v743
        %791 = vmatprep.subr.bf16.mxu0 0
        %792 = vmatpush2.bf16.msra.mxu0 0
        %793 = vmatprep.subr.bf16.mxu0 0
        %794 = vmatpush2.bf16.msra.mxu0 0
        %795 = vmatprep.subr.bf16.mxu0 0
        %796 = vmatpush2.bf16.msra.mxu0 0
        %797 = vmatprep.subr.bf16.mxu0 0
        %798 = vmatpush2.bf16.msra.mxu0 0
        %799 = vmatprep.subr.bf16.mxu0 0
        %800 = vmatpush2.bf16.msra.mxu0 0
        %801 = vmatprep.subr.bf16.mxu0 0
        %802 = vmatpush2.bf16.msra.mxu0 0
        %803 = vmatprep.subr.bf16.mxu0 0
        %804 = vmatpush2.bf16.msra.mxu0 0
        %805 = vmatprep.subr.bf16.mxu0 0
        %806 = vmatpush2.bf16.msra.mxu0 0
        %807 = vmatprep.mubr.bf16.mxu0 0
        %808 = vmatmul.mubr.bf16.gmra.mxu0 %v523
        %v809 = vpop.f32.mrf.mxu0
        %v810 = vadd.f32 %v688, %v809
        %v811 = vpop.f32.mrf.mxu0
        %v812 = vadd.f32 %v692, %v811
        %v813 = vpop.f32.mrf.mxu0
        %v814 = vadd.f32 %v688, %v813
        %v815 = vpop.f32.mrf.mxu0
        %v816 = vadd.f32 %v692, %v815
        %817 = vmatprep.mubr.bf16.mxu0 0
        %818 = vmatmul.mubr.bf16.gmra.mxu0 %v524
        %v819 = vpop.f32.mrf.mxu0
        %v820 = vadd.f32 %v688, %v819
        %v821 = vpop.f32.mrf.mxu0
        %v822 = vadd.f32 %v692, %v821
        %v823 = vpop.f32.mrf.mxu0
        %v824 = vadd.f32 %v688, %v823
        %v825 = vpop.f32.mrf.mxu0
        %v826 = vadd.f32 %v692, %v825
        %827 = vmatprep.mubr.bf16.mxu0 0
        %828 = vmatmul.mubr.bf16.gmra.mxu0 %v525
        %v829 = vpop.f32.mrf.mxu0
        %v830 = vadd.f32 %v688, %v829
        %v831 = vpop.f32.mrf.mxu0
        %v832 = vadd.f32 %v692, %v831
        %v833 = vpop.f32.mrf.mxu0
        %v834 = vadd.f32 %v688, %v833
        %v835 = vpop.f32.mrf.mxu0
        %v836 = vadd.f32 %v692, %v835
        %837 = vmatprep.mubr.bf16.mxu0 0
        %838 = vmatmul.mubr.bf16.gmra.mxu0 %v526
        %v839 = vpop.f32.mrf.mxu0
        %v840 = vadd.f32 %v688, %v839
        %v841 = vpop.f32.mrf.mxu0
        %v842 = vadd.f32 %v692, %v841
        %v843 = vpop.f32.mrf.mxu0
        %v844 = vadd.f32 %v688, %v843
        %v845 = vpop.f32.mrf.mxu0
        %v846 = vadd.f32 %v692, %v845
        %847 = vmatprep.mubr.bf16.mxu0 0
        %848 = vmatmul.mubr.bf16.gmra.mxu0 %v527
        %v849 = vpop.f32.mrf.mxu0
        %v850 = vadd.f32 %v688, %v849
        %v851 = vpop.f32.mrf.mxu0
        %v852 = vadd.f32 %v692, %v851
        %v853 = vpop.f32.mrf.mxu0
        %v854 = vadd.f32 %v688, %v853
        %v855 = vpop.f32.mrf.mxu0
        %v856 = vadd.f32 %v692, %v855
        %857 = vmatprep.mubr.bf16.mxu0 0
        %858 = vmatmul.mubr.bf16.gmra.mxu0 %v528
        %v859 = vpop.f32.mrf.mxu0
        %v860 = vadd.f32 %v688, %v859
        %v861 = vpop.f32.mrf.mxu0
        %v862 = vadd.f32 %v692, %v861
        %v863 = vpop.f32.mrf.mxu0
        %v864 = vadd.f32 %v688, %v863
        %v865 = vpop.f32.mrf.mxu0
        %v866 = vadd.f32 %v692, %v865
        %867 = vmatprep.mubr.bf16.mxu0 0
        %868 = vmatmul.mubr.bf16.gmra.mxu0 %v529
        %v869 = vpop.f32.mrf.mxu0
        %v870 = vadd.f32 %v688, %v869
        %v871 = vpop.f32.mrf.mxu0
        %v872 = vadd.f32 %v692, %v871
        %v873 = vpop.f32.mrf.mxu0
        %v874 = vadd.f32 %v688, %v873
        %v875 = vpop.f32.mrf.mxu0
        %v876 = vadd.f32 %v692, %v875
        %877 = vmatprep.mubr.bf16.mxu0 0
        %878 = vmatmul.mubr.bf16.gmra.mxu0 %v530
        %v879 = vpop.f32.mrf.mxu0
        %v880 = vadd.f32 %v688, %v879
        %v881 = vpop.f32.mrf.mxu0
        %v882 = vadd.f32 %v692, %v881
        %v883 = vpop.f32.mrf.mxu0
        %v884 = vadd.f32 %v688, %v883
        %v885 = vpop.f32.mrf.mxu0
        %v886 = vadd.f32 %v692, %v885
        %887 = vdwg.mxu0
        %v888 = vpack.c.bf16 %v640, %v637
        %v889 = vpack.c.bf16 %v648, %v645
        %v890 = vpack.c.bf16 %v656, %v653
        %v891 = vpack.c.bf16 %v664, %v661
        %v892 = vpack.c.bf16 %v814, %v810
        %v893 = vpack.c.bf16 %v816, %v812
        %v894 = vpack.c.bf16 %v824, %v820
        %v895 = vpack.c.bf16 %v826, %v822
        %v896 = vpack.c.bf16 %v834, %v830
        %v897 = vpack.c.bf16 %v836, %v832
        %v898 = vpack.c.bf16 %v844, %v840
        %v899 = vpack.c.bf16 %v846, %v842
        %v900 = vpack.c.bf16 %v854, %v850
        %v901 = vpack.c.bf16 %v856, %v852
        %v902 = vpack.c.bf16 %v864, %v860
        %v903 = vpack.c.bf16 %v866, %v862
        %v904 = vpack.c.bf16 %v874, %v870
        %v905 = vpack.c.bf16 %v876, %v872
        %v906 = vpack.c.bf16 %v884, %v880
        %v907 = vpack.c.bf16 %v886, %v882
        %912 = vrot.lane.b32.xlu0 %v888, 112
        %v913 = vpop.permute.xlu0 %912
        %914 = vrot.lane.b32.xlu0 %v889, 112
        %v915 = vpop.permute.xlu0 %914
        %916 = vrot.lane.b32.xlu0 %v890, 112
        %v917 = vpop.permute.xlu0 %916
        %918 = vrot.lane.b32.xlu0 %v891, 112
        %v919 = vpop.permute.xlu0 %918
        %920 = vrot.lane.b32.xlu0 %v888, 96
        %v921 = vpop.permute.xlu0 %920
        %922 = vrot.lane.b32.xlu0 %v889, 96
        %v923 = vpop.permute.xlu0 %922
        %924 = vrot.lane.b32.xlu0 %v890, 96
        %v925 = vpop.permute.xlu0 %924
        %926 = vrot.lane.b32.xlu0 %v891, 96
        %v927 = vpop.permute.xlu0 %926
        %928 = vrot.lane.b32.xlu0 %v888, 80
        %v929 = vpop.permute.xlu0 %928
        %930 = vrot.lane.b32.xlu0 %v889, 80
        %v931 = vpop.permute.xlu0 %930
        %932 = vrot.lane.b32.xlu0 %v890, 80
        %v933 = vpop.permute.xlu0 %932
        %934 = vrot.lane.b32.xlu0 %v891, 80
        %v935 = vpop.permute.xlu0 %934
        %936 = vrot.lane.b32.xlu0 %v888, 64
        %v937 = vpop.permute.xlu0 %936
        %938 = vrot.lane.b32.xlu0 %v889, 64
        %v939 = vpop.permute.xlu0 %938
        %940 = vrot.lane.b32.xlu0 %v890, 64
        %v941 = vpop.permute.xlu0 %940
        %942 = vrot.lane.b32.xlu0 %v891, 64
        %v943 = vpop.permute.xlu0 %942
        %944 = vrot.lane.b32.xlu0 %v888, 48
        %v945 = vpop.permute.xlu0 %944
        %946 = vrot.lane.b32.xlu0 %v889, 48
        %v947 = vpop.permute.xlu0 %946
        %948 = vrot.lane.b32.xlu0 %v890, 48
        %v949 = vpop.permute.xlu0 %948
        %950 = vrot.lane.b32.xlu0 %v891, 48
        %v951 = vpop.permute.xlu0 %950
        %952 = vrot.lane.b32.xlu0 %v888, 32
        %v953 = vpop.permute.xlu0 %952
        %954 = vrot.lane.b32.xlu0 %v889, 32
        %v955 = vpop.permute.xlu0 %954
        %956 = vrot.lane.b32.xlu0 %v890, 32
        %v957 = vpop.permute.xlu0 %956
        %958 = vrot.lane.b32.xlu0 %v891, 32
        %v959 = vpop.permute.xlu0 %958
        %960 = vrot.lane.b32.xlu0 %v888, 16
        %v961 = vpop.permute.xlu0 %960
        %962 = vrot.lane.b32.xlu0 %v889, 16
        %v963 = vpop.permute.xlu0 %962
        %964 = vrot.lane.b32.xlu0 %v890, 16
        %v965 = vpop.permute.xlu0 %964
        %966 = vrot.lane.b32.xlu0 %v891, 16
        %v967 = vpop.permute.xlu0 %966
        %976 = vrot.lane.b32.xlu0 %v892, 112
        %v977 = vpop.permute.xlu0 %976
        %978 = vrot.lane.b32.xlu0 %v894, 112
        %v979 = vpop.permute.xlu0 %978
        %980 = vrot.lane.b32.xlu0 %v896, 112
        %v981 = vpop.permute.xlu0 %980
        %982 = vrot.lane.b32.xlu0 %v898, 112
        %v983 = vpop.permute.xlu0 %982
        %984 = vrot.lane.b32.xlu0 %v900, 112
        %v985 = vpop.permute.xlu0 %984
        %986 = vrot.lane.b32.xlu0 %v902, 112
        %v987 = vpop.permute.xlu0 %986
        %988 = vrot.lane.b32.xlu0 %v904, 112
        %v989 = vpop.permute.xlu0 %988
        %990 = vrot.lane.b32.xlu0 %v906, 112
        %v991 = vpop.permute.xlu0 %990
        %992 = vrot.lane.b32.xlu0 %v892, 96
        %v993 = vpop.permute.xlu0 %992
        %994 = vrot.lane.b32.xlu0 %v894, 96
        %v995 = vpop.permute.xlu0 %994
        %996 = vrot.lane.b32.xlu0 %v896, 96
        %v997 = vpop.permute.xlu0 %996
        %998 = vrot.lane.b32.xlu0 %v898, 96
        %v999 = vpop.permute.xlu0 %998
        %1000 = vrot.lane.b32.xlu0 %v900, 96
        %v1001 = vpop.permute.xlu0 %1000
        %1002 = vrot.lane.b32.xlu0 %v902, 96
        %v1003 = vpop.permute.xlu0 %1002
        %1004 = vrot.lane.b32.xlu0 %v904, 96
        %v1005 = vpop.permute.xlu0 %1004
        %1006 = vrot.lane.b32.xlu0 %v906, 96
        %v1007 = vpop.permute.xlu0 %1006
        %1008 = vrot.lane.b32.xlu0 %v892, 80
        %v1009 = vpop.permute.xlu0 %1008
        %1010 = vrot.lane.b32.xlu0 %v894, 80
        %v1011 = vpop.permute.xlu0 %1010
        %1012 = vrot.lane.b32.xlu0 %v896, 80
        %v1013 = vpop.permute.xlu0 %1012
        %1014 = vrot.lane.b32.xlu0 %v898, 80
        %v1015 = vpop.permute.xlu0 %1014
        %1016 = vrot.lane.b32.xlu0 %v900, 80
        %v1017 = vpop.permute.xlu0 %1016
        %1018 = vrot.lane.b32.xlu0 %v902, 80
        %v1019 = vpop.permute.xlu0 %1018
        %1020 = vrot.lane.b32.xlu0 %v904, 80
        %v1021 = vpop.permute.xlu0 %1020
        %1022 = vrot.lane.b32.xlu0 %v906, 80
        %v1023 = vpop.permute.xlu0 %1022
        %1024 = vrot.lane.b32.xlu0 %v892, 64
        %v1025 = vpop.permute.xlu0 %1024
        %1026 = vrot.lane.b32.xlu0 %v894, 64
        %v1027 = vpop.permute.xlu0 %1026
        %1028 = vrot.lane.b32.xlu0 %v896, 64
        %v1029 = vpop.permute.xlu0 %1028
        %1030 = vrot.lane.b32.xlu0 %v898, 64
        %v1031 = vpop.permute.xlu0 %1030
        %1032 = vrot.lane.b32.xlu0 %v900, 64
        %v1033 = vpop.permute.xlu0 %1032
        %1034 = vrot.lane.b32.xlu0 %v902, 64
        %v1035 = vpop.permute.xlu0 %1034
        %1036 = vrot.lane.b32.xlu0 %v904, 64
        %v1037 = vpop.permute.xlu0 %1036
        %1038 = vrot.lane.b32.xlu0 %v906, 64
        %v1039 = vpop.permute.xlu0 %1038
        %1040 = vrot.lane.b32.xlu0 %v892, 48
        %v1041 = vpop.permute.xlu0 %1040
        %1042 = vrot.lane.b32.xlu0 %v894, 48
        %v1043 = vpop.permute.xlu0 %1042
        %1044 = vrot.lane.b32.xlu0 %v896, 48
        %v1045 = vpop.permute.xlu0 %1044
        %1046 = vrot.lane.b32.xlu0 %v898, 48
        %v1047 = vpop.permute.xlu0 %1046
        %1048 = vrot.lane.b32.xlu0 %v900, 48
        %v1049 = vpop.permute.xlu0 %1048
        %1050 = vrot.lane.b32.xlu0 %v902, 48
        %v1051 = vpop.permute.xlu0 %1050
        %1052 = vrot.lane.b32.xlu0 %v904, 48
        %v1053 = vpop.permute.xlu0 %1052
        %1054 = vrot.lane.b32.xlu0 %v906, 48
        %v1055 = vpop.permute.xlu0 %1054
        %1056 = vrot.lane.b32.xlu0 %v892, 32
        %v1057 = vpop.permute.xlu0 %1056
        %1058 = vrot.lane.b32.xlu0 %v894, 32
        %v1059 = vpop.permute.xlu0 %1058
        %1060 = vrot.lane.b32.xlu0 %v896, 32
        %v1061 = vpop.permute.xlu0 %1060
        %1062 = vrot.lane.b32.xlu0 %v898, 32
        %v1063 = vpop.permute.xlu0 %1062
        %1064 = vrot.lane.b32.xlu0 %v900, 32
        %v1065 = vpop.permute.xlu0 %1064
        %1066 = vrot.lane.b32.xlu0 %v902, 32
        %v1067 = vpop.permute.xlu0 %1066
        %1068 = vrot.lane.b32.xlu0 %v904, 32
        %v1069 = vpop.permute.xlu0 %1068
        %1070 = vrot.lane.b32.xlu0 %v906, 32
        %v1071 = vpop.permute.xlu0 %1070
        %1072 = vrot.lane.b32.xlu0 %v892, 16
        %v1073 = vpop.permute.xlu0 %1072
        %1074 = vrot.lane.b32.xlu0 %v894, 16
        %v1075 = vpop.permute.xlu0 %1074
        %1076 = vrot.lane.b32.xlu0 %v896, 16
        %v1077 = vpop.permute.xlu0 %1076
        %1078 = vrot.lane.b32.xlu0 %v898, 16
        %v1079 = vpop.permute.xlu0 %1078
        %1080 = vrot.lane.b32.xlu0 %v900, 16
        %v1081 = vpop.permute.xlu0 %1080
        %1082 = vrot.lane.b32.xlu0 %v902, 16
        %v1083 = vpop.permute.xlu0 %1082
        %1084 = vrot.lane.b32.xlu0 %v904, 16
        %v1085 = vpop.permute.xlu0 %1084
        %1086 = vrot.lane.b32.xlu0 %v906, 16
        %v1087 = vpop.permute.xlu0 %1086
        %1096 = vrot.lane.b32.xlu0 %v893, 112
        %v1097 = vpop.permute.xlu0 %1096
        %1098 = vrot.lane.b32.xlu0 %v895, 112
        %v1099 = vpop.permute.xlu0 %1098
        %1100 = vrot.lane.b32.xlu0 %v897, 112
        %v1101 = vpop.permute.xlu0 %1100
        %1102 = vrot.lane.b32.xlu0 %v899, 112
        %v1103 = vpop.permute.xlu0 %1102
        %1104 = vrot.lane.b32.xlu0 %v901, 112
        %v1105 = vpop.permute.xlu0 %1104
        %1106 = vrot.lane.b32.xlu0 %v903, 112
        %v1107 = vpop.permute.xlu0 %1106
        %1108 = vrot.lane.b32.xlu0 %v905, 112
        %v1109 = vpop.permute.xlu0 %1108
        %1110 = vrot.lane.b32.xlu0 %v907, 112
        %v1111 = vpop.permute.xlu0 %1110
        %1120 = vrot.lane.b32.xlu0 %v893, 96
        %v1121 = vpop.permute.xlu0 %1120
        %1122 = vrot.lane.b32.xlu0 %v895, 96
        %v1123 = vpop.permute.xlu0 %1122
        %1124 = vrot.lane.b32.xlu0 %v897, 96
        %v1125 = vpop.permute.xlu0 %1124
        %1126 = vrot.lane.b32.xlu0 %v899, 96
        %v1127 = vpop.permute.xlu0 %1126
        %1128 = vrot.lane.b32.xlu0 %v901, 96
        %v1129 = vpop.permute.xlu0 %1128
        %1130 = vrot.lane.b32.xlu0 %v903, 96
        %v1131 = vpop.permute.xlu0 %1130
        %1132 = vrot.lane.b32.xlu0 %v905, 96
        %v1133 = vpop.permute.xlu0 %1132
        %1134 = vrot.lane.b32.xlu0 %v907, 96
        %v1135 = vpop.permute.xlu0 %1134
        %1144 = vrot.lane.b32.xlu0 %v893, 80
        %v1145 = vpop.permute.xlu0 %1144
        %1146 = vrot.lane.b32.xlu0 %v895, 80
        %v1147 = vpop.permute.xlu0 %1146
        %1148 = vrot.lane.b32.xlu0 %v897, 80
        %v1149 = vpop.permute.xlu0 %1148
        %1150 = vrot.lane.b32.xlu0 %v899, 80
        %v1151 = vpop.permute.xlu0 %1150
        %1152 = vrot.lane.b32.xlu0 %v901, 80
        %v1153 = vpop.permute.xlu0 %1152
        %1154 = vrot.lane.b32.xlu0 %v903, 80
        %v1155 = vpop.permute.xlu0 %1154
        %1156 = vrot.lane.b32.xlu0 %v905, 80
        %v1157 = vpop.permute.xlu0 %1156
        %1158 = vrot.lane.b32.xlu0 %v907, 80
        %v1159 = vpop.permute.xlu0 %1158
        %1168 = vrot.lane.b32.xlu0 %v893, 64
        %v1169 = vpop.permute.xlu0 %1168
        %1170 = vrot.lane.b32.xlu0 %v895, 64
        %v1171 = vpop.permute.xlu0 %1170
        %1172 = vrot.lane.b32.xlu0 %v897, 64
        %v1173 = vpop.permute.xlu0 %1172
        %1174 = vrot.lane.b32.xlu0 %v899, 64
        %v1175 = vpop.permute.xlu0 %1174
        %1176 = vrot.lane.b32.xlu0 %v901, 64
        %v1177 = vpop.permute.xlu0 %1176
        %1178 = vrot.lane.b32.xlu0 %v903, 64
        %v1179 = vpop.permute.xlu0 %1178
        %1180 = vrot.lane.b32.xlu0 %v905, 64
        %v1181 = vpop.permute.xlu0 %1180
        %1182 = vrot.lane.b32.xlu0 %v907, 64
        %v1183 = vpop.permute.xlu0 %1182
        %1192 = vrot.lane.b32.xlu0 %v893, 48
        %v1193 = vpop.permute.xlu0 %1192
        %1194 = vrot.lane.b32.xlu0 %v895, 48
        %v1195 = vpop.permute.xlu0 %1194
        %1196 = vrot.lane.b32.xlu0 %v897, 48
        %v1197 = vpop.permute.xlu0 %1196
        %1198 = vrot.lane.b32.xlu0 %v899, 48
        %v1199 = vpop.permute.xlu0 %1198
        %1200 = vrot.lane.b32.xlu0 %v901, 48
        %v1201 = vpop.permute.xlu0 %1200
        %1202 = vrot.lane.b32.xlu0 %v903, 48
        %v1203 = vpop.permute.xlu0 %1202
        %1204 = vrot.lane.b32.xlu0 %v905, 48
        %v1205 = vpop.permute.xlu0 %1204
        %1206 = vrot.lane.b32.xlu0 %v907, 48
        %v1207 = vpop.permute.xlu0 %1206
        %1216 = vrot.lane.b32.xlu0 %v893, 32
        %v1217 = vpop.permute.xlu0 %1216
        %1218 = vrot.lane.b32.xlu0 %v895, 32
        %v1219 = vpop.permute.xlu0 %1218
        %1220 = vrot.lane.b32.xlu0 %v897, 32
        %v1221 = vpop.permute.xlu0 %1220
        %1222 = vrot.lane.b32.xlu0 %v899, 32
        %v1223 = vpop.permute.xlu0 %1222
        %1224 = vrot.lane.b32.xlu0 %v901, 32
        %v1225 = vpop.permute.xlu0 %1224
        %1226 = vrot.lane.b32.xlu0 %v903, 32
        %v1227 = vpop.permute.xlu0 %1226
        %1228 = vrot.lane.b32.xlu0 %v905, 32
        %v1229 = vpop.permute.xlu0 %1228
        %1230 = vrot.lane.b32.xlu0 %v907, 32
        %v1231 = vpop.permute.xlu0 %1230
        %1240 = vrot.lane.b32.xlu0 %v893, 16
        %v1241 = vpop.permute.xlu0 %1240
        %1242 = vrot.lane.b32.xlu0 %v895, 16
        %v1243 = vpop.permute.xlu0 %1242
        %1244 = vrot.lane.b32.xlu0 %v897, 16
        %v1245 = vpop.permute.xlu0 %1244
        %1246 = vrot.lane.b32.xlu0 %v899, 16
        %v1247 = vpop.permute.xlu0 %1246
        %1248 = vrot.lane.b32.xlu0 %v901, 16
        %v1249 = vpop.permute.xlu0 %1248
        %1250 = vrot.lane.b32.xlu0 %v903, 16
        %v1251 = vpop.permute.xlu0 %1250
        %1252 = vrot.lane.b32.xlu0 %v905, 16
        %v1253 = vpop.permute.xlu0 %1252
        %1254 = vrot.lane.b32.xlu0 %v907, 16
        %v1255 = vpop.permute.xlu0 %1254
        %vm1264 = vcmask 130048
        %v1266 = vsel %vm1264, %v888, 0
        %v1269 = vsel %vm1264, %v889, 0
        %v1272 = vsel %vm1264, %v890, 0
        %v1275 = vsel %vm1264, %v891, 0
        %v1278 = vsel %vm1264, %v892, 0
        %v1281 = vsel %vm1264, %v894, 0
        %v1284 = vsel %vm1264, %v896, 0
        %v1287 = vsel %vm1264, %v898, 0
        %v1290 = vsel %vm1264, %v900, 0
        %v1293 = vsel %vm1264, %v902, 0
        %v1296 = vsel %vm1264, %v904, 0
        %v1299 = vsel %vm1264, %v906, 0
        %1301 = vmatprep.subr.bf16.mxu0 0
        %1302 = vmatpush1.bf16.xpose.msra.mxu0 %v1299
        %1303 = vmatprep.subr.bf16.mxu0 0
        %1304 = vmatpush1.bf16.xpose.msra.mxu0 %v1296
        %1305 = vmatprep.subr.bf16.mxu0 0
        %1306 = vmatpush1.bf16.xpose.msra.mxu0 %v1293
        %1307 = vmatprep.subr.bf16.mxu0 0
        %1308 = vmatpush1.bf16.xpose.msra.mxu0 %v1290
        %1309 = vmatprep.subr.bf16.mxu0 0
        %1310 = vmatpush1.bf16.xpose.msra.mxu0 %v1287
        %1311 = vmatprep.subr.bf16.mxu0 0
        %1312 = vmatpush1.bf16.xpose.msra.mxu0 %v1284
        %1313 = vmatprep.subr.bf16.mxu0 0
        %1314 = vmatpush1.bf16.xpose.msra.mxu0 %v1281
        %1315 = vmatprep.subr.bf16.mxu0 0
        %1316 = vmatpush1.bf16.xpose.msra.mxu0 %v1278
        %1317 = vmatprep.subr.bf16.mxu0 0
        %1318 = vmatpush2.bf16.xpose.msra.mxu0 0
        %1319 = vmatprep.subr.bf16.mxu0 0
        %1320 = vmatpush2.bf16.xpose.msra.mxu0 0
        %1321 = vmatprep.subr.bf16.mxu0 0
        %1322 = vmatpush2.bf16.xpose.msra.mxu0 0
        %1323 = vmatprep.subr.bf16.mxu0 0
        %1324 = vmatpush2.bf16.xpose.msra.mxu0 0
        %1325 = vmatprep.subr.bf16.mxu0 0
        %1326 = vmatpush2.bf16.xpose.msra.mxu0 0
        %1327 = vmatprep.subr.bf16.mxu0 0
        %1328 = vmatpush2.bf16.xpose.msra.mxu0 0
        %1329 = vmatprep.subr.bf16.mxu0 0
        %1330 = vmatpush2.bf16.xpose.msra.mxu0 0
        %1331 = vmatprep.subr.bf16.mxu0 0
        %1332 = vmatpush2.bf16.xpose.msra.mxu0 0
        %1333 = vmatprep.mubr.bf16.mxu0 0
        %1334 = vmatmul.mubr.bf16.gmra.mxu0 %v1266
        %v1335 = vpop.f32.mrf.mxu0
        %v1336 = vadd.f32 0.0, %v1335
        %v1337 = vpop.f32.mrf.mxu0
        %v1338 = vpop.f32.mrf.mxu0
        %v1339 = vadd.f32 0.0, %v1338
        %v1340 = vpop.f32.mrf.mxu0
        %1341 = vmatprep.mubr.bf16.mxu0 0
        %1342 = vmatmul.mubr.bf16.gmra.mxu0 %v1269
        %v1343 = vpop.f32.mrf.mxu0
        %v1344 = vadd.f32 0.0, %v1343
        %v1345 = vpop.f32.mrf.mxu0
        %v1346 = vpop.f32.mrf.mxu0
        %v1347 = vadd.f32 0.0, %v1346
        %v1348 = vpop.f32.mrf.mxu0
        %1349 = vmatprep.mubr.bf16.mxu0 0
        %1350 = vmatmul.mubr.bf16.gmra.mxu0 %v1272
        %v1351 = vpop.f32.mrf.mxu0
        %v1352 = vadd.f32 0.0, %v1351
        %v1353 = vpop.f32.mrf.mxu0
        %v1354 = vpop.f32.mrf.mxu0
        %v1355 = vadd.f32 0.0, %v1354
        %v1356 = vpop.f32.mrf.mxu0
        %1357 = vmatprep.mubr.bf16.mxu0 0
        %1358 = vmatmul.mubr.bf16.gmra.mxu0 %v1275
        %v1359 = vpop.f32.mrf.mxu0
        %v1360 = vadd.f32 0.0, %v1359
        %v1361 = vpop.f32.mrf.mxu0
        %v1362 = vpop.f32.mrf.mxu0
        %v1363 = vadd.f32 0.0, %v1362
        %v1364 = vpop.f32.mrf.mxu0
        %1365 = vdwg.mxu0
        %v1367 = vsel %vm1264, %v913, 0
        %v1370 = vsel %vm1264, %v915, 0
        %v1373 = vsel %vm1264, %v917, 0
        %v1376 = vsel %vm1264, %v919, 0
        %v1379 = vsel %vm1264, %v977, 0
        %v1382 = vsel %vm1264, %v979, 0
        %v1385 = vsel %vm1264, %v981, 0
        %v1388 = vsel %vm1264, %v983, 0
        %v1391 = vsel %vm1264, %v985, 0
        %v1394 = vsel %vm1264, %v987, 0
        %v1397 = vsel %vm1264, %v989, 0
        %v1400 = vsel %vm1264, %v991, 0
        %1402 = vmatprep.subr.bf16.mxu0 0
        %1403 = vmatpush1.bf16.xpose.msra.mxu0 %v1400
        %1404 = vmatprep.subr.bf16.mxu0 0
        %1405 = vmatpush1.bf16.xpose.msra.mxu0 %v1397
        %1406 = vmatprep.subr.bf16.mxu0 0
        %1407 = vmatpush1.bf16.xpose.msra.mxu0 %v1394
        %1408 = vmatprep.subr.bf16.mxu0 0
        %1409 = vmatpush1.bf16.xpose.msra.mxu0 %v1391
        %1410 = vmatprep.subr.bf16.mxu0 0
        %1411 = vmatpush1.bf16.xpose.msra.mxu0 %v1388
        %1412 = vmatprep.subr.bf16.mxu0 0
        %1413 = vmatpush1.bf16.xpose.msra.mxu0 %v1385
        %1414 = vmatprep.subr.bf16.mxu0 0
        %1415 = vmatpush1.bf16.xpose.msra.mxu0 %v1382
        %1416 = vmatprep.subr.bf16.mxu0 0
        %1417 = vmatpush1.bf16.xpose.msra.mxu0 %v1379
        %1418 = vmatprep.subr.bf16.mxu0 0
        %1419 = vmatpush2.bf16.xpose.msra.mxu0 0
        %1420 = vmatprep.subr.bf16.mxu0 0
        %1421 = vmatpush2.bf16.xpose.msra.mxu0 0
        %1422 = vmatprep.subr.bf16.mxu0 0
        %1423 = vmatpush2.bf16.xpose.msra.mxu0 0
        %1424 = vmatprep.subr.bf16.mxu0 0
        %1425 = vmatpush2.bf16.xpose.msra.mxu0 0
        %1426 = vmatprep.subr.bf16.mxu0 0
        %1427 = vmatpush2.bf16.xpose.msra.mxu0 0
        %1428 = vmatprep.subr.bf16.mxu0 0
        %1429 = vmatpush2.bf16.xpose.msra.mxu0 0
        %1430 = vmatprep.subr.bf16.mxu0 0
        %1431 = vmatpush2.bf16.xpose.msra.mxu0 0
        %1432 = vmatprep.subr.bf16.mxu0 0
        %1433 = vmatpush2.bf16.xpose.msra.mxu0 0
        %1434 = vmatprep.mubr.bf16.mxu0 0
        %1435 = vmatmul.mubr.bf16.gmra.mxu0 %v1367
        %v1436 = vpop.f32.mrf.mxu0
        %v1437 = vadd.f32 0.0, %v1436
        %v1438 = vpop.f32.mrf.mxu0
        %v1439 = vpop.f32.mrf.mxu0
        %v1440 = vadd.f32 0.0, %v1439
        %v1441 = vpop.f32.mrf.mxu0
        %1442 = vmatprep.mubr.bf16.mxu0 0
        %1443 = vmatmul.mubr.bf16.gmra.mxu0 %v1370
        %v1444 = vpop.f32.mrf.mxu0
        %v1445 = vadd.f32 0.0, %v1444
        %v1446 = vpop.f32.mrf.mxu0
        %v1447 = vpop.f32.mrf.mxu0
        %v1448 = vadd.f32 0.0, %v1447
        %v1449 = vpop.f32.mrf.mxu0
        %1450 = vmatprep.mubr.bf16.mxu0 0
        %1451 = vmatmul.mubr.bf16.gmra.mxu0 %v1373
        %v1452 = vpop.f32.mrf.mxu0
        %v1453 = vadd.f32 0.0, %v1452
        %v1454 = vpop.f32.mrf.mxu0
        %v1455 = vpop.f32.mrf.mxu0
        %v1456 = vadd.f32 0.0, %v1455
        %v1457 = vpop.f32.mrf.mxu0
        %1458 = vmatprep.mubr.bf16.mxu0 0
        %1459 = vmatmul.mubr.bf16.gmra.mxu0 %v1376
        %v1460 = vpop.f32.mrf.mxu0
        %v1461 = vadd.f32 0.0, %v1460
        %v1462 = vpop.f32.mrf.mxu0
        %v1463 = vpop.f32.mrf.mxu0
        %v1464 = vadd.f32 0.0, %v1463
        %v1465 = vpop.f32.mrf.mxu0
        %1466 = vdwg.mxu0
        %v1468 = vsel %vm1264, %v921, 0
        %v1471 = vsel %vm1264, %v923, 0
        %v1474 = vsel %vm1264, %v925, 0
        %v1477 = vsel %vm1264, %v927, 0
        %v1480 = vsel %vm1264, %v993, 0
        %v1483 = vsel %vm1264, %v995, 0
        %v1486 = vsel %vm1264, %v997, 0
        %v1489 = vsel %vm1264, %v999, 0
        %v1492 = vsel %vm1264, %v1001, 0
        %v1495 = vsel %vm1264, %v1003, 0
        %v1498 = vsel %vm1264, %v1005, 0
        %v1501 = vsel %vm1264, %v1007, 0
        %1503 = vmatprep.subr.bf16.mxu0 0
        %1504 = vmatpush1.bf16.xpose.msra.mxu0 %v1501
        %1505 = vmatprep.subr.bf16.mxu0 0
        %1506 = vmatpush1.bf16.xpose.msra.mxu0 %v1498
        %1507 = vmatprep.subr.bf16.mxu0 0
        %1508 = vmatpush1.bf16.xpose.msra.mxu0 %v1495
        %1509 = vmatprep.subr.bf16.mxu0 0
        %1510 = vmatpush1.bf16.xpose.msra.mxu0 %v1492
        %1511 = vmatprep.subr.bf16.mxu0 0
        %1512 = vmatpush1.bf16.xpose.msra.mxu0 %v1489
        %1513 = vmatprep.subr.bf16.mxu0 0
        %1514 = vmatpush1.bf16.xpose.msra.mxu0 %v1486
        %1515 = vmatprep.subr.bf16.mxu0 0
        %1516 = vmatpush1.bf16.xpose.msra.mxu0 %v1483
        %1517 = vmatprep.subr.bf16.mxu0 0
        %1518 = vmatpush1.bf16.xpose.msra.mxu0 %v1480
        %1519 = vmatprep.subr.bf16.mxu0 0
        %1520 = vmatpush2.bf16.xpose.msra.mxu0 0
        %1521 = vmatprep.subr.bf16.mxu0 0
        %1522 = vmatpush2.bf16.xpose.msra.mxu0 0
        %1523 = vmatprep.subr.bf16.mxu0 0
        %1524 = vmatpush2.bf16.xpose.msra.mxu0 0
        %1525 = vmatprep.subr.bf16.mxu0 0
        %1526 = vmatpush2.bf16.xpose.msra.mxu0 0
        %1527 = vmatprep.subr.bf16.mxu0 0
        %1528 = vmatpush2.bf16.xpose.msra.mxu0 0
        %1529 = vmatprep.subr.bf16.mxu0 0
        %1530 = vmatpush2.bf16.xpose.msra.mxu0 0
        %1531 = vmatprep.subr.bf16.mxu0 0
        %1532 = vmatpush2.bf16.xpose.msra.mxu0 0
        %1533 = vmatprep.subr.bf16.mxu0 0
        %1534 = vmatpush2.bf16.xpose.msra.mxu0 0
        %1535 = vmatprep.mubr.bf16.mxu0 0
        %1536 = vmatmul.mubr.bf16.gmra.mxu0 %v1468
        %v1537 = vpop.f32.mrf.mxu0
        %v1538 = vadd.f32 0.0, %v1537
        %v1539 = vpop.f32.mrf.mxu0
        %v1540 = vpop.f32.mrf.mxu0
        %v1541 = vadd.f32 0.0, %v1540
        %v1542 = vpop.f32.mrf.mxu0
        %1543 = vmatprep.mubr.bf16.mxu0 0
        %1544 = vmatmul.mubr.bf16.gmra.mxu0 %v1471
        %v1545 = vpop.f32.mrf.mxu0
        %v1546 = vadd.f32 0.0, %v1545
        %v1547 = vpop.f32.mrf.mxu0
        %v1548 = vpop.f32.mrf.mxu0
        %v1549 = vadd.f32 0.0, %v1548
        %v1550 = vpop.f32.mrf.mxu0
        %1551 = vmatprep.mubr.bf16.mxu0 0
        %1552 = vmatmul.mubr.bf16.gmra.mxu0 %v1474
        %v1553 = vpop.f32.mrf.mxu0
        %v1554 = vadd.f32 0.0, %v1553
        %v1555 = vpop.f32.mrf.mxu0
        %v1556 = vpop.f32.mrf.mxu0
        %v1557 = vadd.f32 0.0, %v1556
        %v1558 = vpop.f32.mrf.mxu0
        %1559 = vmatprep.mubr.bf16.mxu0 0
        %1560 = vmatmul.mubr.bf16.gmra.mxu0 %v1477
        %v1561 = vpop.f32.mrf.mxu0
        %v1562 = vadd.f32 0.0, %v1561
        %v1563 = vpop.f32.mrf.mxu0
        %v1564 = vpop.f32.mrf.mxu0
        %v1565 = vadd.f32 0.0, %v1564
        %v1566 = vpop.f32.mrf.mxu0
        %1567 = vdwg.mxu0
        %v1569 = vsel %vm1264, %v929, 0
        %v1572 = vsel %vm1264, %v931, 0
        %v1575 = vsel %vm1264, %v933, 0
        %v1578 = vsel %vm1264, %v935, 0
        %v1581 = vsel %vm1264, %v1009, 0
        %v1584 = vsel %vm1264, %v1011, 0
        %v1587 = vsel %vm1264, %v1013, 0
        %v1590 = vsel %vm1264, %v1015, 0
        %v1593 = vsel %vm1264, %v1017, 0
        %v1596 = vsel %vm1264, %v1019, 0
        %v1599 = vsel %vm1264, %v1021, 0
        %v1602 = vsel %vm1264, %v1023, 0
        %1604 = vmatprep.subr.bf16.mxu0 0
        %1605 = vmatpush1.bf16.xpose.msra.mxu0 %v1602
        %1606 = vmatprep.subr.bf16.mxu0 0
        %1607 = vmatpush1.bf16.xpose.msra.mxu0 %v1599
        %1608 = vmatprep.subr.bf16.mxu0 0
        %1609 = vmatpush1.bf16.xpose.msra.mxu0 %v1596
        %1610 = vmatprep.subr.bf16.mxu0 0
        %1611 = vmatpush1.bf16.xpose.msra.mxu0 %v1593
        %1612 = vmatprep.subr.bf16.mxu0 0
        %1613 = vmatpush1.bf16.xpose.msra.mxu0 %v1590
        %1614 = vmatprep.subr.bf16.mxu0 0
        %1615 = vmatpush1.bf16.xpose.msra.mxu0 %v1587
        %1616 = vmatprep.subr.bf16.mxu0 0
        %1617 = vmatpush1.bf16.xpose.msra.mxu0 %v1584
        %1618 = vmatprep.subr.bf16.mxu0 0
        %1619 = vmatpush1.bf16.xpose.msra.mxu0 %v1581
        %1620 = vmatprep.subr.bf16.mxu0 0
        %1621 = vmatpush2.bf16.xpose.msra.mxu0 0
        %1622 = vmatprep.subr.bf16.mxu0 0
        %1623 = vmatpush2.bf16.xpose.msra.mxu0 0
        %1624 = vmatprep.subr.bf16.mxu0 0
        %1625 = vmatpush2.bf16.xpose.msra.mxu0 0
        %1626 = vmatprep.subr.bf16.mxu0 0
        %1627 = vmatpush2.bf16.xpose.msra.mxu0 0
        %1628 = vmatprep.subr.bf16.mxu0 0
        %1629 = vmatpush2.bf16.xpose.msra.mxu0 0
        %1630 = vmatprep.subr.bf16.mxu0 0
        %1631 = vmatpush2.bf16.xpose.msra.mxu0 0
        %1632 = vmatprep.subr.bf16.mxu0 0
        %1633 = vmatpush2.bf16.xpose.msra.mxu0 0
        %1634 = vmatprep.subr.bf16.mxu0 0
        %1635 = vmatpush2.bf16.xpose.msra.mxu0 0
        %1636 = vmatprep.mubr.bf16.mxu0 0
        %1637 = vmatmul.mubr.bf16.gmra.mxu0 %v1569
        %v1638 = vpop.f32.mrf.mxu0
        %v1639 = vadd.f32 0.0, %v1638
        %v1640 = vpop.f32.mrf.mxu0
        %v1641 = vpop.f32.mrf.mxu0
        %v1642 = vadd.f32 0.0, %v1641
        %v1643 = vpop.f32.mrf.mxu0
        %1644 = vmatprep.mubr.bf16.mxu0 0
        %1645 = vmatmul.mubr.bf16.gmra.mxu0 %v1572
        %v1646 = vpop.f32.mrf.mxu0
        %v1647 = vadd.f32 0.0, %v1646
        %v1648 = vpop.f32.mrf.mxu0
        %v1649 = vpop.f32.mrf.mxu0
        %v1650 = vadd.f32 0.0, %v1649
        %v1651 = vpop.f32.mrf.mxu0
        %1652 = vmatprep.mubr.bf16.mxu0 0
        %1653 = vmatmul.mubr.bf16.gmra.mxu0 %v1575
        %v1654 = vpop.f32.mrf.mxu0
        %v1655 = vadd.f32 0.0, %v1654
        %v1656 = vpop.f32.mrf.mxu0
        %v1657 = vpop.f32.mrf.mxu0
        %v1658 = vadd.f32 0.0, %v1657
        %v1659 = vpop.f32.mrf.mxu0
        %1660 = vmatprep.mubr.bf16.mxu0 0
        %1661 = vmatmul.mubr.bf16.gmra.mxu0 %v1578
        %v1662 = vpop.f32.mrf.mxu0
        %v1663 = vadd.f32 0.0, %v1662
        %v1664 = vpop.f32.mrf.mxu0
        %v1665 = vpop.f32.mrf.mxu0
        %v1666 = vadd.f32 0.0, %v1665
        %v1667 = vpop.f32.mrf.mxu0
        %1668 = vdwg.mxu0
        %v1670 = vsel %vm1264, %v937, 0
        %v1673 = vsel %vm1264, %v939, 0
        %v1676 = vsel %vm1264, %v941, 0
        %v1679 = vsel %vm1264, %v943, 0
        %v1682 = vsel %vm1264, %v1025, 0
        %v1685 = vsel %vm1264, %v1027, 0
        %v1688 = vsel %vm1264, %v1029, 0
        %v1691 = vsel %vm1264, %v1031, 0
        %v1694 = vsel %vm1264, %v1033, 0
        %v1697 = vsel %vm1264, %v1035, 0
        %v1700 = vsel %vm1264, %v1037, 0
        %v1703 = vsel %vm1264, %v1039, 0
        %1705 = vmatprep.subr.bf16.mxu0 0
        %1706 = vmatpush1.bf16.xpose.msra.mxu0 %v1703
        %1707 = vmatprep.subr.bf16.mxu0 0
        %1708 = vmatpush1.bf16.xpose.msra.mxu0 %v1700
        %1709 = vmatprep.subr.bf16.mxu0 0
        %1710 = vmatpush1.bf16.xpose.msra.mxu0 %v1697
        %1711 = vmatprep.subr.bf16.mxu0 0
        %1712 = vmatpush1.bf16.xpose.msra.mxu0 %v1694
        %1713 = vmatprep.subr.bf16.mxu0 0
        %1714 = vmatpush1.bf16.xpose.msra.mxu0 %v1691
        %1715 = vmatprep.subr.bf16.mxu0 0
        %1716 = vmatpush1.bf16.xpose.msra.mxu0 %v1688
        %1717 = vmatprep.subr.bf16.mxu0 0
        %1718 = vmatpush1.bf16.xpose.msra.mxu0 %v1685
        %1719 = vmatprep.subr.bf16.mxu0 0
        %1720 = vmatpush1.bf16.xpose.msra.mxu0 %v1682
        %1721 = vmatprep.subr.bf16.mxu0 0
        %1722 = vmatpush2.bf16.xpose.msra.mxu0 0
        %1723 = vmatprep.subr.bf16.mxu0 0
        %1724 = vmatpush2.bf16.xpose.msra.mxu0 0
        %1725 = vmatprep.subr.bf16.mxu0 0
        %1726 = vmatpush2.bf16.xpose.msra.mxu0 0
        %1727 = vmatprep.subr.bf16.mxu0 0
        %1728 = vmatpush2.bf16.xpose.msra.mxu0 0
        %1729 = vmatprep.subr.bf16.mxu0 0
        %1730 = vmatpush2.bf16.xpose.msra.mxu0 0
        %1731 = vmatprep.subr.bf16.mxu0 0
        %1732 = vmatpush2.bf16.xpose.msra.mxu0 0
        %1733 = vmatprep.subr.bf16.mxu0 0
        %1734 = vmatpush2.bf16.xpose.msra.mxu0 0
        %1735 = vmatprep.subr.bf16.mxu0 0
        %1736 = vmatpush2.bf16.xpose.msra.mxu0 0
        %1737 = vmatprep.mubr.bf16.mxu0 0
        %1738 = vmatmul.mubr.bf16.gmra.mxu0 %v1670
        %v1739 = vpop.f32.mrf.mxu0
        %v1740 = vadd.f32 0.0, %v1739
        %v1741 = vpop.f32.mrf.mxu0
        %v1742 = vpop.f32.mrf.mxu0
        %v1743 = vadd.f32 0.0, %v1742
        %v1744 = vpop.f32.mrf.mxu0
        %1745 = vmatprep.mubr.bf16.mxu0 0
        %1746 = vmatmul.mubr.bf16.gmra.mxu0 %v1673
        %v1747 = vpop.f32.mrf.mxu0
        %v1748 = vadd.f32 0.0, %v1747
        %v1749 = vpop.f32.mrf.mxu0
        %v1750 = vpop.f32.mrf.mxu0
        %v1751 = vadd.f32 0.0, %v1750
        %v1752 = vpop.f32.mrf.mxu0
        %1753 = vmatprep.mubr.bf16.mxu0 0
        %1754 = vmatmul.mubr.bf16.gmra.mxu0 %v1676
        %v1755 = vpop.f32.mrf.mxu0
        %v1756 = vadd.f32 0.0, %v1755
        %v1757 = vpop.f32.mrf.mxu0
        %v1758 = vpop.f32.mrf.mxu0
        %v1759 = vadd.f32 0.0, %v1758
        %v1760 = vpop.f32.mrf.mxu0
        %1761 = vmatprep.mubr.bf16.mxu0 0
        %1762 = vmatmul.mubr.bf16.gmra.mxu0 %v1679
        %v1763 = vpop.f32.mrf.mxu0
        %v1764 = vadd.f32 0.0, %v1763
        %v1765 = vpop.f32.mrf.mxu0
        %v1766 = vpop.f32.mrf.mxu0
        %v1767 = vadd.f32 0.0, %v1766
        %v1768 = vpop.f32.mrf.mxu0
        %1769 = vdwg.mxu0
        %v1771 = vsel %vm1264, %v945, 0
        %v1774 = vsel %vm1264, %v947, 0
        %v1777 = vsel %vm1264, %v949, 0
        %v1780 = vsel %vm1264, %v951, 0
        %v1783 = vsel %vm1264, %v1041, 0
        %v1786 = vsel %vm1264, %v1043, 0
        %v1789 = vsel %vm1264, %v1045, 0
        %v1792 = vsel %vm1264, %v1047, 0
        %v1795 = vsel %vm1264, %v1049, 0
        %v1798 = vsel %vm1264, %v1051, 0
        %v1801 = vsel %vm1264, %v1053, 0
        %v1804 = vsel %vm1264, %v1055, 0
        %1806 = vmatprep.subr.bf16.mxu0 0
        %1807 = vmatpush1.bf16.xpose.msra.mxu0 %v1804
        %1808 = vmatprep.subr.bf16.mxu0 0
        %1809 = vmatpush1.bf16.xpose.msra.mxu0 %v1801
        %1810 = vmatprep.subr.bf16.mxu0 0
        %1811 = vmatpush1.bf16.xpose.msra.mxu0 %v1798
        %1812 = vmatprep.subr.bf16.mxu0 0
        %1813 = vmatpush1.bf16.xpose.msra.mxu0 %v1795
        %1814 = vmatprep.subr.bf16.mxu0 0
        %1815 = vmatpush1.bf16.xpose.msra.mxu0 %v1792
        %1816 = vmatprep.subr.bf16.mxu0 0
        %1817 = vmatpush1.bf16.xpose.msra.mxu0 %v1789
        %1818 = vmatprep.subr.bf16.mxu0 0
        %1819 = vmatpush1.bf16.xpose.msra.mxu0 %v1786
        %1820 = vmatprep.subr.bf16.mxu0 0
        %1821 = vmatpush1.bf16.xpose.msra.mxu0 %v1783
        %1822 = vmatprep.subr.bf16.mxu0 0
        %1823 = vmatpush2.bf16.xpose.msra.mxu0 0
        %1824 = vmatprep.subr.bf16.mxu0 0
        %1825 = vmatpush2.bf16.xpose.msra.mxu0 0
        %1826 = vmatprep.subr.bf16.mxu0 0
        %1827 = vmatpush2.bf16.xpose.msra.mxu0 0
        %1828 = vmatprep.subr.bf16.mxu0 0
        %1829 = vmatpush2.bf16.xpose.msra.mxu0 0
        %1830 = vmatprep.subr.bf16.mxu0 0
        %1831 = vmatpush2.bf16.xpose.msra.mxu0 0
        %1832 = vmatprep.subr.bf16.mxu0 0
        %1833 = vmatpush2.bf16.xpose.msra.mxu0 0
        %1834 = vmatprep.subr.bf16.mxu0 0
        %1835 = vmatpush2.bf16.xpose.msra.mxu0 0
        %1836 = vmatprep.subr.bf16.mxu0 0
        %1837 = vmatpush2.bf16.xpose.msra.mxu0 0
        %1838 = vmatprep.mubr.bf16.mxu0 0
        %1839 = vmatmul.mubr.bf16.gmra.mxu0 %v1771
        %v1840 = vpop.f32.mrf.mxu0
        %v1841 = vadd.f32 0.0, %v1840
        %v1842 = vpop.f32.mrf.mxu0
        %v1843 = vpop.f32.mrf.mxu0
        %v1844 = vadd.f32 0.0, %v1843
        %v1845 = vpop.f32.mrf.mxu0
        %1846 = vmatprep.mubr.bf16.mxu0 0
        %1847 = vmatmul.mubr.bf16.gmra.mxu0 %v1774
        %v1848 = vpop.f32.mrf.mxu0
        %v1849 = vadd.f32 0.0, %v1848
        %v1850 = vpop.f32.mrf.mxu0
        %v1851 = vpop.f32.mrf.mxu0
        %v1852 = vadd.f32 0.0, %v1851
        %v1853 = vpop.f32.mrf.mxu0
        %1854 = vmatprep.mubr.bf16.mxu0 0
        %1855 = vmatmul.mubr.bf16.gmra.mxu0 %v1777
        %v1856 = vpop.f32.mrf.mxu0
        %v1857 = vadd.f32 0.0, %v1856
        %v1858 = vpop.f32.mrf.mxu0
        %v1859 = vpop.f32.mrf.mxu0
        %v1860 = vadd.f32 0.0, %v1859
        %v1861 = vpop.f32.mrf.mxu0
        %1862 = vmatprep.mubr.bf16.mxu0 0
        %1863 = vmatmul.mubr.bf16.gmra.mxu0 %v1780
        %v1864 = vpop.f32.mrf.mxu0
        %v1865 = vadd.f32 0.0, %v1864
        %v1866 = vpop.f32.mrf.mxu0
        %v1867 = vpop.f32.mrf.mxu0
        %v1868 = vadd.f32 0.0, %v1867
        %v1869 = vpop.f32.mrf.mxu0
        %1870 = vdwg.mxu0
        %v1872 = vsel %vm1264, %v953, 0
        %v1875 = vsel %vm1264, %v955, 0
        %v1878 = vsel %vm1264, %v957, 0
        %v1881 = vsel %vm1264, %v959, 0
        %v1884 = vsel %vm1264, %v1057, 0
        %v1887 = vsel %vm1264, %v1059, 0
        %v1890 = vsel %vm1264, %v1061, 0
        %v1893 = vsel %vm1264, %v1063, 0
        %v1896 = vsel %vm1264, %v1065, 0
        %v1899 = vsel %vm1264, %v1067, 0
        %v1902 = vsel %vm1264, %v1069, 0
        %v1905 = vsel %vm1264, %v1071, 0
        %1907 = vmatprep.subr.bf16.mxu0 0
        %1908 = vmatpush1.bf16.xpose.msra.mxu0 %v1905
        %1909 = vmatprep.subr.bf16.mxu0 0
        %1910 = vmatpush1.bf16.xpose.msra.mxu0 %v1902
        %1911 = vmatprep.subr.bf16.mxu0 0
        %1912 = vmatpush1.bf16.xpose.msra.mxu0 %v1899
        %1913 = vmatprep.subr.bf16.mxu0 0
        %1914 = vmatpush1.bf16.xpose.msra.mxu0 %v1896
        %1915 = vmatprep.subr.bf16.mxu0 0
        %1916 = vmatpush1.bf16.xpose.msra.mxu0 %v1893
        %1917 = vmatprep.subr.bf16.mxu0 0
        %1918 = vmatpush1.bf16.xpose.msra.mxu0 %v1890
        %1919 = vmatprep.subr.bf16.mxu0 0
        %1920 = vmatpush1.bf16.xpose.msra.mxu0 %v1887
        %1921 = vmatprep.subr.bf16.mxu0 0
        %1922 = vmatpush1.bf16.xpose.msra.mxu0 %v1884
        %1923 = vmatprep.subr.bf16.mxu0 0
        %1924 = vmatpush2.bf16.xpose.msra.mxu0 0
        %1925 = vmatprep.subr.bf16.mxu0 0
        %1926 = vmatpush2.bf16.xpose.msra.mxu0 0
        %1927 = vmatprep.subr.bf16.mxu0 0
        %1928 = vmatpush2.bf16.xpose.msra.mxu0 0
        %1929 = vmatprep.subr.bf16.mxu0 0
        %1930 = vmatpush2.bf16.xpose.msra.mxu0 0
        %1931 = vmatprep.subr.bf16.mxu0 0
        %1932 = vmatpush2.bf16.xpose.msra.mxu0 0
        %1933 = vmatprep.subr.bf16.mxu0 0
        %1934 = vmatpush2.bf16.xpose.msra.mxu0 0
        %1935 = vmatprep.subr.bf16.mxu0 0
        %1936 = vmatpush2.bf16.xpose.msra.mxu0 0
        %1937 = vmatprep.subr.bf16.mxu0 0
        %1938 = vmatpush2.bf16.xpose.msra.mxu0 0
        %1939 = vmatprep.mubr.bf16.mxu0 0
        %1940 = vmatmul.mubr.bf16.gmra.mxu0 %v1872
        %v1941 = vpop.f32.mrf.mxu0
        %v1942 = vadd.f32 0.0, %v1941
        %v1943 = vpop.f32.mrf.mxu0
        %v1944 = vpop.f32.mrf.mxu0
        %v1945 = vadd.f32 0.0, %v1944
        %v1946 = vpop.f32.mrf.mxu0
        %1947 = vmatprep.mubr.bf16.mxu0 0
        %1948 = vmatmul.mubr.bf16.gmra.mxu0 %v1875
        %v1949 = vpop.f32.mrf.mxu0
        %v1950 = vadd.f32 0.0, %v1949
        %v1951 = vpop.f32.mrf.mxu0
        %v1952 = vpop.f32.mrf.mxu0
        %v1953 = vadd.f32 0.0, %v1952
        %v1954 = vpop.f32.mrf.mxu0
        %1955 = vmatprep.mubr.bf16.mxu0 0
        %1956 = vmatmul.mubr.bf16.gmra.mxu0 %v1878
        %v1957 = vpop.f32.mrf.mxu0
        %v1958 = vadd.f32 0.0, %v1957
        %v1959 = vpop.f32.mrf.mxu0
        %v1960 = vpop.f32.mrf.mxu0
        %v1961 = vadd.f32 0.0, %v1960
        %v1962 = vpop.f32.mrf.mxu0
        %1963 = vmatprep.mubr.bf16.mxu0 0
        %1964 = vmatmul.mubr.bf16.gmra.mxu0 %v1881
        %v1965 = vpop.f32.mrf.mxu0
        %v1966 = vadd.f32 0.0, %v1965
        %v1967 = vpop.f32.mrf.mxu0
        %v1968 = vpop.f32.mrf.mxu0
        %v1969 = vadd.f32 0.0, %v1968
        %v1970 = vpop.f32.mrf.mxu0
        %1971 = vdwg.mxu0
        %v1973 = vsel %vm1264, %v961, 0
        %v1976 = vsel %vm1264, %v963, 0
        %v1979 = vsel %vm1264, %v965, 0
        %v1982 = vsel %vm1264, %v967, 0
        %v1985 = vsel %vm1264, %v1073, 0
        %v1988 = vsel %vm1264, %v1075, 0
        %v1991 = vsel %vm1264, %v1077, 0
        %v1994 = vsel %vm1264, %v1079, 0
        %v1997 = vsel %vm1264, %v1081, 0
        %v2000 = vsel %vm1264, %v1083, 0
        %v2003 = vsel %vm1264, %v1085, 0
        %v2006 = vsel %vm1264, %v1087, 0
        %2008 = vmatprep.subr.bf16.mxu0 0
        %2009 = vmatpush1.bf16.xpose.msra.mxu0 %v2006
        %2010 = vmatprep.subr.bf16.mxu0 0
        %2011 = vmatpush1.bf16.xpose.msra.mxu0 %v2003
        %2012 = vmatprep.subr.bf16.mxu0 0
        %2013 = vmatpush1.bf16.xpose.msra.mxu0 %v2000
        %2014 = vmatprep.subr.bf16.mxu0 0
        %2015 = vmatpush1.bf16.xpose.msra.mxu0 %v1997
        %2016 = vmatprep.subr.bf16.mxu0 0
        %2017 = vmatpush1.bf16.xpose.msra.mxu0 %v1994
        %2018 = vmatprep.subr.bf16.mxu0 0
        %2019 = vmatpush1.bf16.xpose.msra.mxu0 %v1991
        %2020 = vmatprep.subr.bf16.mxu0 0
        %2021 = vmatpush1.bf16.xpose.msra.mxu0 %v1988
        %2022 = vmatprep.subr.bf16.mxu0 0
        %2023 = vmatpush1.bf16.xpose.msra.mxu0 %v1985
        %2024 = vmatprep.subr.bf16.mxu0 0
        %2025 = vmatpush2.bf16.xpose.msra.mxu0 0
        %2026 = vmatprep.subr.bf16.mxu0 0
        %2027 = vmatpush2.bf16.xpose.msra.mxu0 0
        %2028 = vmatprep.subr.bf16.mxu0 0
        %2029 = vmatpush2.bf16.xpose.msra.mxu0 0
        %2030 = vmatprep.subr.bf16.mxu0 0
        %2031 = vmatpush2.bf16.xpose.msra.mxu0 0
        %2032 = vmatprep.subr.bf16.mxu0 0
        %2033 = vmatpush2.bf16.xpose.msra.mxu0 0
        %2034 = vmatprep.subr.bf16.mxu0 0
        %2035 = vmatpush2.bf16.xpose.msra.mxu0 0
        %2036 = vmatprep.subr.bf16.mxu0 0
        %2037 = vmatpush2.bf16.xpose.msra.mxu0 0
        %2038 = vmatprep.subr.bf16.mxu0 0
        %2039 = vmatpush2.bf16.xpose.msra.mxu0 0
        %2040 = vmatprep.mubr.bf16.mxu0 0
        %2041 = vmatmul.mubr.bf16.gmra.mxu0 %v1973
        %v2042 = vpop.f32.mrf.mxu0
        %v2043 = vadd.f32 0.0, %v2042
        %v2044 = vpop.f32.mrf.mxu0
        %v2045 = vpop.f32.mrf.mxu0
        %v2046 = vadd.f32 0.0, %v2045
        %v2047 = vpop.f32.mrf.mxu0
        %2048 = vmatprep.mubr.bf16.mxu0 0
        %2049 = vmatmul.mubr.bf16.gmra.mxu0 %v1976
        %v2050 = vpop.f32.mrf.mxu0
        %v2051 = vadd.f32 0.0, %v2050
        %v2052 = vpop.f32.mrf.mxu0
        %v2053 = vpop.f32.mrf.mxu0
        %v2054 = vadd.f32 0.0, %v2053
        %v2055 = vpop.f32.mrf.mxu0
        %2056 = vmatprep.mubr.bf16.mxu0 0
        %2057 = vmatmul.mubr.bf16.gmra.mxu0 %v1979
        %v2058 = vpop.f32.mrf.mxu0
        %v2059 = vadd.f32 0.0, %v2058
        %v2060 = vpop.f32.mrf.mxu0
        %v2061 = vpop.f32.mrf.mxu0
        %v2062 = vadd.f32 0.0, %v2061
        %v2063 = vpop.f32.mrf.mxu0
        %2064 = vmatprep.mubr.bf16.mxu0 0
        %2065 = vmatmul.mubr.bf16.gmra.mxu0 %v1982
        %v2066 = vpop.f32.mrf.mxu0
        %v2067 = vadd.f32 0.0, %v2066
        %v2068 = vpop.f32.mrf.mxu0
        %v2069 = vpop.f32.mrf.mxu0
        %v2070 = vadd.f32 0.0, %v2069
        %v2071 = vpop.f32.mrf.mxu0
        %2072 = vdwg.mxu0
        %2073 = vmax.xlane.f32.xlu0 %v1336
        %v2074 = vpop.xlane.xlu0 %2073
        %2075 = vmax.xlane.f32.xlu0 %v1339
        %v2076 = vpop.xlane.xlu0 %2075
        %2077 = vmax.xlane.f32.xlu0 %v1344
        %v2078 = vpop.xlane.xlu0 %2077
        %2079 = vmax.xlane.f32.xlu0 %v1347
        %v2080 = vpop.xlane.xlu0 %2079
        %2081 = vmax.xlane.f32.xlu0 %v1352
        %v2082 = vpop.xlane.xlu0 %2081
        %2083 = vmax.xlane.f32.xlu0 %v1355
        %v2084 = vpop.xlane.xlu0 %2083
        %2085 = vmax.xlane.f32.xlu0 %v1360
        %v2086 = vpop.xlane.xlu0 %2085
        %2087 = vmax.xlane.f32.xlu0 %v1363
        %v2088 = vpop.xlane.xlu0 %2087
        %2089 = vmax.xlane.f32.xlu0 %v1437
        %v2090 = vpop.xlane.xlu0 %2089
        %2091 = vmax.xlane.f32.xlu0 %v1440
        %v2092 = vpop.xlane.xlu0 %2091
        %2093 = vmax.xlane.f32.xlu0 %v1445
        %v2094 = vpop.xlane.xlu0 %2093
        %2095 = vmax.xlane.f32.xlu0 %v1448
        %v2096 = vpop.xlane.xlu0 %2095
        %2097 = vmax.xlane.f32.xlu0 %v1453
        %v2098 = vpop.xlane.xlu0 %2097
        %2099 = vmax.xlane.f32.xlu0 %v1456
        %v2100 = vpop.xlane.xlu0 %2099
        %2101 = vmax.xlane.f32.xlu0 %v1461
        %v2102 = vpop.xlane.xlu0 %2101
        %2103 = vmax.xlane.f32.xlu0 %v1464
        %v2104 = vpop.xlane.xlu0 %2103
        %2105 = vmax.xlane.f32.xlu0 %v1538
        %v2106 = vpop.xlane.xlu0 %2105
        %2107 = vmax.xlane.f32.xlu0 %v1541
        %v2108 = vpop.xlane.xlu0 %2107
        %2109 = vmax.xlane.f32.xlu0 %v1546
        %v2110 = vpop.xlane.xlu0 %2109
        %2111 = vmax.xlane.f32.xlu0 %v1549
        %v2112 = vpop.xlane.xlu0 %2111
        %2113 = vmax.xlane.f32.xlu0 %v1554
        %v2114 = vpop.xlane.xlu0 %2113
        %2115 = vmax.xlane.f32.xlu0 %v1557
        %v2116 = vpop.xlane.xlu0 %2115
        %2117 = vmax.xlane.f32.xlu0 %v1562
        %v2118 = vpop.xlane.xlu0 %2117
        %2119 = vmax.xlane.f32.xlu0 %v1565
        %v2120 = vpop.xlane.xlu0 %2119
        %2121 = vmax.xlane.f32.xlu0 %v1639
        %v2122 = vpop.xlane.xlu0 %2121
        %2123 = vmax.xlane.f32.xlu0 %v1642
        %v2124 = vpop.xlane.xlu0 %2123
        %2125 = vmax.xlane.f32.xlu0 %v1647
        %v2126 = vpop.xlane.xlu0 %2125
        %2127 = vmax.xlane.f32.xlu0 %v1650
        %v2128 = vpop.xlane.xlu0 %2127
        %2129 = vmax.xlane.f32.xlu0 %v1655
        %v2130 = vpop.xlane.xlu0 %2129
        %2131 = vmax.xlane.f32.xlu0 %v1658
        %v2132 = vpop.xlane.xlu0 %2131
        %2133 = vmax.xlane.f32.xlu0 %v1663
        %v2134 = vpop.xlane.xlu0 %2133
        %2135 = vmax.xlane.f32.xlu0 %v1666
        %v2136 = vpop.xlane.xlu0 %2135
        %2137 = vmax.xlane.f32.xlu0 %v1740
        %v2138 = vpop.xlane.xlu0 %2137
        %2139 = vmax.xlane.f32.xlu0 %v1743
        %v2140 = vpop.xlane.xlu0 %2139
        %2141 = vmax.xlane.f32.xlu0 %v1748
        %v2142 = vpop.xlane.xlu0 %2141
        %2143 = vmax.xlane.f32.xlu0 %v1751
        %v2144 = vpop.xlane.xlu0 %2143
        %2145 = vmax.xlane.f32.xlu0 %v1756
        %v2146 = vpop.xlane.xlu0 %2145
        %2147 = vmax.xlane.f32.xlu0 %v1759
        %v2148 = vpop.xlane.xlu0 %2147
        %2149 = vmax.xlane.f32.xlu0 %v1764
        %v2150 = vpop.xlane.xlu0 %2149
        %2151 = vmax.xlane.f32.xlu0 %v1767
        %v2152 = vpop.xlane.xlu0 %2151
        %2153 = vmax.xlane.f32.xlu0 %v1841
        %v2154 = vpop.xlane.xlu0 %2153
        %2155 = vmax.xlane.f32.xlu0 %v1844
        %v2156 = vpop.xlane.xlu0 %2155
        %2157 = vmax.xlane.f32.xlu0 %v1849
        %v2158 = vpop.xlane.xlu0 %2157
        %2159 = vmax.xlane.f32.xlu0 %v1852
        %v2160 = vpop.xlane.xlu0 %2159
        %2161 = vmax.xlane.f32.xlu0 %v1857
        %v2162 = vpop.xlane.xlu0 %2161
        %2163 = vmax.xlane.f32.xlu0 %v1860
        %v2164 = vpop.xlane.xlu0 %2163
        %2165 = vmax.xlane.f32.xlu0 %v1865
        %v2166 = vpop.xlane.xlu0 %2165
        %2167 = vmax.xlane.f32.xlu0 %v1868
        %v2168 = vpop.xlane.xlu0 %2167
        %2169 = vmax.xlane.f32.xlu0 %v1942
        %v2170 = vpop.xlane.xlu0 %2169
        %2171 = vmax.xlane.f32.xlu0 %v1945
        %v2172 = vpop.xlane.xlu0 %2171
        %2173 = vmax.xlane.f32.xlu0 %v1950
        %v2174 = vpop.xlane.xlu0 %2173
        %2175 = vmax.xlane.f32.xlu0 %v1953
        %v2176 = vpop.xlane.xlu0 %2175
        %2177 = vmax.xlane.f32.xlu0 %v1958
        %v2178 = vpop.xlane.xlu0 %2177
        %2179 = vmax.xlane.f32.xlu0 %v1961
        %v2180 = vpop.xlane.xlu0 %2179
        %2181 = vmax.xlane.f32.xlu0 %v1966
        %v2182 = vpop.xlane.xlu0 %2181
        %2183 = vmax.xlane.f32.xlu0 %v1969
        %v2184 = vpop.xlane.xlu0 %2183
        %2185 = vmax.xlane.f32.xlu0 %v2043
        %v2186 = vpop.xlane.xlu0 %2185
        %2187 = vmax.xlane.f32.xlu0 %v2046
        %v2188 = vpop.xlane.xlu0 %2187
        %2189 = vmax.xlane.f32.xlu0 %v2051
        %v2190 = vpop.xlane.xlu0 %2189
        %2191 = vmax.xlane.f32.xlu0 %v2054
        %v2192 = vpop.xlane.xlu0 %2191
        %2193 = vmax.xlane.f32.xlu0 %v2059
        %v2194 = vpop.xlane.xlu0 %2193
        %2195 = vmax.xlane.f32.xlu0 %v2062
        %v2196 = vpop.xlane.xlu0 %2195
        %2197 = vmax.xlane.f32.xlu0 %v2067
        %v2198 = vpop.xlane.xlu0 %2197
        %2199 = vmax.xlane.f32.xlu0 %v2070
        %v2200 = vpop.xlane.xlu0 %2199
        %v2201 = vsub.f32 %v1336, %v2074
        %v2202 = vsub.f32 %v1339, %v2076
        %v2203 = vsub.f32 %v1344, %v2078
        %v2204 = vsub.f32 %v1347, %v2080
        %v2205 = vsub.f32 %v1352, %v2082
        %v2206 = vsub.f32 %v1355, %v2084
        %v2207 = vsub.f32 %v1360, %v2086
        %v2208 = vsub.f32 %v1363, %v2088
        %v2209 = vsub.f32 %v1437, %v2090
        %v2210 = vsub.f32 %v1440, %v2092
        %v2211 = vsub.f32 %v1445, %v2094
        %v2212 = vsub.f32 %v1448, %v2096
        %v2213 = vsub.f32 %v1453, %v2098
        %v2214 = vsub.f32 %v1456, %v2100
        %v2215 = vsub.f32 %v1461, %v2102
        %v2216 = vsub.f32 %v1464, %v2104
        %v2217 = vsub.f32 %v1538, %v2106
        %v2218 = vsub.f32 %v1541, %v2108
        %v2219 = vsub.f32 %v1546, %v2110
        %v2220 = vsub.f32 %v1549, %v2112
        %v2221 = vsub.f32 %v1554, %v2114
        %v2222 = vsub.f32 %v1557, %v2116
        %v2223 = vsub.f32 %v1562, %v2118
        %v2224 = vsub.f32 %v1565, %v2120
        %v2225 = vsub.f32 %v1639, %v2122
        %v2226 = vsub.f32 %v1642, %v2124
        %v2227 = vsub.f32 %v1647, %v2126
        %v2228 = vsub.f32 %v1650, %v2128
        %v2229 = vsub.f32 %v1655, %v2130
        %v2230 = vsub.f32 %v1658, %v2132
        %v2231 = vsub.f32 %v1663, %v2134
        %v2232 = vsub.f32 %v1666, %v2136
        %v2233 = vsub.f32 %v1740, %v2138
        %v2234 = vsub.f32 %v1743, %v2140
        %v2235 = vsub.f32 %v1748, %v2142
        %v2236 = vsub.f32 %v1751, %v2144
        %v2237 = vsub.f32 %v1756, %v2146
        %v2238 = vsub.f32 %v1759, %v2148
        %v2239 = vsub.f32 %v1764, %v2150
        %v2240 = vsub.f32 %v1767, %v2152
        %v2241 = vsub.f32 %v1841, %v2154
        %v2242 = vsub.f32 %v1844, %v2156
        %v2243 = vsub.f32 %v1849, %v2158
        %v2244 = vsub.f32 %v1852, %v2160
        %v2245 = vsub.f32 %v1857, %v2162
        %v2246 = vsub.f32 %v1860, %v2164
        %v2247 = vsub.f32 %v1865, %v2166
        %v2248 = vsub.f32 %v1868, %v2168
        %v2249 = vsub.f32 %v1942, %v2170
        %v2250 = vsub.f32 %v1945, %v2172
        %v2251 = vsub.f32 %v1950, %v2174
        %v2252 = vsub.f32 %v1953, %v2176
        %v2253 = vsub.f32 %v1958, %v2178
        %v2254 = vsub.f32 %v1961, %v2180
        %v2255 = vsub.f32 %v1966, %v2182
        %v2256 = vsub.f32 %v1969, %v2184
        %v2257 = vsub.f32 %v2043, %v2186
        %v2258 = vsub.f32 %v2046, %v2188
        %v2259 = vsub.f32 %v2051, %v2190
        %v2260 = vsub.f32 %v2054, %v2192
        %v2261 = vsub.f32 %v2059, %v2194
        %v2262 = vsub.f32 %v2062, %v2196
        %v2263 = vsub.f32 %v2067, %v2198
        %v2264 = vsub.f32 %v2070, %v2200
        %v2265 = vmul.f32 %v2201, 1.442695
        %v2266 = vpow.pop %v2265
        %v2267 = vmul.f32 %v2202, 1.442695
        %v2268 = vpow.pop %v2267
        %v2269 = vmul.f32 %v2203, 1.442695
        %v2270 = vpow.pop %v2269
        %v2271 = vmul.f32 %v2204, 1.442695
        %v2272 = vpow.pop %v2271
        %v2273 = vmul.f32 %v2205, 1.442695
        %v2274 = vpow.pop %v2273
        %v2275 = vmul.f32 %v2206, 1.442695
        %v2276 = vpow.pop %v2275
        %v2277 = vmul.f32 %v2207, 1.442695
        %v2278 = vpow.pop %v2277
        %v2279 = vmul.f32 %v2208, 1.442695
        %v2280 = vpow.pop %v2279
        %v2281 = vmul.f32 %v2209, 1.442695
        %v2282 = vpow.pop %v2281
        %v2283 = vmul.f32 %v2210, 1.442695
        %v2284 = vpow.pop %v2283
        %v2285 = vmul.f32 %v2211, 1.442695
        %v2286 = vpow.pop %v2285
        %v2287 = vmul.f32 %v2212, 1.442695
        %v2288 = vpow.pop %v2287
        %v2289 = vmul.f32 %v2213, 1.442695
        %v2290 = vpow.pop %v2289
        %v2291 = vmul.f32 %v2214, 1.442695
        %v2292 = vpow.pop %v2291
        %v2293 = vmul.f32 %v2215, 1.442695
        %v2294 = vpow.pop %v2293
        %v2295 = vmul.f32 %v2216, 1.442695
        %v2296 = vpow.pop %v2295
        %v2297 = vmul.f32 %v2217, 1.442695
        %v2298 = vpow.pop %v2297
        %v2299 = vmul.f32 %v2218, 1.442695
        %v2300 = vpow.pop %v2299
        %v2301 = vmul.f32 %v2219, 1.442695
        %v2302 = vpow.pop %v2301
        %v2303 = vmul.f32 %v2220, 1.442695
        %v2304 = vpow.pop %v2303
        %v2305 = vmul.f32 %v2221, 1.442695
        %v2306 = vpow.pop %v2305
        %v2307 = vmul.f32 %v2222, 1.442695
        %v2308 = vpow.pop %v2307
        %v2309 = vmul.f32 %v2223, 1.442695
        %v2310 = vpow.pop %v2309
        %v2311 = vmul.f32 %v2224, 1.442695
        %v2312 = vpow.pop %v2311
        %v2313 = vmul.f32 %v2225, 1.442695
        %v2314 = vpow.pop %v2313
        %v2315 = vmul.f32 %v2226, 1.442695
        %v2316 = vpow.pop %v2315
        %v2317 = vmul.f32 %v2227, 1.442695
        %v2318 = vpow.pop %v2317
        %v2319 = vmul.f32 %v2228, 1.442695
        %v2320 = vpow.pop %v2319
        %v2321 = vmul.f32 %v2229, 1.442695
        %v2322 = vpow.pop %v2321
        %v2323 = vmul.f32 %v2230, 1.442695
        %v2324 = vpow.pop %v2323
        %v2325 = vmul.f32 %v2231, 1.442695
        %v2326 = vpow.pop %v2325
        %v2327 = vmul.f32 %v2232, 1.442695
        %v2328 = vpow.pop %v2327
        %v2329 = vmul.f32 %v2233, 1.442695
        %v2330 = vpow.pop %v2329
        %v2331 = vmul.f32 %v2234, 1.442695
        %v2332 = vpow.pop %v2331
        %v2333 = vmul.f32 %v2235, 1.442695
        %v2334 = vpow.pop %v2333
        %v2335 = vmul.f32 %v2236, 1.442695
        %v2336 = vpow.pop %v2335
        %v2337 = vmul.f32 %v2237, 1.442695
        %v2338 = vpow.pop %v2337
        %v2339 = vmul.f32 %v2238, 1.442695
        %v2340 = vpow.pop %v2339
        %v2341 = vmul.f32 %v2239, 1.442695
        %v2342 = vpow.pop %v2341
        %v2343 = vmul.f32 %v2240, 1.442695
        %v2344 = vpow.pop %v2343
        %v2345 = vmul.f32 %v2241, 1.442695
        %v2346 = vpow.pop %v2345
        %v2347 = vmul.f32 %v2242, 1.442695
        %v2348 = vpow.pop %v2347
        %v2349 = vmul.f32 %v2243, 1.442695
        %v2350 = vpow.pop %v2349
        %v2351 = vmul.f32 %v2244, 1.442695
        %v2352 = vpow.pop %v2351
        %v2353 = vmul.f32 %v2245, 1.442695
        %v2354 = vpow.pop %v2353
        %v2355 = vmul.f32 %v2246, 1.442695
        %v2356 = vpow.pop %v2355
        %v2357 = vmul.f32 %v2247, 1.442695
        %v2358 = vpow.pop %v2357
        %v2359 = vmul.f32 %v2248, 1.442695
        %v2360 = vpow.pop %v2359
        %v2361 = vmul.f32 %v2249, 1.442695
        %v2362 = vpow.pop %v2361
        %v2363 = vmul.f32 %v2250, 1.442695
        %v2364 = vpow.pop %v2363
        %v2365 = vmul.f32 %v2251, 1.442695
        %v2366 = vpow.pop %v2365
        %v2367 = vmul.f32 %v2252, 1.442695
        %v2368 = vpow.pop %v2367
        %v2369 = vmul.f32 %v2253, 1.442695
        %v2370 = vpow.pop %v2369
        %v2371 = vmul.f32 %v2254, 1.442695
        %v2372 = vpow.pop %v2371
        %v2373 = vmul.f32 %v2255, 1.442695
        %v2374 = vpow.pop %v2373
        %v2375 = vmul.f32 %v2256, 1.442695
        %v2376 = vpow.pop %v2375
        %v2377 = vmul.f32 %v2257, 1.442695
        %v2378 = vpow.pop %v2377
        %v2379 = vmul.f32 %v2258, 1.442695
        %v2380 = vpow.pop %v2379
        %v2381 = vmul.f32 %v2259, 1.442695
        %v2382 = vpow.pop %v2381
        %v2383 = vmul.f32 %v2260, 1.442695
        %v2384 = vpow.pop %v2383
        %v2385 = vmul.f32 %v2261, 1.442695
        %v2386 = vpow.pop %v2385
        %v2387 = vmul.f32 %v2262, 1.442695
        %v2388 = vpow.pop %v2387
        %v2389 = vmul.f32 %v2263, 1.442695
        %v2390 = vpow.pop %v2389
        %v2391 = vmul.f32 %v2264, 1.442695
        %v2392 = vpow.pop %v2391
        %2393 = vadd.xlane.f32.xlu0 %v2266
        %v2394 = vpop.xlane.xlu0 %2393
        %2395 = vadd.xlane.f32.xlu0 %v2268
        %v2396 = vpop.xlane.xlu0 %2395
        %2397 = vadd.xlane.f32.xlu0 %v2270
        %v2398 = vpop.xlane.xlu0 %2397
        %2399 = vadd.xlane.f32.xlu0 %v2272
        %v2400 = vpop.xlane.xlu0 %2399
        %2401 = vadd.xlane.f32.xlu0 %v2274
        %v2402 = vpop.xlane.xlu0 %2401
        %2403 = vadd.xlane.f32.xlu0 %v2276
        %v2404 = vpop.xlane.xlu0 %2403
        %2405 = vadd.xlane.f32.xlu0 %v2278
        %v2406 = vpop.xlane.xlu0 %2405
        %2407 = vadd.xlane.f32.xlu0 %v2280
        %v2408 = vpop.xlane.xlu0 %2407
        %2409 = vadd.xlane.f32.xlu0 %v2282
        %v2410 = vpop.xlane.xlu0 %2409
        %2411 = vadd.xlane.f32.xlu0 %v2284
        %v2412 = vpop.xlane.xlu0 %2411
        %2413 = vadd.xlane.f32.xlu0 %v2286
        %v2414 = vpop.xlane.xlu0 %2413
        %2415 = vadd.xlane.f32.xlu0 %v2288
        %v2416 = vpop.xlane.xlu0 %2415
        %2417 = vadd.xlane.f32.xlu0 %v2290
        %v2418 = vpop.xlane.xlu0 %2417
        %2419 = vadd.xlane.f32.xlu0 %v2292
        %v2420 = vpop.xlane.xlu0 %2419
        %2421 = vadd.xlane.f32.xlu0 %v2294
        %v2422 = vpop.xlane.xlu0 %2421
        %2423 = vadd.xlane.f32.xlu0 %v2296
        %v2424 = vpop.xlane.xlu0 %2423
        %2425 = vadd.xlane.f32.xlu0 %v2298
        %v2426 = vpop.xlane.xlu0 %2425
        %2427 = vadd.xlane.f32.xlu0 %v2300
        %v2428 = vpop.xlane.xlu0 %2427
        %2429 = vadd.xlane.f32.xlu0 %v2302
        %v2430 = vpop.xlane.xlu0 %2429
        %2431 = vadd.xlane.f32.xlu0 %v2304
        %v2432 = vpop.xlane.xlu0 %2431
        %2433 = vadd.xlane.f32.xlu0 %v2306
        %v2434 = vpop.xlane.xlu0 %2433
        %2435 = vadd.xlane.f32.xlu0 %v2308
        %v2436 = vpop.xlane.xlu0 %2435
        %2437 = vadd.xlane.f32.xlu0 %v2310
        %v2438 = vpop.xlane.xlu0 %2437
        %2439 = vadd.xlane.f32.xlu0 %v2312
        %v2440 = vpop.xlane.xlu0 %2439
        %2441 = vadd.xlane.f32.xlu0 %v2314
        %v2442 = vpop.xlane.xlu0 %2441
        %2443 = vadd.xlane.f32.xlu0 %v2316
        %v2444 = vpop.xlane.xlu0 %2443
        %2445 = vadd.xlane.f32.xlu0 %v2318
        %v2446 = vpop.xlane.xlu0 %2445
        %2447 = vadd.xlane.f32.xlu0 %v2320
        %v2448 = vpop.xlane.xlu0 %2447
        %2449 = vadd.xlane.f32.xlu0 %v2322
        %v2450 = vpop.xlane.xlu0 %2449
        %2451 = vadd.xlane.f32.xlu0 %v2324
        %v2452 = vpop.xlane.xlu0 %2451
        %2453 = vadd.xlane.f32.xlu0 %v2326
        %v2454 = vpop.xlane.xlu0 %2453
        %2455 = vadd.xlane.f32.xlu0 %v2328
        %v2456 = vpop.xlane.xlu0 %2455
        %2457 = vadd.xlane.f32.xlu0 %v2330
        %v2458 = vpop.xlane.xlu0 %2457
        %2459 = vadd.xlane.f32.xlu0 %v2332
        %v2460 = vpop.xlane.xlu0 %2459
        %2461 = vadd.xlane.f32.xlu0 %v2334
        %v2462 = vpop.xlane.xlu0 %2461
        %2463 = vadd.xlane.f32.xlu0 %v2336
        %v2464 = vpop.xlane.xlu0 %2463
        %2465 = vadd.xlane.f32.xlu0 %v2338
        %v2466 = vpop.xlane.xlu0 %2465
        %2467 = vadd.xlane.f32.xlu0 %v2340
        %v2468 = vpop.xlane.xlu0 %2467
        %2469 = vadd.xlane.f32.xlu0 %v2342
        %v2470 = vpop.xlane.xlu0 %2469
        %2471 = vadd.xlane.f32.xlu0 %v2344
        %v2472 = vpop.xlane.xlu0 %2471
        %2473 = vadd.xlane.f32.xlu0 %v2346
        %v2474 = vpop.xlane.xlu0 %2473
        %2475 = vadd.xlane.f32.xlu0 %v2348
        %v2476 = vpop.xlane.xlu0 %2475
        %2477 = vadd.xlane.f32.xlu0 %v2350
        %v2478 = vpop.xlane.xlu0 %2477
        %2479 = vadd.xlane.f32.xlu0 %v2352
        %v2480 = vpop.xlane.xlu0 %2479
        %2481 = vadd.xlane.f32.xlu0 %v2354
        %v2482 = vpop.xlane.xlu0 %2481
        %2483 = vadd.xlane.f32.xlu0 %v2356
        %v2484 = vpop.xlane.xlu0 %2483
        %2485 = vadd.xlane.f32.xlu0 %v2358
        %v2486 = vpop.xlane.xlu0 %2485
        %2487 = vadd.xlane.f32.xlu0 %v2360
        %v2488 = vpop.xlane.xlu0 %2487
        %2489 = vadd.xlane.f32.xlu0 %v2362
        %v2490 = vpop.xlane.xlu0 %2489
        %2491 = vadd.xlane.f32.xlu0 %v2364
        %v2492 = vpop.xlane.xlu0 %2491
        %2493 = vadd.xlane.f32.xlu0 %v2366
        %v2494 = vpop.xlane.xlu0 %2493
        %2495 = vadd.xlane.f32.xlu0 %v2368
        %v2496 = vpop.xlane.xlu0 %2495
        %2497 = vadd.xlane.f32.xlu0 %v2370
        %v2498 = vpop.xlane.xlu0 %2497
        %2499 = vadd.xlane.f32.xlu0 %v2372
        %v2500 = vpop.xlane.xlu0 %2499
        %2501 = vadd.xlane.f32.xlu0 %v2374
        %v2502 = vpop.xlane.xlu0 %2501
        %2503 = vadd.xlane.f32.xlu0 %v2376
        %v2504 = vpop.xlane.xlu0 %2503
        %2505 = vadd.xlane.f32.xlu0 %v2378
        %v2506 = vpop.xlane.xlu0 %2505
        %2507 = vadd.xlane.f32.xlu0 %v2380
        %v2508 = vpop.xlane.xlu0 %2507
        %2509 = vadd.xlane.f32.xlu0 %v2382
        %v2510 = vpop.xlane.xlu0 %2509
        %2511 = vadd.xlane.f32.xlu0 %v2384
        %v2512 = vpop.xlane.xlu0 %2511
        %2513 = vadd.xlane.f32.xlu0 %v2386
        %v2514 = vpop.xlane.xlu0 %2513
        %2515 = vadd.xlane.f32.xlu0 %v2388
        %v2516 = vpop.xlane.xlu0 %2515
        %2517 = vadd.xlane.f32.xlu0 %v2390
        %v2518 = vpop.xlane.xlu0 %2517
        %2519 = vadd.xlane.f32.xlu0 %v2392
        %v2520 = vpop.xlane.xlu0 %2519
        %v2521 = vrcp.pop %v2394
        %v2522 = vrcp.pop %v2396
        %v2523 = vrcp.pop %v2398
        %v2524 = vrcp.pop %v2400
        %v2525 = vrcp.pop %v2402
        %v2526 = vrcp.pop %v2404
        %v2527 = vrcp.pop %v2406
        %v2528 = vrcp.pop %v2408
        %v2529 = vrcp.pop %v2410
        %v2530 = vrcp.pop %v2412
        %v2531 = vrcp.pop %v2414
        %v2532 = vrcp.pop %v2416
        %v2533 = vrcp.pop %v2418
        %v2534 = vrcp.pop %v2420
        %v2535 = vrcp.pop %v2422
        %v2536 = vrcp.pop %v2424
        %v2537 = vrcp.pop %v2426
        %v2538 = vrcp.pop %v2428
        %v2539 = vrcp.pop %v2430
        %v2540 = vrcp.pop %v2432
        %v2541 = vrcp.pop %v2434
        %v2542 = vrcp.pop %v2436
        %v2543 = vrcp.pop %v2438
        %v2544 = vrcp.pop %v2440
        %v2545 = vrcp.pop %v2442
        %v2546 = vrcp.pop %v2444
        %v2547 = vrcp.pop %v2446
        %v2548 = vrcp.pop %v2448
        %v2549 = vrcp.pop %v2450
        %v2550 = vrcp.pop %v2452
        %v2551 = vrcp.pop %v2454
        %v2552 = vrcp.pop %v2456
        %v2553 = vrcp.pop %v2458
        %v2554 = vrcp.pop %v2460
        %v2555 = vrcp.pop %v2462
        %v2556 = vrcp.pop %v2464
        %v2557 = vrcp.pop %v2466
        %v2558 = vrcp.pop %v2468
        %v2559 = vrcp.pop %v2470
        %v2560 = vrcp.pop %v2472
        %v2561 = vrcp.pop %v2474
        %v2562 = vrcp.pop %v2476
        %v2563 = vrcp.pop %v2478
        %v2564 = vrcp.pop %v2480
        %v2565 = vrcp.pop %v2482
        %v2566 = vrcp.pop %v2484
        %v2567 = vrcp.pop %v2486
        %v2568 = vrcp.pop %v2488
        %v2569 = vrcp.pop %v2490
        %v2570 = vrcp.pop %v2492
        %v2571 = vrcp.pop %v2494
        %v2572 = vrcp.pop %v2496
        %v2573 = vrcp.pop %v2498
        %v2574 = vrcp.pop %v2500
        %v2575 = vrcp.pop %v2502
        %v2576 = vrcp.pop %v2504
        %v2577 = vrcp.pop %v2506
        %v2578 = vrcp.pop %v2508
        %v2579 = vrcp.pop %v2510
        %v2580 = vrcp.pop %v2512
        %v2581 = vrcp.pop %v2514
        %v2582 = vrcp.pop %v2516
        %v2583 = vrcp.pop %v2518
        %v2584 = vrcp.pop %v2520
        %v2585 = vmul.f32 %v2266, %v2521
        %v2586 = vmul.f32 %v2268, %v2522
        %v2587 = vmul.f32 %v2270, %v2523
        %v2588 = vmul.f32 %v2272, %v2524
        %v2589 = vmul.f32 %v2274, %v2525
        %v2590 = vmul.f32 %v2276, %v2526
        %v2591 = vmul.f32 %v2278, %v2527
        %v2592 = vmul.f32 %v2280, %v2528
        %v2593 = vmul.f32 %v2282, %v2529
        %v2594 = vmul.f32 %v2284, %v2530
        %v2595 = vmul.f32 %v2286, %v2531
        %v2596 = vmul.f32 %v2288, %v2532
        %v2597 = vmul.f32 %v2290, %v2533
        %v2598 = vmul.f32 %v2292, %v2534
        %v2599 = vmul.f32 %v2294, %v2535
        %v2600 = vmul.f32 %v2296, %v2536
        %v2601 = vmul.f32 %v2298, %v2537
        %v2602 = vmul.f32 %v2300, %v2538
        %v2603 = vmul.f32 %v2302, %v2539
        %v2604 = vmul.f32 %v2304, %v2540
        %v2605 = vmul.f32 %v2306, %v2541
        %v2606 = vmul.f32 %v2308, %v2542
        %v2607 = vmul.f32 %v2310, %v2543
        %v2608 = vmul.f32 %v2312, %v2544
        %v2609 = vmul.f32 %v2314, %v2545
        %v2610 = vmul.f32 %v2316, %v2546
        %v2611 = vmul.f32 %v2318, %v2547
        %v2612 = vmul.f32 %v2320, %v2548
        %v2613 = vmul.f32 %v2322, %v2549
        %v2614 = vmul.f32 %v2324, %v2550
        %v2615 = vmul.f32 %v2326, %v2551
        %v2616 = vmul.f32 %v2328, %v2552
        %v2617 = vmul.f32 %v2330, %v2553
        %v2618 = vmul.f32 %v2332, %v2554
        %v2619 = vmul.f32 %v2334, %v2555
        %v2620 = vmul.f32 %v2336, %v2556
        %v2621 = vmul.f32 %v2338, %v2557
        %v2622 = vmul.f32 %v2340, %v2558
        %v2623 = vmul.f32 %v2342, %v2559
        %v2624 = vmul.f32 %v2344, %v2560
        %v2625 = vmul.f32 %v2346, %v2561
        %v2626 = vmul.f32 %v2348, %v2562
        %v2627 = vmul.f32 %v2350, %v2563
        %v2628 = vmul.f32 %v2352, %v2564
        %v2629 = vmul.f32 %v2354, %v2565
        %v2630 = vmul.f32 %v2356, %v2566
        %v2631 = vmul.f32 %v2358, %v2567
        %v2632 = vmul.f32 %v2360, %v2568
        %v2633 = vmul.f32 %v2362, %v2569
        %v2634 = vmul.f32 %v2364, %v2570
        %v2635 = vmul.f32 %v2366, %v2571
        %v2636 = vmul.f32 %v2368, %v2572
        %v2637 = vmul.f32 %v2370, %v2573
        %v2638 = vmul.f32 %v2372, %v2574
        %v2639 = vmul.f32 %v2374, %v2575
        %v2640 = vmul.f32 %v2376, %v2576
        %v2641 = vmul.f32 %v2378, %v2577
        %v2642 = vmul.f32 %v2380, %v2578
        %v2643 = vmul.f32 %v2382, %v2579
        %v2644 = vmul.f32 %v2384, %v2580
        %v2645 = vmul.f32 %v2386, %v2581
        %v2646 = vmul.f32 %v2388, %v2582
        %v2647 = vmul.f32 %v2390, %v2583
        %v2648 = vmul.f32 %v2392, %v2584
        %v2649 = vpack.c.bf16 %v2586, %v2585
        %v2650 = vpack.c.bf16 %v2588, %v2587
        %v2651 = vpack.c.bf16 %v2590, %v2589
        %v2652 = vpack.c.bf16 %v2592, %v2591
        %v2653 = vpack.c.bf16 %v2594, %v2593
        %v2654 = vpack.c.bf16 %v2596, %v2595
        %v2655 = vpack.c.bf16 %v2598, %v2597
        %v2656 = vpack.c.bf16 %v2600, %v2599
        %v2657 = vpack.c.bf16 %v2602, %v2601
        %v2658 = vpack.c.bf16 %v2604, %v2603
        %v2659 = vpack.c.bf16 %v2606, %v2605
        %v2660 = vpack.c.bf16 %v2608, %v2607
        %v2661 = vpack.c.bf16 %v2610, %v2609
        %v2662 = vpack.c.bf16 %v2612, %v2611
        %v2663 = vpack.c.bf16 %v2614, %v2613
        %v2664 = vpack.c.bf16 %v2616, %v2615
        %v2665 = vpack.c.bf16 %v2618, %v2617
        %v2666 = vpack.c.bf16 %v2620, %v2619
        %v2667 = vpack.c.bf16 %v2622, %v2621
        %v2668 = vpack.c.bf16 %v2624, %v2623
        %v2669 = vpack.c.bf16 %v2626, %v2625
        %v2670 = vpack.c.bf16 %v2628, %v2627
        %v2671 = vpack.c.bf16 %v2630, %v2629
        %v2672 = vpack.c.bf16 %v2632, %v2631
        %v2673 = vpack.c.bf16 %v2634, %v2633
        %v2674 = vpack.c.bf16 %v2636, %v2635
        %v2675 = vpack.c.bf16 %v2638, %v2637
        %v2676 = vpack.c.bf16 %v2640, %v2639
        %v2677 = vpack.c.bf16 %v2642, %v2641
        %v2678 = vpack.c.bf16 %v2644, %v2643
        %v2679 = vpack.c.bf16 %v2646, %v2645
        %v2680 = vpack.c.bf16 %v2648, %v2647
        %2681 = vmatprep.subr.bf16.mxu0 0
        %2682 = vmatpush1.bf16.msra.mxu0 %v907
        %2683 = vmatprep.subr.bf16.mxu0 0
        %2684 = vmatpush1.bf16.msra.mxu0 %v905
        %2685 = vmatprep.subr.bf16.mxu0 0
        %2686 = vmatpush1.bf16.msra.mxu0 %v903
        %2687 = vmatprep.subr.bf16.mxu0 0
        %2688 = vmatpush1.bf16.msra.mxu0 %v901
        %2689 = vmatprep.subr.bf16.mxu0 0
        %2690 = vmatpush1.bf16.msra.mxu0 %v899
        %2691 = vmatprep.subr.bf16.mxu0 0
        %2692 = vmatpush1.bf16.msra.mxu0 %v897
        %2693 = vmatprep.subr.bf16.mxu0 0
        %2694 = vmatpush1.bf16.msra.mxu0 %v895
        %2695 = vmatprep.subr.bf16.mxu0 0
        %2696 = vmatpush1.bf16.msra.mxu0 %v893
        %2697 = vmatprep.subr.bf16.mxu0 0
        %2698 = vmatpush2.bf16.msra.mxu0 0
        %2699 = vmatprep.subr.bf16.mxu0 0
        %2700 = vmatpush2.bf16.msra.mxu0 0
        %2701 = vmatprep.subr.bf16.mxu0 0
        %2702 = vmatpush2.bf16.msra.mxu0 0
        %2703 = vmatprep.subr.bf16.mxu0 0
        %2704 = vmatpush2.bf16.msra.mxu0 0
        %2705 = vmatprep.subr.bf16.mxu0 0
        %2706 = vmatpush2.bf16.msra.mxu0 0
        %2707 = vmatprep.subr.bf16.mxu0 0
        %2708 = vmatpush2.bf16.msra.mxu0 0
        %2709 = vmatprep.subr.bf16.mxu0 0
        %2710 = vmatpush2.bf16.msra.mxu0 0
        %2711 = vmatprep.subr.bf16.mxu0 0
        %2712 = vmatpush2.bf16.msra.mxu0 0
        %2713 = vmatprep.mubr.bf16.mxu0 0
        %2714 = vmatmul.mubr.bf16.gmra.mxu0 %v2649
        %v2715 = vpop.f32.mrf.mxu0
        %v2716 = vadd.f32 0.0, %v2715
        %v2717 = vpop.f32.mrf.mxu0
        %v2718 = vpop.f32.mrf.mxu0
        %v2719 = vadd.f32 0.0, %v2718
        %v2720 = vpop.f32.mrf.mxu0
        %2721 = vmatprep.mubr.bf16.mxu0 0
        %2722 = vmatmul.mubr.bf16.gmra.mxu0 %v2650
        %v2723 = vpop.f32.mrf.mxu0
        %v2724 = vadd.f32 0.0, %v2723
        %v2725 = vpop.f32.mrf.mxu0
        %v2726 = vpop.f32.mrf.mxu0
        %v2727 = vadd.f32 0.0, %v2726
        %v2728 = vpop.f32.mrf.mxu0
        %2729 = vmatprep.mubr.bf16.mxu0 0
        %2730 = vmatmul.mubr.bf16.gmra.mxu0 %v2651
        %v2731 = vpop.f32.mrf.mxu0
        %v2732 = vadd.f32 0.0, %v2731
        %v2733 = vpop.f32.mrf.mxu0
        %v2734 = vpop.f32.mrf.mxu0
        %v2735 = vadd.f32 0.0, %v2734
        %v2736 = vpop.f32.mrf.mxu0
        %2737 = vmatprep.mubr.bf16.mxu0 0
        %2738 = vmatmul.mubr.bf16.gmra.mxu0 %v2652
        %v2739 = vpop.f32.mrf.mxu0
        %v2740 = vadd.f32 0.0, %v2739
        %v2741 = vpop.f32.mrf.mxu0
        %v2742 = vpop.f32.mrf.mxu0
        %v2743 = vadd.f32 0.0, %v2742
        %v2744 = vpop.f32.mrf.mxu0
        %2745 = vdwg.mxu0
        %2746 = vmatprep.subr.bf16.mxu0 0
        %2747 = vmatpush1.bf16.msra.mxu0 %v1111
        %2748 = vmatprep.subr.bf16.mxu0 0
        %2749 = vmatpush1.bf16.msra.mxu0 %v1109
        %2750 = vmatprep.subr.bf16.mxu0 0
        %2751 = vmatpush1.bf16.msra.mxu0 %v1107
        %2752 = vmatprep.subr.bf16.mxu0 0
        %2753 = vmatpush1.bf16.msra.mxu0 %v1105
        %2754 = vmatprep.subr.bf16.mxu0 0
        %2755 = vmatpush1.bf16.msra.mxu0 %v1103
        %2756 = vmatprep.subr.bf16.mxu0 0
        %2757 = vmatpush1.bf16.msra.mxu0 %v1101
        %2758 = vmatprep.subr.bf16.mxu0 0
        %2759 = vmatpush1.bf16.msra.mxu0 %v1099
        %2760 = vmatprep.subr.bf16.mxu0 0
        %2761 = vmatpush1.bf16.msra.mxu0 %v1097
        %2762 = vmatprep.subr.bf16.mxu0 0
        %2763 = vmatpush2.bf16.msra.mxu0 0
        %2764 = vmatprep.subr.bf16.mxu0 0
        %2765 = vmatpush2.bf16.msra.mxu0 0
        %2766 = vmatprep.subr.bf16.mxu0 0
        %2767 = vmatpush2.bf16.msra.mxu0 0
        %2768 = vmatprep.subr.bf16.mxu0 0
        %2769 = vmatpush2.bf16.msra.mxu0 0
        %2770 = vmatprep.subr.bf16.mxu0 0
        %2771 = vmatpush2.bf16.msra.mxu0 0
        %2772 = vmatprep.subr.bf16.mxu0 0
        %2773 = vmatpush2.bf16.msra.mxu0 0
        %2774 = vmatprep.subr.bf16.mxu0 0
        %2775 = vmatpush2.bf16.msra.mxu0 0
        %2776 = vmatprep.subr.bf16.mxu0 0
        %2777 = vmatpush2.bf16.msra.mxu0 0
        %2778 = vmatprep.mubr.bf16.mxu0 0
        %2779 = vmatmul.mubr.bf16.gmra.mxu0 %v2653
        %v2780 = vpop.f32.mrf.mxu0
        %v2781 = vadd.f32 0.0, %v2780
        %v2782 = vpop.f32.mrf.mxu0
        %v2783 = vpop.f32.mrf.mxu0
        %v2784 = vadd.f32 0.0, %v2783
        %v2785 = vpop.f32.mrf.mxu0
        %2786 = vmatprep.mubr.bf16.mxu0 0
        %2787 = vmatmul.mubr.bf16.gmra.mxu0 %v2654
        %v2788 = vpop.f32.mrf.mxu0
        %v2789 = vadd.f32 0.0, %v2788
        %v2790 = vpop.f32.mrf.mxu0
        %v2791 = vpop.f32.mrf.mxu0
        %v2792 = vadd.f32 0.0, %v2791
        %v2793 = vpop.f32.mrf.mxu0
        %2794 = vmatprep.mubr.bf16.mxu0 0
        %2795 = vmatmul.mubr.bf16.gmra.mxu0 %v2655
        %v2796 = vpop.f32.mrf.mxu0
        %v2797 = vadd.f32 0.0, %v2796
        %v2798 = vpop.f32.mrf.mxu0
        %v2799 = vpop.f32.mrf.mxu0
        %v2800 = vadd.f32 0.0, %v2799
        %v2801 = vpop.f32.mrf.mxu0
        %2802 = vmatprep.mubr.bf16.mxu0 0
        %2803 = vmatmul.mubr.bf16.gmra.mxu0 %v2656
        %v2804 = vpop.f32.mrf.mxu0
        %v2805 = vadd.f32 0.0, %v2804
        %v2806 = vpop.f32.mrf.mxu0
        %v2807 = vpop.f32.mrf.mxu0
        %v2808 = vadd.f32 0.0, %v2807
        %v2809 = vpop.f32.mrf.mxu0
        %2810 = vdwg.mxu0
        %2811 = vmatprep.subr.bf16.mxu0 0
        %2812 = vmatpush1.bf16.msra.mxu0 %v1135
        %2813 = vmatprep.subr.bf16.mxu0 0
        %2814 = vmatpush1.bf16.msra.mxu0 %v1133
        %2815 = vmatprep.subr.bf16.mxu0 0
        %2816 = vmatpush1.bf16.msra.mxu0 %v1131
        %2817 = vmatprep.subr.bf16.mxu0 0
        %2818 = vmatpush1.bf16.msra.mxu0 %v1129
        %2819 = vmatprep.subr.bf16.mxu0 0
        %2820 = vmatpush1.bf16.msra.mxu0 %v1127
        %2821 = vmatprep.subr.bf16.mxu0 0
        %2822 = vmatpush1.bf16.msra.mxu0 %v1125
        %2823 = vmatprep.subr.bf16.mxu0 0
        %2824 = vmatpush1.bf16.msra.mxu0 %v1123
        %2825 = vmatprep.subr.bf16.mxu0 0
        %2826 = vmatpush1.bf16.msra.mxu0 %v1121
        %2827 = vmatprep.subr.bf16.mxu0 0
        %2828 = vmatpush2.bf16.msra.mxu0 0
        %2829 = vmatprep.subr.bf16.mxu0 0
        %2830 = vmatpush2.bf16.msra.mxu0 0
        %2831 = vmatprep.subr.bf16.mxu0 0
        %2832 = vmatpush2.bf16.msra.mxu0 0
        %2833 = vmatprep.subr.bf16.mxu0 0
        %2834 = vmatpush2.bf16.msra.mxu0 0
        %2835 = vmatprep.subr.bf16.mxu0 0
        %2836 = vmatpush2.bf16.msra.mxu0 0
        %2837 = vmatprep.subr.bf16.mxu0 0
        %2838 = vmatpush2.bf16.msra.mxu0 0
        %2839 = vmatprep.subr.bf16.mxu0 0
        %2840 = vmatpush2.bf16.msra.mxu0 0
        %2841 = vmatprep.subr.bf16.mxu0 0
        %2842 = vmatpush2.bf16.msra.mxu0 0
        %2843 = vmatprep.mubr.bf16.mxu0 0
        %2844 = vmatmul.mubr.bf16.gmra.mxu0 %v2657
        %v2845 = vpop.f32.mrf.mxu0
        %v2846 = vadd.f32 0.0, %v2845
        %v2847 = vpop.f32.mrf.mxu0
        %v2848 = vpop.f32.mrf.mxu0
        %v2849 = vadd.f32 0.0, %v2848
        %v2850 = vpop.f32.mrf.mxu0
        %2851 = vmatprep.mubr.bf16.mxu0 0
        %2852 = vmatmul.mubr.bf16.gmra.mxu0 %v2658
        %v2853 = vpop.f32.mrf.mxu0
        %v2854 = vadd.f32 0.0, %v2853
        %v2855 = vpop.f32.mrf.mxu0
        %v2856 = vpop.f32.mrf.mxu0
        %v2857 = vadd.f32 0.0, %v2856
        %v2858 = vpop.f32.mrf.mxu0
        %2859 = vmatprep.mubr.bf16.mxu0 0
        %2860 = vmatmul.mubr.bf16.gmra.mxu0 %v2659
        %v2861 = vpop.f32.mrf.mxu0
        %v2862 = vadd.f32 0.0, %v2861
        %v2863 = vpop.f32.mrf.mxu0
        %v2864 = vpop.f32.mrf.mxu0
        %v2865 = vadd.f32 0.0, %v2864
        %v2866 = vpop.f32.mrf.mxu0
        %2867 = vmatprep.mubr.bf16.mxu0 0
        %2868 = vmatmul.mubr.bf16.gmra.mxu0 %v2660
        %v2869 = vpop.f32.mrf.mxu0
        %v2870 = vadd.f32 0.0, %v2869
        %v2871 = vpop.f32.mrf.mxu0
        %v2872 = vpop.f32.mrf.mxu0
        %v2873 = vadd.f32 0.0, %v2872
        %v2874 = vpop.f32.mrf.mxu0
        %2875 = vdwg.mxu0
        %2876 = vmatprep.subr.bf16.mxu0 0
        %2877 = vmatpush1.bf16.msra.mxu0 %v1159
        %2878 = vmatprep.subr.bf16.mxu0 0
        %2879 = vmatpush1.bf16.msra.mxu0 %v1157
        %2880 = vmatprep.subr.bf16.mxu0 0
        %2881 = vmatpush1.bf16.msra.mxu0 %v1155
        %2882 = vmatprep.subr.bf16.mxu0 0
        %2883 = vmatpush1.bf16.msra.mxu0 %v1153
        %2884 = vmatprep.subr.bf16.mxu0 0
        %2885 = vmatpush1.bf16.msra.mxu0 %v1151
        %2886 = vmatprep.subr.bf16.mxu0 0
        %2887 = vmatpush1.bf16.msra.mxu0 %v1149
        %2888 = vmatprep.subr.bf16.mxu0 0
        %2889 = vmatpush1.bf16.msra.mxu0 %v1147
        %2890 = vmatprep.subr.bf16.mxu0 0
        %2891 = vmatpush1.bf16.msra.mxu0 %v1145
        %2892 = vmatprep.subr.bf16.mxu0 0
        %2893 = vmatpush2.bf16.msra.mxu0 0
        %2894 = vmatprep.subr.bf16.mxu0 0
        %2895 = vmatpush2.bf16.msra.mxu0 0
        %2896 = vmatprep.subr.bf16.mxu0 0
        %2897 = vmatpush2.bf16.msra.mxu0 0
        %2898 = vmatprep.subr.bf16.mxu0 0
        %2899 = vmatpush2.bf16.msra.mxu0 0
        %2900 = vmatprep.subr.bf16.mxu0 0
        %2901 = vmatpush2.bf16.msra.mxu0 0
        %2902 = vmatprep.subr.bf16.mxu0 0
        %2903 = vmatpush2.bf16.msra.mxu0 0
        %2904 = vmatprep.subr.bf16.mxu0 0
        %2905 = vmatpush2.bf16.msra.mxu0 0
        %2906 = vmatprep.subr.bf16.mxu0 0
        %2907 = vmatpush2.bf16.msra.mxu0 0
        %2908 = vmatprep.mubr.bf16.mxu0 0
        %2909 = vmatmul.mubr.bf16.gmra.mxu0 %v2661
        %v2910 = vpop.f32.mrf.mxu0
        %v2911 = vadd.f32 0.0, %v2910
        %v2912 = vpop.f32.mrf.mxu0
        %v2913 = vpop.f32.mrf.mxu0
        %v2914 = vadd.f32 0.0, %v2913
        %v2915 = vpop.f32.mrf.mxu0
        %2916 = vmatprep.mubr.bf16.mxu0 0
        %2917 = vmatmul.mubr.bf16.gmra.mxu0 %v2662
        %v2918 = vpop.f32.mrf.mxu0
        %v2919 = vadd.f32 0.0, %v2918
        %v2920 = vpop.f32.mrf.mxu0
        %v2921 = vpop.f32.mrf.mxu0
        %v2922 = vadd.f32 0.0, %v2921
        %v2923 = vpop.f32.mrf.mxu0
        %2924 = vmatprep.mubr.bf16.mxu0 0
        %2925 = vmatmul.mubr.bf16.gmra.mxu0 %v2663
        %v2926 = vpop.f32.mrf.mxu0
        %v2927 = vadd.f32 0.0, %v2926
        %v2928 = vpop.f32.mrf.mxu0
        %v2929 = vpop.f32.mrf.mxu0
        %v2930 = vadd.f32 0.0, %v2929
        %v2931 = vpop.f32.mrf.mxu0
        %2932 = vmatprep.mubr.bf16.mxu0 0
        %2933 = vmatmul.mubr.bf16.gmra.mxu0 %v2664
        %v2934 = vpop.f32.mrf.mxu0
        %v2935 = vadd.f32 0.0, %v2934
        %v2936 = vpop.f32.mrf.mxu0
        %v2937 = vpop.f32.mrf.mxu0
        %v2938 = vadd.f32 0.0, %v2937
        %v2939 = vpop.f32.mrf.mxu0
        %2940 = vdwg.mxu0
        %2941 = vmatprep.subr.bf16.mxu0 0
        %2942 = vmatpush1.bf16.msra.mxu0 %v1183
        %2943 = vmatprep.subr.bf16.mxu0 0
        %2944 = vmatpush1.bf16.msra.mxu0 %v1181
        %2945 = vmatprep.subr.bf16.mxu0 0
        %2946 = vmatpush1.bf16.msra.mxu0 %v1179
        %2947 = vmatprep.subr.bf16.mxu0 0
        %2948 = vmatpush1.bf16.msra.mxu0 %v1177
        %2949 = vmatprep.subr.bf16.mxu0 0
        %2950 = vmatpush1.bf16.msra.mxu0 %v1175
        %2951 = vmatprep.subr.bf16.mxu0 0
        %2952 = vmatpush1.bf16.msra.mxu0 %v1173
        %2953 = vmatprep.subr.bf16.mxu0 0
        %2954 = vmatpush1.bf16.msra.mxu0 %v1171
        %2955 = vmatprep.subr.bf16.mxu0 0
        %2956 = vmatpush1.bf16.msra.mxu0 %v1169
        %2957 = vmatprep.subr.bf16.mxu0 0
        %2958 = vmatpush2.bf16.msra.mxu0 0
        %2959 = vmatprep.subr.bf16.mxu0 0
        %2960 = vmatpush2.bf16.msra.mxu0 0
        %2961 = vmatprep.subr.bf16.mxu0 0
        %2962 = vmatpush2.bf16.msra.mxu0 0
        %2963 = vmatprep.subr.bf16.mxu0 0
        %2964 = vmatpush2.bf16.msra.mxu0 0
        %2965 = vmatprep.subr.bf16.mxu0 0
        %2966 = vmatpush2.bf16.msra.mxu0 0
        %2967 = vmatprep.subr.bf16.mxu0 0
        %2968 = vmatpush2.bf16.msra.mxu0 0
        %2969 = vmatprep.subr.bf16.mxu0 0
        %2970 = vmatpush2.bf16.msra.mxu0 0
        %2971 = vmatprep.subr.bf16.mxu0 0
        %2972 = vmatpush2.bf16.msra.mxu0 0
        %2973 = vmatprep.mubr.bf16.mxu0 0
        %2974 = vmatmul.mubr.bf16.gmra.mxu0 %v2665
        %v2975 = vpop.f32.mrf.mxu0
        %v2976 = vadd.f32 0.0, %v2975
        %v2977 = vpop.f32.mrf.mxu0
        %v2978 = vpop.f32.mrf.mxu0
        %v2979 = vadd.f32 0.0, %v2978
        %v2980 = vpop.f32.mrf.mxu0
        %2981 = vmatprep.mubr.bf16.mxu0 0
        %2982 = vmatmul.mubr.bf16.gmra.mxu0 %v2666
        %v2983 = vpop.f32.mrf.mxu0
        %v2984 = vadd.f32 0.0, %v2983
        %v2985 = vpop.f32.mrf.mxu0
        %v2986 = vpop.f32.mrf.mxu0
        %v2987 = vadd.f32 0.0, %v2986
        %v2988 = vpop.f32.mrf.mxu0
        %2989 = vmatprep.mubr.bf16.mxu0 0
        %2990 = vmatmul.mubr.bf16.gmra.mxu0 %v2667
        %v2991 = vpop.f32.mrf.mxu0
        %v2992 = vadd.f32 0.0, %v2991
        %v2993 = vpop.f32.mrf.mxu0
        %v2994 = vpop.f32.mrf.mxu0
        %v2995 = vadd.f32 0.0, %v2994
        %v2996 = vpop.f32.mrf.mxu0
        %2997 = vmatprep.mubr.bf16.mxu0 0
        %2998 = vmatmul.mubr.bf16.gmra.mxu0 %v2668
        %v2999 = vpop.f32.mrf.mxu0
        %v3000 = vadd.f32 0.0, %v2999
        %v3001 = vpop.f32.mrf.mxu0
        %v3002 = vpop.f32.mrf.mxu0
        %v3003 = vadd.f32 0.0, %v3002
        %v3004 = vpop.f32.mrf.mxu0
        %3005 = vdwg.mxu0
        %3006 = vmatprep.subr.bf16.mxu0 0
        %3007 = vmatpush1.bf16.msra.mxu0 %v1207
        %3008 = vmatprep.subr.bf16.mxu0 0
        %3009 = vmatpush1.bf16.msra.mxu0 %v1205
        %3010 = vmatprep.subr.bf16.mxu0 0
        %3011 = vmatpush1.bf16.msra.mxu0 %v1203
        %3012 = vmatprep.subr.bf16.mxu0 0
        %3013 = vmatpush1.bf16.msra.mxu0 %v1201
        %3014 = vmatprep.subr.bf16.mxu0 0
        %3015 = vmatpush1.bf16.msra.mxu0 %v1199
        %3016 = vmatprep.subr.bf16.mxu0 0
        %3017 = vmatpush1.bf16.msra.mxu0 %v1197
        %3018 = vmatprep.subr.bf16.mxu0 0
        %3019 = vmatpush1.bf16.msra.mxu0 %v1195
        %3020 = vmatprep.subr.bf16.mxu0 0
        %3021 = vmatpush1.bf16.msra.mxu0 %v1193
        %3022 = vmatprep.subr.bf16.mxu0 0
        %3023 = vmatpush2.bf16.msra.mxu0 0
        %3024 = vmatprep.subr.bf16.mxu0 0
        %3025 = vmatpush2.bf16.msra.mxu0 0
        %3026 = vmatprep.subr.bf16.mxu0 0
        %3027 = vmatpush2.bf16.msra.mxu0 0
        %3028 = vmatprep.subr.bf16.mxu0 0
        %3029 = vmatpush2.bf16.msra.mxu0 0
        %3030 = vmatprep.subr.bf16.mxu0 0
        %3031 = vmatpush2.bf16.msra.mxu0 0
        %3032 = vmatprep.subr.bf16.mxu0 0
        %3033 = vmatpush2.bf16.msra.mxu0 0
        %3034 = vmatprep.subr.bf16.mxu0 0
        %3035 = vmatpush2.bf16.msra.mxu0 0
        %3036 = vmatprep.subr.bf16.mxu0 0
        %3037 = vmatpush2.bf16.msra.mxu0 0
        %3038 = vmatprep.mubr.bf16.mxu0 0
        %3039 = vmatmul.mubr.bf16.gmra.mxu0 %v2669
        %v3040 = vpop.f32.mrf.mxu0
        %v3041 = vadd.f32 0.0, %v3040
        %v3042 = vpop.f32.mrf.mxu0
        %v3043 = vpop.f32.mrf.mxu0
        %v3044 = vadd.f32 0.0, %v3043
        %v3045 = vpop.f32.mrf.mxu0
        %3046 = vmatprep.mubr.bf16.mxu0 0
        %3047 = vmatmul.mubr.bf16.gmra.mxu0 %v2670
        %v3048 = vpop.f32.mrf.mxu0
        %v3049 = vadd.f32 0.0, %v3048
        %v3050 = vpop.f32.mrf.mxu0
        %v3051 = vpop.f32.mrf.mxu0
        %v3052 = vadd.f32 0.0, %v3051
        %v3053 = vpop.f32.mrf.mxu0
        %3054 = vmatprep.mubr.bf16.mxu0 0
        %3055 = vmatmul.mubr.bf16.gmra.mxu0 %v2671
        %v3056 = vpop.f32.mrf.mxu0
        %v3057 = vadd.f32 0.0, %v3056
        %v3058 = vpop.f32.mrf.mxu0
        %v3059 = vpop.f32.mrf.mxu0
        %v3060 = vadd.f32 0.0, %v3059
        %v3061 = vpop.f32.mrf.mxu0
        %3062 = vmatprep.mubr.bf16.mxu0 0
        %3063 = vmatmul.mubr.bf16.gmra.mxu0 %v2672
        %v3064 = vpop.f32.mrf.mxu0
        %v3065 = vadd.f32 0.0, %v3064
        %v3066 = vpop.f32.mrf.mxu0
        %v3067 = vpop.f32.mrf.mxu0
        %v3068 = vadd.f32 0.0, %v3067
        %v3069 = vpop.f32.mrf.mxu0
        %3070 = vdwg.mxu0
        %3071 = vmatprep.subr.bf16.mxu0 0
        %3072 = vmatpush1.bf16.msra.mxu0 %v1231
        %3073 = vmatprep.subr.bf16.mxu0 0
        %3074 = vmatpush1.bf16.msra.mxu0 %v1229
        %3075 = vmatprep.subr.bf16.mxu0 0
        %3076 = vmatpush1.bf16.msra.mxu0 %v1227
        %3077 = vmatprep.subr.bf16.mxu0 0
        %3078 = vmatpush1.bf16.msra.mxu0 %v1225
        %3079 = vmatprep.subr.bf16.mxu0 0
        %3080 = vmatpush1.bf16.msra.mxu0 %v1223
        %3081 = vmatprep.subr.bf16.mxu0 0
        %3082 = vmatpush1.bf16.msra.mxu0 %v1221
        %3083 = vmatprep.subr.bf16.mxu0 0
        %3084 = vmatpush1.bf16.msra.mxu0 %v1219
        %3085 = vmatprep.subr.bf16.mxu0 0
        %3086 = vmatpush1.bf16.msra.mxu0 %v1217
        %3087 = vmatprep.subr.bf16.mxu0 0
        %3088 = vmatpush2.bf16.msra.mxu0 0
        %3089 = vmatprep.subr.bf16.mxu0 0
        %3090 = vmatpush2.bf16.msra.mxu0 0
        %3091 = vmatprep.subr.bf16.mxu0 0
        %3092 = vmatpush2.bf16.msra.mxu0 0
        %3093 = vmatprep.subr.bf16.mxu0 0
        %3094 = vmatpush2.bf16.msra.mxu0 0
        %3095 = vmatprep.subr.bf16.mxu0 0
        %3096 = vmatpush2.bf16.msra.mxu0 0
        %3097 = vmatprep.subr.bf16.mxu0 0
        %3098 = vmatpush2.bf16.msra.mxu0 0
        %3099 = vmatprep.subr.bf16.mxu0 0
        %3100 = vmatpush2.bf16.msra.mxu0 0
        %3101 = vmatprep.subr.bf16.mxu0 0
        %3102 = vmatpush2.bf16.msra.mxu0 0
        %3103 = vmatprep.mubr.bf16.mxu0 0
        %3104 = vmatmul.mubr.bf16.gmra.mxu0 %v2673
        %v3105 = vpop.f32.mrf.mxu0
        %v3106 = vadd.f32 0.0, %v3105
        %v3107 = vpop.f32.mrf.mxu0
        %v3108 = vpop.f32.mrf.mxu0
        %v3109 = vadd.f32 0.0, %v3108
        %v3110 = vpop.f32.mrf.mxu0
        %3111 = vmatprep.mubr.bf16.mxu0 0
        %3112 = vmatmul.mubr.bf16.gmra.mxu0 %v2674
        %v3113 = vpop.f32.mrf.mxu0
        %v3114 = vadd.f32 0.0, %v3113
        %v3115 = vpop.f32.mrf.mxu0
        %v3116 = vpop.f32.mrf.mxu0
        %v3117 = vadd.f32 0.0, %v3116
        %v3118 = vpop.f32.mrf.mxu0
        %3119 = vmatprep.mubr.bf16.mxu0 0
        %3120 = vmatmul.mubr.bf16.gmra.mxu0 %v2675
        %v3121 = vpop.f32.mrf.mxu0
        %v3122 = vadd.f32 0.0, %v3121
        %v3123 = vpop.f32.mrf.mxu0
        %v3124 = vpop.f32.mrf.mxu0
        %v3125 = vadd.f32 0.0, %v3124
        %v3126 = vpop.f32.mrf.mxu0
        %3127 = vmatprep.mubr.bf16.mxu0 0
        %3128 = vmatmul.mubr.bf16.gmra.mxu0 %v2676
        %v3129 = vpop.f32.mrf.mxu0
        %v3130 = vadd.f32 0.0, %v3129
        %v3131 = vpop.f32.mrf.mxu0
        %v3132 = vpop.f32.mrf.mxu0
        %v3133 = vadd.f32 0.0, %v3132
        %v3134 = vpop.f32.mrf.mxu0
        %3135 = vdwg.mxu0
        %3136 = vmatprep.subr.bf16.mxu0 0
        %3137 = vmatpush1.bf16.msra.mxu0 %v1255
        %3138 = vmatprep.subr.bf16.mxu0 0
        %3139 = vmatpush1.bf16.msra.mxu0 %v1253
        %3140 = vmatprep.subr.bf16.mxu0 0
        %3141 = vmatpush1.bf16.msra.mxu0 %v1251
        %3142 = vmatprep.subr.bf16.mxu0 0
        %3143 = vmatpush1.bf16.msra.mxu0 %v1249
        %3144 = vmatprep.subr.bf16.mxu0 0
        %3145 = vmatpush1.bf16.msra.mxu0 %v1247
        %3146 = vmatprep.subr.bf16.mxu0 0
        %3147 = vmatpush1.bf16.msra.mxu0 %v1245
        %3148 = vmatprep.subr.bf16.mxu0 0
        %3149 = vmatpush1.bf16.msra.mxu0 %v1243
        %3150 = vmatprep.subr.bf16.mxu0 0
        %3151 = vmatpush1.bf16.msra.mxu0 %v1241
        %3152 = vmatprep.subr.bf16.mxu0 0
        %3153 = vmatpush2.bf16.msra.mxu0 0
        %3154 = vmatprep.subr.bf16.mxu0 0
        %3155 = vmatpush2.bf16.msra.mxu0 0
        %3156 = vmatprep.subr.bf16.mxu0 0
        %3157 = vmatpush2.bf16.msra.mxu0 0
        %3158 = vmatprep.subr.bf16.mxu0 0
        %3159 = vmatpush2.bf16.msra.mxu0 0
        %3160 = vmatprep.subr.bf16.mxu0 0
        %3161 = vmatpush2.bf16.msra.mxu0 0
        %3162 = vmatprep.subr.bf16.mxu0 0
        %3163 = vmatpush2.bf16.msra.mxu0 0
        %3164 = vmatprep.subr.bf16.mxu0 0
        %3165 = vmatpush2.bf16.msra.mxu0 0
        %3166 = vmatprep.subr.bf16.mxu0 0
        %3167 = vmatpush2.bf16.msra.mxu0 0
        %3168 = vmatprep.mubr.bf16.mxu0 0
        %3169 = vmatmul.mubr.bf16.gmra.mxu0 %v2677
        %v3170 = vpop.f32.mrf.mxu0
        %v3171 = vadd.f32 0.0, %v3170
        %v3172 = vpop.f32.mrf.mxu0
        %v3173 = vpop.f32.mrf.mxu0
        %v3174 = vadd.f32 0.0, %v3173
        %v3175 = vpop.f32.mrf.mxu0
        %3176 = vmatprep.mubr.bf16.mxu0 0
        %3177 = vmatmul.mubr.bf16.gmra.mxu0 %v2678
        %v3178 = vpop.f32.mrf.mxu0
        %v3179 = vadd.f32 0.0, %v3178
        %v3180 = vpop.f32.mrf.mxu0
        %v3181 = vpop.f32.mrf.mxu0
        %v3182 = vadd.f32 0.0, %v3181
        %v3183 = vpop.f32.mrf.mxu0
        %3184 = vmatprep.mubr.bf16.mxu0 0
        %3185 = vmatmul.mubr.bf16.gmra.mxu0 %v2679
        %v3186 = vpop.f32.mrf.mxu0
        %v3187 = vadd.f32 0.0, %v3186
        %v3188 = vpop.f32.mrf.mxu0
        %v3189 = vpop.f32.mrf.mxu0
        %v3190 = vadd.f32 0.0, %v3189
        %v3191 = vpop.f32.mrf.mxu0
        %3192 = vmatprep.mubr.bf16.mxu0 0
        %3193 = vmatmul.mubr.bf16.gmra.mxu0 %v2680
        %v3194 = vpop.f32.mrf.mxu0
        %v3195 = vadd.f32 0.0, %v3194
        %v3196 = vpop.f32.mrf.mxu0
        %v3197 = vpop.f32.mrf.mxu0
        %v3198 = vadd.f32 0.0, %v3197
        %v3199 = vpop.f32.mrf.mxu0
        %3200 = vdwg.mxu0
        %3209 = vrot.lane.b32.xlu0 %v2781, 16
        %v3210 = vpop.permute.xlu0 %3209
        %3211 = vrot.lane.b32.xlu0 %v2784, 16
        %v3212 = vpop.permute.xlu0 %3211
        %3213 = vrot.lane.b32.xlu0 %v2789, 16
        %v3214 = vpop.permute.xlu0 %3213
        %3215 = vrot.lane.b32.xlu0 %v2792, 16
        %v3216 = vpop.permute.xlu0 %3215
        %3217 = vrot.lane.b32.xlu0 %v2797, 16
        %v3218 = vpop.permute.xlu0 %3217
        %3219 = vrot.lane.b32.xlu0 %v2800, 16
        %v3220 = vpop.permute.xlu0 %3219
        %3221 = vrot.lane.b32.xlu0 %v2805, 16
        %v3222 = vpop.permute.xlu0 %3221
        %3223 = vrot.lane.b32.xlu0 %v2808, 16
        %v3224 = vpop.permute.xlu0 %3223
        %3241 = vrot.lane.b32.xlu0 %v2846, 32
        %v3242 = vpop.permute.xlu0 %3241
        %3243 = vrot.lane.b32.xlu0 %v2849, 32
        %v3244 = vpop.permute.xlu0 %3243
        %3245 = vrot.lane.b32.xlu0 %v2854, 32
        %v3246 = vpop.permute.xlu0 %3245
        %3247 = vrot.lane.b32.xlu0 %v2857, 32
        %v3248 = vpop.permute.xlu0 %3247
        %3249 = vrot.lane.b32.xlu0 %v2862, 32
        %v3250 = vpop.permute.xlu0 %3249
        %3251 = vrot.lane.b32.xlu0 %v2865, 32
        %v3252 = vpop.permute.xlu0 %3251
        %3253 = vrot.lane.b32.xlu0 %v2870, 32
        %v3254 = vpop.permute.xlu0 %3253
        %3255 = vrot.lane.b32.xlu0 %v2873, 32
        %v3256 = vpop.permute.xlu0 %3255
        %3273 = vrot.lane.b32.xlu0 %v2911, 48
        %v3274 = vpop.permute.xlu0 %3273
        %3275 = vrot.lane.b32.xlu0 %v2914, 48
        %v3276 = vpop.permute.xlu0 %3275
        %3277 = vrot.lane.b32.xlu0 %v2919, 48
        %v3278 = vpop.permute.xlu0 %3277
        %3279 = vrot.lane.b32.xlu0 %v2922, 48
        %v3280 = vpop.permute.xlu0 %3279
        %3281 = vrot.lane.b32.xlu0 %v2927, 48
        %v3282 = vpop.permute.xlu0 %3281
        %3283 = vrot.lane.b32.xlu0 %v2930, 48
        %v3284 = vpop.permute.xlu0 %3283
        %3285 = vrot.lane.b32.xlu0 %v2935, 48
        %v3286 = vpop.permute.xlu0 %3285
        %3287 = vrot.lane.b32.xlu0 %v2938, 48
        %v3288 = vpop.permute.xlu0 %3287
        %3305 = vrot.lane.b32.xlu0 %v2976, 64
        %v3306 = vpop.permute.xlu0 %3305
        %3307 = vrot.lane.b32.xlu0 %v2979, 64
        %v3308 = vpop.permute.xlu0 %3307
        %3309 = vrot.lane.b32.xlu0 %v2984, 64
        %v3310 = vpop.permute.xlu0 %3309
        %3311 = vrot.lane.b32.xlu0 %v2987, 64
        %v3312 = vpop.permute.xlu0 %3311
        %3313 = vrot.lane.b32.xlu0 %v2992, 64
        %v3314 = vpop.permute.xlu0 %3313
        %3315 = vrot.lane.b32.xlu0 %v2995, 64
        %v3316 = vpop.permute.xlu0 %3315
        %3317 = vrot.lane.b32.xlu0 %v3000, 64
        %v3318 = vpop.permute.xlu0 %3317
        %3319 = vrot.lane.b32.xlu0 %v3003, 64
        %v3320 = vpop.permute.xlu0 %3319
        %3337 = vrot.lane.b32.xlu0 %v3041, 80
        %v3338 = vpop.permute.xlu0 %3337
        %3339 = vrot.lane.b32.xlu0 %v3044, 80
        %v3340 = vpop.permute.xlu0 %3339
        %3341 = vrot.lane.b32.xlu0 %v3049, 80
        %v3342 = vpop.permute.xlu0 %3341
        %3343 = vrot.lane.b32.xlu0 %v3052, 80
        %v3344 = vpop.permute.xlu0 %3343
        %3345 = vrot.lane.b32.xlu0 %v3057, 80
        %v3346 = vpop.permute.xlu0 %3345
        %3347 = vrot.lane.b32.xlu0 %v3060, 80
        %v3348 = vpop.permute.xlu0 %3347
        %3349 = vrot.lane.b32.xlu0 %v3065, 80
        %v3350 = vpop.permute.xlu0 %3349
        %3351 = vrot.lane.b32.xlu0 %v3068, 80
        %v3352 = vpop.permute.xlu0 %3351
        %3369 = vrot.lane.b32.xlu0 %v3106, 96
        %v3370 = vpop.permute.xlu0 %3369
        %3371 = vrot.lane.b32.xlu0 %v3109, 96
        %v3372 = vpop.permute.xlu0 %3371
        %3373 = vrot.lane.b32.xlu0 %v3114, 96
        %v3374 = vpop.permute.xlu0 %3373
        %3375 = vrot.lane.b32.xlu0 %v3117, 96
        %v3376 = vpop.permute.xlu0 %3375
        %3377 = vrot.lane.b32.xlu0 %v3122, 96
        %v3378 = vpop.permute.xlu0 %3377
        %3379 = vrot.lane.b32.xlu0 %v3125, 96
        %v3380 = vpop.permute.xlu0 %3379
        %3381 = vrot.lane.b32.xlu0 %v3130, 96
        %v3382 = vpop.permute.xlu0 %3381
        %3383 = vrot.lane.b32.xlu0 %v3133, 96
        %v3384 = vpop.permute.xlu0 %3383
        %3401 = vrot.lane.b32.xlu0 %v3171, 112
        %v3402 = vpop.permute.xlu0 %3401
        %3403 = vrot.lane.b32.xlu0 %v3174, 112
        %v3404 = vpop.permute.xlu0 %3403
        %3405 = vrot.lane.b32.xlu0 %v3179, 112
        %v3406 = vpop.permute.xlu0 %3405
        %3407 = vrot.lane.b32.xlu0 %v3182, 112
        %v3408 = vpop.permute.xlu0 %3407
        %3409 = vrot.lane.b32.xlu0 %v3187, 112
        %v3410 = vpop.permute.xlu0 %3409
        %3411 = vrot.lane.b32.xlu0 %v3190, 112
        %v3412 = vpop.permute.xlu0 %3411
        %3413 = vrot.lane.b32.xlu0 %v3195, 112
        %v3414 = vpop.permute.xlu0 %3413
        %3415 = vrot.lane.b32.xlu0 %v3198, 112
        %v3416 = vpop.permute.xlu0 %3415
        %v3425 = vsel %vm1264, %v2716, %v3210
        %v3426 = vsel %vm1264, %v2719, %v3212
        %v3427 = vsel %vm1264, %v2724, %v3214
        %v3428 = vsel %vm1264, %v2727, %v3216
        %v3429 = vsel %vm1264, %v2732, %v3218
        %v3430 = vsel %vm1264, %v2735, %v3220
        %v3431 = vsel %vm1264, %v2740, %v3222
        %v3432 = vsel %vm1264, %v2743, %v3224
        %vm3433 = vcmask 261120
        %v3434 = vsel %vm3433, %v3425, %v3242
        %v3435 = vsel %vm3433, %v3426, %v3244
        %v3436 = vsel %vm3433, %v3427, %v3246
        %v3437 = vsel %vm3433, %v3428, %v3248
        %v3438 = vsel %vm3433, %v3429, %v3250
        %v3439 = vsel %vm3433, %v3430, %v3252
        %v3440 = vsel %vm3433, %v3431, %v3254
        %v3441 = vsel %vm3433, %v3432, %v3256
        %vm3442 = vcmask 392192
        %v3443 = vsel %vm3442, %v3434, %v3274
        %v3444 = vsel %vm3442, %v3435, %v3276
        %v3445 = vsel %vm3442, %v3436, %v3278
        %v3446 = vsel %vm3442, %v3437, %v3280
        %v3447 = vsel %vm3442, %v3438, %v3282
        %v3448 = vsel %vm3442, %v3439, %v3284
        %v3449 = vsel %vm3442, %v3440, %v3286
        %v3450 = vsel %vm3442, %v3441, %v3288
        %vm3451 = vcmask 523264
        %v3452 = vsel %vm3451, %v3443, %v3306
        %v3453 = vsel %vm3451, %v3444, %v3308
        %v3454 = vsel %vm3451, %v3445, %v3310
        %v3455 = vsel %vm3451, %v3446, %v3312
        %v3456 = vsel %vm3451, %v3447, %v3314
        %v3457 = vsel %vm3451, %v3448, %v3316
        %v3458 = vsel %vm3451, %v3449, %v3318
        %v3459 = vsel %vm3451, %v3450, %v3320
        %vm3460 = vcmask 654336
        %v3461 = vsel %vm3460, %v3452, %v3338
        %v3462 = vsel %vm3460, %v3453, %v3340
        %v3463 = vsel %vm3460, %v3454, %v3342
        %v3464 = vsel %vm3460, %v3455, %v3344
        %v3465 = vsel %vm3460, %v3456, %v3346
        %v3466 = vsel %vm3460, %v3457, %v3348
        %v3467 = vsel %vm3460, %v3458, %v3350
        %v3468 = vsel %vm3460, %v3459, %v3352
        %vm3469 = vcmask 785408
        %v3470 = vsel %vm3469, %v3461, %v3370
        %v3471 = vsel %vm3469, %v3462, %v3372
        %v3472 = vsel %vm3469, %v3463, %v3374
        %v3473 = vsel %vm3469, %v3464, %v3376
        %v3474 = vsel %vm3469, %v3465, %v3378
        %v3475 = vsel %vm3469, %v3466, %v3380
        %v3476 = vsel %vm3469, %v3467, %v3382
        %v3477 = vsel %vm3469, %v3468, %v3384
        %vm3478 = vcmask 916480
        %v3479 = vsel %vm3478, %v3470, %v3402
        %v3480 = vsel %vm3478, %v3471, %v3404
        %v3481 = vsel %vm3478, %v3472, %v3406
        %v3482 = vsel %vm3478, %v3473, %v3408
        %v3483 = vsel %vm3478, %v3474, %v3410
        %v3484 = vsel %vm3478, %v3475, %v3412
        %v3485 = vsel %vm3478, %v3476, %v3414
        %v3486 = vsel %vm3478, %v3477, %v3416
        %v3487 = vpack.c.bf16 %v3480, %v3479
        %v3488 = vpack.c.bf16 %v3482, %v3481
        %v3489 = vpack.c.bf16 %v3484, %v3483
        %v3490 = vpack.c.bf16 %v3486, %v3485
        %v3491 = vld [vmem:[#allocation10] sm:$0xf]
        %v3492 = vld [vmem:[#allocation10 + $0x4] sm:$0xf]
        %v3493 = vld [vmem:[#allocation10 + $0x8] sm:$0xf]
        %v3494 = vld [vmem:[#allocation10 + $0xc] sm:$0xf]
        %v3495 = vld [vmem:[#allocation10 + $0x10] sm:$0xf]
        %v3496 = vld [vmem:[#allocation10 + $0x14] sm:$0xf]
        %v3497 = vld [vmem:[#allocation10 + $0x18] sm:$0xf]
        %v3498 = vld [vmem:[#allocation10 + $0x1c] sm:$0xf]
        %v3499 = vld [vmem:[#allocation10 + $0x20] sm:$0xf]
        %v3500 = vld [vmem:[#allocation10 + $0x24] sm:$0xf]
        %v3501 = vld [vmem:[#allocation10 + $0x28] sm:$0xf]
        %v3502 = vld [vmem:[#allocation10 + $0x2c] sm:$0xf]
        %v3503 = vld [vmem:[#allocation10 + $0x30] sm:$0xf]
        %v3504 = vld [vmem:[#allocation10 + $0x34] sm:$0xf]
        %v3505 = vld [vmem:[#allocation10 + $0x38] sm:$0xf]
        %v3506 = vld [vmem:[#allocation10 + $0x3c] sm:$0xf]
        %v3507 = vld [vmem:[%s7] sm:$0x1]
        %v3509 = vlaneseq
        %v3510 = vshrl.u32 %v3509, 7
        %v3511 = vsub.s32 0, %v3510
        %v3512 = vrot.slane %v3507, %v3511
        %v3530 = vunpack.c.l.b16 %v3491
        %v3531 = vunpack.c.l.b16 %v3492
        %v3532 = vunpack.c.l.b16 %v3493
        %v3533 = vunpack.c.l.b16 %v3494
        %v3534 = vunpack.c.l.b16 %v3495
        %v3535 = vunpack.c.l.b16 %v3496
        %v3536 = vunpack.c.l.b16 %v3497
        %v3537 = vunpack.c.l.b16 %v3498
        %v3538 = vunpack.c.l.b16 %v3499
        %v3539 = vunpack.c.l.b16 %v3500
        %v3540 = vunpack.c.l.b16 %v3501
        %v3541 = vunpack.c.l.b16 %v3502
        %v3542 = vunpack.c.l.b16 %v3503
        %v3543 = vunpack.c.l.b16 %v3504
        %v3544 = vunpack.c.l.b16 %v3505
        %v3545 = vunpack.c.l.b16 %v3506
        %v3546 = vpack.c.b16 %v3531, %v3530
        %v3547 = vpack.c.b16 %v3533, %v3532
        %v3548 = vpack.c.b16 %v3535, %v3534
        %v3549 = vpack.c.b16 %v3537, %v3536
        %v3550 = vpack.c.b16 %v3539, %v3538
        %v3551 = vpack.c.b16 %v3541, %v3540
        %v3552 = vpack.c.b16 %v3543, %v3542
        %v3553 = vpack.c.b16 %v3545, %v3544
        %3562 = vmatprep.subr.bf16.mxu0 0
        %3563 = vmatpush1.bf16.msra.mxu0 %v3553
        %3564 = vmatprep.subr.bf16.mxu0 0
        %3565 = vmatpush1.bf16.msra.mxu0 %v3552
        %3566 = vmatprep.subr.bf16.mxu0 0
        %3567 = vmatpush1.bf16.msra.mxu0 %v3551
        %3568 = vmatprep.subr.bf16.mxu0 0
        %3569 = vmatpush1.bf16.msra.mxu0 %v3550
        %3570 = vmatprep.subr.bf16.mxu0 0
        %3571 = vmatpush1.bf16.msra.mxu0 %v3549
        %3572 = vmatprep.subr.bf16.mxu0 0
        %3573 = vmatpush1.bf16.msra.mxu0 %v3548
        %3574 = vmatprep.subr.bf16.mxu0 0
        %3575 = vmatpush1.bf16.msra.mxu0 %v3547
        %3576 = vmatprep.subr.bf16.mxu0 0
        %3577 = vmatpush1.bf16.msra.mxu0 %v3546
        %3578 = vmatprep.subr.bf16.mxu0 0
        %3579 = vmatpush2.bf16.msra.mxu0 0
        %3580 = vmatprep.subr.bf16.mxu0 0
        %3581 = vmatpush2.bf16.msra.mxu0 0
        %3582 = vmatprep.subr.bf16.mxu0 0
        %3583 = vmatpush2.bf16.msra.mxu0 0
        %3584 = vmatprep.subr.bf16.mxu0 0
        %3585 = vmatpush2.bf16.msra.mxu0 0
        %3586 = vmatprep.subr.bf16.mxu0 0
        %3587 = vmatpush2.bf16.msra.mxu0 0
        %3588 = vmatprep.subr.bf16.mxu0 0
        %3589 = vmatpush2.bf16.msra.mxu0 0
        %3590 = vmatprep.subr.bf16.mxu0 0
        %3591 = vmatpush2.bf16.msra.mxu0 0
        %3592 = vmatprep.subr.bf16.mxu0 0
        %3593 = vmatpush2.bf16.msra.mxu0 0
        %3594 = vmatprep.mubr.bf16.mxu0 0
        %3595 = vmatmul.mubr.bf16.gmra.mxu0 %v3487
        %v3596 = vpop.f32.mrf.mxu0
        %v3597 = vadd.f32 %v3512, %v3596
        %v3598 = vpop.f32.mrf.mxu0
        %v3599 = vpop.f32.mrf.mxu0
        %v3600 = vadd.f32 %v3512, %v3599
        %v3601 = vpop.f32.mrf.mxu0
        %3602 = vmatprep.mubr.bf16.mxu0 0
        %3603 = vmatmul.mubr.bf16.gmra.mxu0 %v3488
        %v3604 = vpop.f32.mrf.mxu0
        %v3605 = vadd.f32 %v3512, %v3604
        %v3606 = vpop.f32.mrf.mxu0
        %v3607 = vpop.f32.mrf.mxu0
        %v3608 = vadd.f32 %v3512, %v3607
        %v3609 = vpop.f32.mrf.mxu0
        %3610 = vmatprep.mubr.bf16.mxu0 0
        %3611 = vmatmul.mubr.bf16.gmra.mxu0 %v3489
        %v3612 = vpop.f32.mrf.mxu0
        %v3613 = vadd.f32 %v3512, %v3612
        %v3614 = vpop.f32.mrf.mxu0
        %v3615 = vpop.f32.mrf.mxu0
        %v3616 = vadd.f32 %v3512, %v3615
        %v3617 = vpop.f32.mrf.mxu0
        %3618 = vmatprep.mubr.bf16.mxu0 0
        %3619 = vmatmul.mubr.bf16.gmra.mxu0 %v3490
        %v3620 = vpop.f32.mrf.mxu0
        %v3621 = vadd.f32 %v3512, %v3620
        %v3622 = vpop.f32.mrf.mxu0
        %v3623 = vpop.f32.mrf.mxu0
        %v3624 = vadd.f32 %v3512, %v3623
        %v3625 = vpop.f32.mrf.mxu0
        %3626 = vdwg.mxu0
        %v3627 = vadd.f32 %v3597, %v495
        %v3628 = vadd.f32 %v3600, %v496
        %v3629 = vadd.f32 %v3605, %v497
        %v3630 = vadd.f32 %v3608, %v498
        %v3631 = vadd.f32 %v3613, %v499
        %v3632 = vadd.f32 %v3616, %v500
        %v3633 = vadd.f32 %v3621, %v501
        %v3634 = vadd.f32 %v3624, %v502
        %3635 = vadd.xlane.f32.xlu0 %v3627
        %v3636 = vpop.xlane.xlu0 %3635
        %3637 = vadd.xlane.f32.xlu0 %v3628
        %v3638 = vpop.xlane.xlu0 %3637
        %3639 = vadd.xlane.f32.xlu0 %v3629
        %v3640 = vpop.xlane.xlu0 %3639
        %3641 = vadd.xlane.f32.xlu0 %v3630
        %v3642 = vpop.xlane.xlu0 %3641
        %3643 = vadd.xlane.f32.xlu0 %v3631
        %v3644 = vpop.xlane.xlu0 %3643
        %3645 = vadd.xlane.f32.xlu0 %v3632
        %v3646 = vpop.xlane.xlu0 %3645
        %3647 = vadd.xlane.f32.xlu0 %v3633
        %v3648 = vpop.xlane.xlu0 %3647
        %3649 = vadd.xlane.f32.xlu0 %v3634
        %v3650 = vpop.xlane.xlu0 %3649
        %v3651 = vrcp.pop 128.0
        %v3652 = vmul.f32 %v3636, %v3651
        %v3653 = vmul.f32 %v3638, %v3651
        %v3654 = vmul.f32 %v3640, %v3651
        %v3655 = vmul.f32 %v3642, %v3651
        %v3656 = vmul.f32 %v3644, %v3651
        %v3657 = vmul.f32 %v3646, %v3651
        %v3658 = vmul.f32 %v3648, %v3651
        %v3659 = vmul.f32 %v3650, %v3651
        %v3660 = vsub.f32 %v3627, %v3652
        %v3661 = vsub.f32 %v3628, %v3653
        %v3662 = vsub.f32 %v3629, %v3654
        %v3663 = vsub.f32 %v3630, %v3655
        %v3664 = vsub.f32 %v3631, %v3656
        %v3665 = vsub.f32 %v3632, %v3657
        %v3666 = vsub.f32 %v3633, %v3658
        %v3667 = vsub.f32 %v3634, %v3659
        %v3668 = vmul.f32 %v3660, %v3660
        %v3669 = vmul.f32 %v3661, %v3661
        %v3670 = vmul.f32 %v3662, %v3662
        %v3671 = vmul.f32 %v3663, %v3663
        %v3672 = vmul.f32 %v3664, %v3664
        %v3673 = vmul.f32 %v3665, %v3665
        %v3674 = vmul.f32 %v3666, %v3666
        %v3675 = vmul.f32 %v3667, %v3667
        %3676 = vadd.xlane.f32.xlu0 %v3668
        %v3677 = vpop.xlane.xlu0 %3676
        %3678 = vadd.xlane.f32.xlu0 %v3669
        %v3679 = vpop.xlane.xlu0 %3678
        %3680 = vadd.xlane.f32.xlu0 %v3670
        %v3681 = vpop.xlane.xlu0 %3680
        %3682 = vadd.xlane.f32.xlu0 %v3671
        %v3683 = vpop.xlane.xlu0 %3682
        %3684 = vadd.xlane.f32.xlu0 %v3672
        %v3685 = vpop.xlane.xlu0 %3684
        %3686 = vadd.xlane.f32.xlu0 %v3673
        %v3687 = vpop.xlane.xlu0 %3686
        %3688 = vadd.xlane.f32.xlu0 %v3674
        %v3689 = vpop.xlane.xlu0 %3688
        %3690 = vadd.xlane.f32.xlu0 %v3675
        %v3691 = vpop.xlane.xlu0 %3690
        %v3692 = vmul.f32 %v3677, %v3651
        %v3693 = vmul.f32 %v3679, %v3651
        %v3694 = vmul.f32 %v3681, %v3651
        %v3695 = vmul.f32 %v3683, %v3651
        %v3696 = vmul.f32 %v3685, %v3651
        %v3697 = vmul.f32 %v3687, %v3651
        %v3698 = vmul.f32 %v3689, %v3651
        %v3699 = vmul.f32 %v3691, %v3651
        %v3700 = vadd.f32 %v3692, 1e-05
        %v3701 = vadd.f32 %v3693, 1e-05
        %v3702 = vadd.f32 %v3694, 1e-05
        %v3703 = vadd.f32 %v3695, 1e-05
        %v3704 = vadd.f32 %v3696, 1e-05
        %v3705 = vadd.f32 %v3697, 1e-05
        %v3706 = vadd.f32 %v3698, 1e-05
        %v3707 = vadd.f32 %v3699, 1e-05
        %v3708 = vrsqrt.pop %v3700
        %v3709 = vrsqrt.pop %v3701
        %v3710 = vrsqrt.pop %v3702
        %v3711 = vrsqrt.pop %v3703
        %v3712 = vrsqrt.pop %v3704
        %v3713 = vrsqrt.pop %v3705
        %v3714 = vrsqrt.pop %v3706
        %v3715 = vrsqrt.pop %v3707
        %v3716 = vmul.f32 %v3660, %v3708
        %v3717 = vmul.f32 %v3661, %v3709
        %v3718 = vmul.f32 %v3662, %v3710
        %v3719 = vmul.f32 %v3663, %v3711
        %v3720 = vmul.f32 %v3664, %v3712
        %v3721 = vmul.f32 %v3665, %v3713
        %v3722 = vmul.f32 %v3666, %v3714
        %v3723 = vmul.f32 %v3667, %v3715
        %v3724 = vld [vmem:[%s8] sm:$0x1]
        %v3726 = vlaneseq
        %v3727 = vshrl.u32 %v3726, 7
        %v3728 = vsub.s32 0, %v3727
        %v3729 = vrot.slane %v3724, %v3728
        %v3731 = vmul.f32 %v3716, %v3729
        %v3732 = vmul.f32 %v3717, %v3729
        %v3733 = vmul.f32 %v3718, %v3729
        %v3734 = vmul.f32 %v3719, %v3729
        %v3735 = vmul.f32 %v3720, %v3729
        %v3736 = vmul.f32 %v3721, %v3729
        %v3737 = vmul.f32 %v3722, %v3729
        %v3738 = vmul.f32 %v3723, %v3729
        %v3739 = vld [vmem:[#allocation11] sm:$0x1]
        %v3741 = vlaneseq
        %v3742 = vshrl.u32 %v3741, 7
        %v3743 = vsub.s32 0, %v3742
        %v3744 = vrot.slane %v3739, %v3743
        %v3746 = vadd.f32 %v3731, %v3744
        %v3747 = vadd.f32 %v3732, %v3744
        %v3748 = vadd.f32 %v3733, %v3744
        %v3749 = vadd.f32 %v3734, %v3744
        %v3750 = vadd.f32 %v3735, %v3744
        %v3751 = vadd.f32 %v3736, %v3744
        %v3752 = vadd.f32 %v3737, %v3744
        %v3753 = vadd.f32 %v3738, %v3744
        %3754 = vst [vmem:[%s491] sm:$0xff] %v3746
        %3755 = vst [vmem:[%s491 + $0x8] sm:$0xff] %v3747
        %3756 = vst [vmem:[%s491 + $0x10] sm:$0xff] %v3748
        %3757 = vst [vmem:[%s491 + $0x18] sm:$0xff] %v3749
        %3758 = vst [vmem:[%s491 + $0x20] sm:$0xff] %v3750
        %3759 = vst [vmem:[%s491 + $0x28] sm:$0xff] %v3751
        %3760 = vst [vmem:[%s491 + $0x30] sm:$0xff] %v3752
        %3761 = vst [vmem:[%s491 + $0x38] sm:$0xff] %v3753
        %s3762 = sand.u32 %s276, 1
        %s3763 = scalar_lea.sflag [#allocation4], %s3762
        %s3764 = sand.u32 %s276, 1
        %s3765 = smul.addr %s3764, 64
        %s3766 = scalar_lea.vmem [#allocation13], %s3765
        // Predicated region
        $region85: #{cross_attention_layer.1} parent=59 // pred_check
          %p3767 = pneg %p286
        $region86: #{cross_attention_layer.1} parent=59 // pred_check_branch
          %3769 = sbr.rel (%p3767) target = $region88
        $region87: #{cross_attention_layer.1} parent=59 // pred_region
          %s3770 = smul.u32 8, %s37
          %s3772 = ssub.s32 1024, 1024
          %3773 = vsyncadd %s3763, %s3772
          %s3774 = smul.addr %s36, 8
          %s3775 = sadd.s32 %s3770, %s3774
          %s3776 = smul.addr %s3775, 128
          %s3777 = scalar_lea.hbm %s10, %s3776
          %s3778 = sshll.u32 %s3766, 4
          %s3779 = int_to_ptr.vmem [resolvable:$true] %s3778
          %3784 = dma.vmem_to_hbm [thread:$0]  %s3779, 1024, %s3777, %s3763, 128, 128, 8
        $region88: #{cross_attention_layer.1} parent=59 // pred_fallthru
          _
      $region60: #{cross_attention_layer.1} parent=5 // pred_fallthru
        _
      %p3785 = scmp.le.s32.totalorder 2, %s27
      // Predicated region
      $region89: #{cross_attention_layer.1} parent=5 // pred_check
        %p3786 = pneg %p3785
      $region90: #{cross_attention_layer.1} parent=5 // pred_check_branch
        %3788 = sbr.rel (%p3786) target = $region92
      $region91: #{cross_attention_layer.1} parent=5 // pred_region
        %s3789 = ssub.s32 %s27, 2
        // Predicated region
        $region93: #{cross_attention_layer.1} parent=91 // pred_check
          %p3790 = pneg %p292
        $region94: #{cross_attention_layer.1} parent=91 // pred_check_branch
          %3792 = sbr.rel (%p3790) target = $region96
        $region95: #{cross_attention_layer.1} parent=91 // pred_region
          %s3793 = sand.u32 %s277, 1
          %s3794 = scalar_lea.sflag [#allocation4], %s3793
          %s3795 = sand.u32 %s277, 1
          %s3796 = smul.addr %s3795, 64
          %s3797 = scalar_lea.vmem [#allocation13], %s3796
          %3798 = dma.done %s3794, 1024
        $region96: #{cross_attention_layer.1} parent=91 // pred_fallthru
          _
      $region92: #{cross_attention_layer.1} parent=5 // pred_fallthru
        _
    $region6: #{cross_attention_layer.1} parent=1 // loop_footer
      %s31 = sadd.s32 1, %s27
    $region7: #{cross_attention_layer.1} parent=1 // loop_footer_branch
      %26 = sbr.rel target = $region3
    $region8: #{cross_attention_layer.1} parent=1 // loop_exit
      _
    %3799 = vsyncpa [#allocation3], 1
    %s3800 = scalar_lea.sflag [#allocation3], 1
    %3801 = vsyncpa %s3800, 1
    %3802 = vsyncpa [#allocation6], 1
    %s3803 = scalar_lea.sflag [#allocation6], 1
    %3804 = vsyncpa %s3803, 1
    %3805 = vsyncpa [#allocation9], 1
    %3806 = vsyncpa [#allocation12], 1
    %3807 = vsyncpa [#allocation4], 1
    %s3808 = scalar_lea.sflag [#allocation4], 1
    %3809 = vsyncpa %s3808, 1

</llo_original>
